<compile_context>
chip_gen: v7x
topology: tpu7x:2x2x1
jax: 0.10.0
libtpu: 0.0.40
codegen_flags: <defaults>
</compile_context>

<pallas_src>
import functools

import jax
import jax.numpy as jnp
from jax.experimental import pallas as pl
from jax.experimental.pallas import tpu as pltpu


def _layer_norm(x32, gamma, beta, eps=1e-5):
    # matches torch LayerNorm (fp32 compute, as in the fp16-safe subclass)
    mu = jnp.mean(x32, axis=-1, keepdims=True)
    var = jnp.mean((x32 - mu) ** 2, axis=-1, keepdims=True)
    return (x32 - mu) * jax.lax.rsqrt(var + eps) * gamma + beta


def _block_kernel(x_ref,
                  ln1g_ref, ln1b_ref,
                  wqkv_ref, bqkv_ref,
                  wout_ref, bout_ref,
                  ln2g_ref, ln2b_ref,
                  wfc_ref, bfc_ref,
                  wpj_ref, bpj_ref,
                  o_ref,
                  attn_scr,
                  *, n_head, compute_dtype):
    Bt, S, D = x_ref.shape
    M = Bt * S
    hd = D // n_head
    cdt = compute_dtype

    x = x_ref[...].astype(jnp.float32).reshape(M, D)          # (M, D) f32

    # ---- x = x + attn(ln_1(x)) ----
    y = _layer_norm(x, ln1g_ref[...], ln1b_ref[...])
    # NOTE: the 1/sqrt(hd) scale is already folded into the Q part of
    # wqkv / bqkv by the wrapper.
    qkv = jnp.dot(y.astype(cdt), wqkv_ref[...],
                  preferred_element_type=jnp.float32) + bqkv_ref[...]     # (M, 3D) f32
    qkv_c = qkv.astype(cdt)                                               # cast once

    # Per-head attention, batched over the Bt sequences of this block.
    # (Heads stay a static unrolled loop: multi-batch-dim dot_general and
    #  second-minor transposes are not reliably lowerable in Mosaic.)
    for h in range(n_head):
        q = qkv_c[:, h * hd:(h + 1) * hd].reshape(Bt, S, hd)
        k = qkv_c[:, D + h * hd:D + (h + 1) * hd].reshape(Bt, S, hd)
        v = qkv_c[:, 2 * D + h * hd:2 * D + (h + 1) * hd].reshape(Bt, S, hd)

        s = jnp.einsum('bqd,bkd->bqk', q, k,
                       preferred_element_type=jnp.float32)                # (Bt,S,S) f32
        s = s - jnp.max(s, axis=-1, keepdims=True)
        e = jnp.exp(s)
        p = e * pl.reciprocal(jnp.sum(e, axis=-1, keepdims=True), approx=True)
        a = jnp.einsum('bqk,bkd->bqd', p.astype(cdt), v,
                       preferred_element_type=jnp.float32)                # (Bt,S,hd) f32
        attn_scr[:, h * hd:(h + 1) * hd] = a.reshape(M, hd)

    attn = jnp.dot(attn_scr[...].astype(cdt), wout_ref[...],
                   preferred_element_type=jnp.float32) + bout_ref[...]
    x = x + attn

    # ---- x = x + mlp(ln_2(x)) ----
    z = _layer_norm(x, ln2g_ref[...], ln2b_ref[...])
    h1 = jnp.dot(z.astype(cdt), wfc_ref[...],
                 preferred_element_type=jnp.float32) + bfc_ref[...]
    h1 = h1 * jax.nn.sigmoid(1.702 * h1)                                  # QuickGELU (f32)
    h2 = jnp.dot(h1.astype(cdt), wpj_ref[...],
                 preferred_element_type=jnp.float32) + bpj_ref[...]
    x = x + h2

    o_ref[...] = x.reshape(Bt, S, D).astype(o_ref.dtype)


def _pick_block_batch(batch, seq, target_rows=256):
    """Largest divisor of `batch` keeping Bt*seq <= ~256 rows (v6e/v7x MXU)."""
    best = 1
    for cand in range(1, batch + 1):
        if batch % cand == 0 and cand * seq <= max(target_rows, seq):
            best = cand
    return best


def residual_attention_block(x_lnd, params, n_head, *,
                             block_batch=None,
                             compute_dtype=jnp.bfloat16):
    """x_lnd: (seq, batch, d_model) -- PyTorch MultiheadAttention layout.

    `params` keeps the PyTorch parameter layout:
      in_w (3D, D), in_b (1, 3D), out_w (D, D), out_b (1, D),
      fc_w (4D, D), fc_b (1, 4D), pj_w (D, 4D), pj_b (1, D),
      ln{1,2}_{g,b} (1, D).
    """
    S, B, D = x_lnd.shape
    assert D % n_head == 0
    if block_batch is None:
        block_batch = _pick_block_batch(B, S)
    assert B % block_batch == 0, "batch must be divisible by block_batch"
    Bt = block_batch
    M = Bt * S
    hd = D // n_head
    scale = float(hd) ** -0.5

    x_bsd = jnp.transpose(x_lnd, (1, 0, 2))                   # (B, S, D)

    # Pre-transpose every projection weight once (x @ W layout) and store it
    # in the matmul compute dtype (halves HBM/VMEM weight bytes for bf16).
    # Fold the attention Q-scale into the Q columns of the QKV weight/bias so
    # the kernel never multiplies by `scale`.
    cdt = compute_dtype
    f32 = jnp.float32
    q_scale = jnp.concatenate(
        [jnp.full((D,), scale, f32), jnp.ones((2 * D,), f32)])            # (3D,)
    w_qkv = (params["in_w"].astype(f32).T * q_scale[None, :]).astype(cdt)  # (D, 3D)
    b_qkv = (params["in_b"].astype(f32) * q_scale[None, :])                # (1, 3D)
    w_out = params["out_w"].T.astype(cdt)                      # (D, D)
    w_fc = params["fc_w"].T.astype(cdt)                        # (D, 4D)
    w_pj = params["pj_w"].T.astype(cdt)                        # (4D, D)
    ln1g, ln1b = params["ln1_g"].astype(f32), params["ln1_b"].astype(f32)
    ln2g, ln2b = params["ln2_g"].astype(f32), params["ln2_b"].astype(f32)
    b_out = params["out_b"].astype(f32)
    b_fc = params["fc_b"].astype(f32)
    b_pj = params["pj_b"].astype(f32)

    def const_spec(shape):
        nd = len(shape)
        # These blocks never change across the grid (constant index_map), so
        # Pallas does not re-DMA them between grid steps.  On v7x (64 MiB
        # VMEM) add pipeline_mode=pl.Buffered(1) here to drop the second
        # weight buffer if VMEM gets tight at larger d_model.
        return pl.BlockSpec(shape, lambda b, _nd=nd: (0,) * _nd)

    in_specs = [
        pl.BlockSpec((Bt, S, D), lambda b: (b, 0, 0)),          # x
        const_spec((1, D)), const_spec((1, D)),                 # ln_1 gamma, beta
        const_spec((D, 3 * D)), const_spec((1, 3 * D)),         # qkv proj (pre-T, q-scaled), bias
        const_spec((D, D)), const_spec((1, D)),                 # out proj (pre-T), bias
        const_spec((1, D)), const_spec((1, D)),                 # ln_2 gamma, beta
        const_spec((D, 4 * D)), const_spec((1, 4 * D)),         # c_fc (pre-T), bias
        const_spec((4 * D, D)), const_spec((1, D)),             # c_proj (pre-T), bias
    ]
    out_spec = pl.BlockSpec((Bt, S, D), lambda b: (b, 0, 0))

    kernel = functools.partial(_block_kernel, n_head=n_head, compute_dtype=cdt)

    out_bsd = pl.pallas_call(
        kernel,
        out_shape=jax.ShapeDtypeStruct((B, S, D), x_lnd.dtype),
        grid_spec=pltpu.PrefetchScalarGridSpec(
            num_scalar_prefetch=0,
            grid=(B // Bt,),
            in_specs=in_specs,
            out_specs=out_spec,
            scratch_shapes=[pltpu.VMEM((M, D), jnp.float32)],   # per-head attn accum
        ),
        compiler_params=pltpu.CompilerParams(
            dimension_semantics=("parallel",),
            vmem_limit_bytes=64 * 1024 * 1024,
        ),
    )(x_bsd,
      ln1g, ln1b,
      w_qkv, b_qkv,
      w_out, b_out,
      ln2g, ln2b,
      w_fc, b_fc,
      w_pj, b_pj)

    return jnp.transpose(out_bsd, (1, 0, 2))                   # back to (S, B, D)


def _reference(x_lnd, params, n_head):
    """Pure-JAX f32 reference mirroring the PyTorch forward."""
    def ln(x, g, b):
        mu = jnp.mean(x, -1, keepdims=True)
        var = jnp.mean((x - mu) ** 2, -1, keepdims=True)
        return (x - mu) * jax.lax.rsqrt(var + 1e-5) * g[0] + b[0]

    S, B, D = x_lnd.shape
    hd = D // n_head
    x = x_lnd.astype(jnp.float32)

    y = ln(x, params["ln1_g"], params["ln1_b"])
    qkv = jnp.einsum("sbd,ed->sbe", y, params["in_w"]) + params["in_b"][0]
    q, k, v = jnp.split(qkv, 3, axis=-1)
    q = q.reshape(S, B, n_head, hd) / jnp.sqrt(hd)
    k = k.reshape(S, B, n_head, hd)
    v = v.reshape(S, B, n_head, hd)
    s = jnp.einsum("qbhd,kbhd->bhqk", q, k)
    p = jax.nn.softmax(s, axis=-1)
    a = jnp.einsum("bhqk,kbhd->qbhd", p, v).reshape(S, B, D)
    a = jnp.einsum("sbd,ed->sbe", a, params["out_w"]) + params["out_b"][0]
    x = x + a

    z = ln(x, params["ln2_g"], params["ln2_b"])
    h = jnp.einsum("sbd,ed->sbe", z, params["fc_w"]) + params["fc_b"][0]
    h = h * jax.nn.sigmoid(1.702 * h)
    h = jnp.einsum("sbe,de->sbd", h, params["pj_w"]) + params["pj_b"][0]
    return (x + h).astype(x_lnd.dtype)


if __name__ == "__main__":
    seq, batch, d_model, n_head = 16, 4, 256, 4     # head_dim = 64 (CLIP-like)

    key = jax.random.PRNGKey(0)
    keys = jax.random.split(key, 8)
    wsc = 0.02

    params = {
        "ln1_g": jnp.ones((1, d_model), jnp.float32),
        "ln1_b": jnp.zeros((1, d_model), jnp.float32),
        "in_w": wsc * jax.random.normal(keys[0], (3 * d_model, d_model), jnp.float32),
        "in_b": 0.01 * jax.random.normal(keys[1], (1, 3 * d_model), jnp.float32),
        "out_w": wsc * jax.random.normal(keys[2], (d_model, d_model), jnp.float32),
        "out_b": 0.01 * jax.random.normal(keys[3], (1, d_model), jnp.float32),
        "ln2_g": jnp.ones((1, d_model), jnp.float32),
        "ln2_b": jnp.zeros((1, d_model), jnp.float32),
        "fc_w": wsc * jax.random.normal(keys[4], (4 * d_model, d_model), jnp.float32),
        "fc_b": 0.01 * jax.random.normal(keys[5], (1, 4 * d_model), jnp.float32),
        "pj_w": wsc * jax.random.normal(keys[6], (d_model, 4 * d_model), jnp.float32),
        "pj_b": 0.01 * jax.random.normal(keys[7], (1, d_model), jnp.float32),
    }

    x = jax.random.normal(jax.random.PRNGKey(42), (seq, batch, d_model), jnp.float32)

    ref = _reference(x, params, n_head)

    # Fast path: bf16 matmul operands, f32 accumulation (bf16-level tolerance).
    out_bf16 = residual_attention_block(x, params, n_head,
                                        block_batch=2,
                                        compute_dtype=jnp.bfloat16)
    out_bf16 = jax.block_until_ready(out_bf16)

    # f32-compute path for a tighter semantic check (slack only from the EUP
    # approximate reciprocal used in the softmax).
    out_f32 = residual_attention_block(x, params, n_head,
                                       block_batch=2,
                                       compute_dtype=jnp.float32)
    out_f32 = jax.block_until_ready(out_f32)

    assert out_bf16.shape == (seq, batch, d_model)
    assert jnp.allclose(out_f32, ref, atol=5e-3, rtol=5e-3), "f32 kernel mismatch"
    assert jnp.allclose(out_bf16, ref, atol=5e-2, rtol=5e-2), "bf16 kernel mismatch"

    print("KERNEL_OK")
</pallas_src>

<mosaic_0001>
module attributes {stable_mosaic.version = 11 : i64} {
  func.func @_block_kernel(%arg0: i32, %arg1: memref<2x16x256xf32, #tpu.memory_space<vmem>>, %arg2: memref<1x256xf32, #tpu.memory_space<vmem>>, %arg3: memref<1x256xf32, #tpu.memory_space<vmem>>, %arg4: memref<256x768xbf16, #tpu.memory_space<vmem>>, %arg5: memref<1x768xf32, #tpu.memory_space<vmem>>, %arg6: memref<256x256xbf16, #tpu.memory_space<vmem>>, %arg7: memref<1x256xf32, #tpu.memory_space<vmem>>, %arg8: memref<1x256xf32, #tpu.memory_space<vmem>>, %arg9: memref<1x256xf32, #tpu.memory_space<vmem>>, %arg10: memref<256x1024xbf16, #tpu.memory_space<vmem>>, %arg11: memref<1x1024xf32, #tpu.memory_space<vmem>>, %arg12: memref<1024x256xbf16, #tpu.memory_space<vmem>>, %arg13: memref<1x256xf32, #tpu.memory_space<vmem>>, %arg14: memref<2x16x256xf32, #tpu.memory_space<vmem>>, %arg15: memref<32x256xf32, #tpu.memory_space<vmem>>) attributes {dimension_semantics = [#tpu.dimension_semantics<parallel>], iteration_bounds = array<i64: 2>, scalar_prefetch = 0 : i64, scratch_operands = 1 : i64, tpu.core_type = #tpu.core_type<tc>, window_params = [{transform_indices = @transform_0, window_bounds = array<i64: 2, 16, 256>}, {pipeline_mode = #tpu.pipeline_mode<synchronous>, transform_indices = @transform_1, window_bounds = array<i64: 1, 256>}, {pipeline_mode = #tpu.pipeline_mode<synchronous>, transform_indices = @transform_2, window_bounds = array<i64: 1, 256>}, {pipeline_mode = #tpu.pipeline_mode<synchronous>, transform_indices = @transform_3, window_bounds = array<i64: 256, 768>}, {pipeline_mode = #tpu.pipeline_mode<synchronous>, transform_indices = @transform_4, window_bounds = array<i64: 1, 768>}, {pipeline_mode = #tpu.pipeline_mode<synchronous>, transform_indices = @transform_5, window_bounds = array<i64: 256, 256>}, {pipeline_mode = #tpu.pipeline_mode<synchronous>, transform_indices = @transform_6, window_bounds = array<i64: 1, 256>}, {pipeline_mode = #tpu.pipeline_mode<synchronous>, transform_indices = @transform_7, window_bounds = array<i64: 1, 256>}, {pipeline_mode = #tpu.pipeline_mode<synchronous>, transform_indices = @transform_8, window_bounds = array<i64: 1, 256>}, {pipeline_mode = #tpu.pipeline_mode<synchronous>, transform_indices = @transform_9, window_bounds = array<i64: 256, 1024>}, {pipeline_mode = #tpu.pipeline_mode<synchronous>, transform_indices = @transform_10, window_bounds = array<i64: 1, 1024>}, {pipeline_mode = #tpu.pipeline_mode<synchronous>, transform_indices = @transform_11, window_bounds = array<i64: 1024, 256>}, {pipeline_mode = #tpu.pipeline_mode<synchronous>, transform_indices = @transform_12, window_bounds = array<i64: 1, 256>}, {transform_indices = @transform_13, window_bounds = array<i64: 2, 16, 256>}]} {
    %c0 = arith.constant 0 : index
    %c0_0 = arith.constant 0 : index
    %c0_1 = arith.constant 0 : index
    %0 = vector.load %arg1[%c0, %c0_0, %c0_1] : memref<2x16x256xf32, #tpu.memory_space<vmem>>, vector<2x16x256xf32>
    %1 = vector.shape_cast %0 : vector<2x16x256xf32> to vector<32x256xf32>
    %c0_2 = arith.constant 0 : index
    %c0_3 = arith.constant 0 : index
    %2 = vector.load %arg2[%c0_2, %c0_3] : memref<1x256xf32, #tpu.memory_space<vmem>>, vector<1x256xf32>
    %c0_4 = arith.constant 0 : index
    %c0_5 = arith.constant 0 : index
    %3 = vector.load %arg3[%c0_4, %c0_5] : memref<1x256xf32, #tpu.memory_space<vmem>>, vector<1x256xf32>
    %cst = arith.constant dense<0.000000e+00> : vector<32xf32>
    %4 = vector.multi_reduction <add>, %1, %cst [1] : vector<32x256xf32> to vector<32xf32>
    %5 = vector.shape_cast %4 : vector<32xf32> to vector<32x1xf32>
    %cst_6 = arith.constant 2.560000e+02 : f32
    %6 = vector.broadcast %cst_6 : f32 to vector<32x1xf32>
    %7 = arith.divf %5, %6 : vector<32x1xf32>
    %8 = vector.broadcast %7 : vector<32x1xf32> to vector<32x256xf32>
    %9 = arith.subf %1, %8 : vector<32x256xf32>
    %10 = arith.mulf %9, %9 : vector<32x256xf32>
    %cst_7 = arith.constant dense<0.000000e+00> : vector<32xf32>
    %11 = vector.multi_reduction <add>, %10, %cst_7 [1] : vector<32x256xf32> to vector<32xf32>
    %12 = vector.shape_cast %11 : vector<32xf32> to vector<32x1xf32>
    %cst_8 = arith.constant 2.560000e+02 : f32
    %13 = vector.broadcast %cst_8 : f32 to vector<32x1xf32>
    %14 = arith.divf %12, %13 : vector<32x1xf32>
    %15 = vector.broadcast %7 : vector<32x1xf32> to vector<32x256xf32>
    %16 = arith.subf %1, %15 : vector<32x256xf32>
    %cst_9 = arith.constant 9.99999974E-6 : f32
    %17 = vector.broadcast %cst_9 : f32 to vector<32x1xf32>
    %18 = arith.addf %14, %17 : vector<32x1xf32>
    %19 = math.rsqrt %18 : vector<32x1xf32>
    %20 = vector.broadcast %19 : vector<32x1xf32> to vector<32x256xf32>
    %21 = arith.mulf %16, %20 : vector<32x256xf32>
    %22 = vector.broadcast %2 : vector<1x256xf32> to vector<32x256xf32>
    %23 = arith.mulf %21, %22 : vector<32x256xf32>
    %24 = vector.broadcast %3 : vector<1x256xf32> to vector<32x256xf32>
    %25 = arith.addf %23, %24 : vector<32x256xf32>
    %26 = arith.truncf %25 : vector<32x256xf32> to vector<32x256xbf16>
    %c0_10 = arith.constant 0 : index
    %c0_11 = arith.constant 0 : index
    %27 = vector.load %arg4[%c0_10, %c0_11] : memref<256x768xbf16, #tpu.memory_space<vmem>>, vector<256x768xbf16>
    %cst_12 = arith.constant dense<0.000000e+00> : vector<32x768xf32>
    %28 = tpu.matmul %26, %27, %cst_12 {dimension_numbers = #tpu.dot_dimension_numbers<[1], [0], [0], [1], [0, 0, 1, 1], [], []>} : vector<32x256xbf16>, vector<256x768xbf16>, vector<32x768xf32> -> vector<32x768xf32>
    %c0_13 = arith.constant 0 : index
    %c0_14 = arith.constant 0 : index
    %29 = vector.load %arg5[%c0_13, %c0_14] : memref<1x768xf32, #tpu.memory_space<vmem>>, vector<1x768xf32>
    %30 = vector.broadcast %29 : vector<1x768xf32> to vector<32x768xf32>
    %31 = arith.addf %28, %30 : vector<32x768xf32>
    %32 = arith.truncf %31 : vector<32x768xf32> to vector<32x768xbf16>
    %33 = vector.extract_strided_slice %32 {offsets = [0, 0], sizes = [32, 64], strides = [1, 1]} : vector<32x768xbf16> to vector<32x64xbf16>
    %34 = vector.shape_cast %33 : vector<32x64xbf16> to vector<2x16x64xbf16>
    %35 = vector.extract_strided_slice %32 {offsets = [0, 256], sizes = [32, 64], strides = [1, 1]} : vector<32x768xbf16> to vector<32x64xbf16>
    %36 = vector.shape_cast %35 : vector<32x64xbf16> to vector<2x16x64xbf16>
    %37 = vector.extract_strided_slice %32 {offsets = [0, 512], sizes = [32, 64], strides = [1, 1]} : vector<32x768xbf16> to vector<32x64xbf16>
    %38 = vector.shape_cast %37 : vector<32x64xbf16> to vector<2x16x64xbf16>
    "tpu.trace_start"() <{level = 10 : i32, message = "bqd,bkd->bqk"}> : () -> ()
    %cst_15 = arith.constant dense<0.000000e+00> : vector<2x16x16xf32>
    %39 = tpu.matmul %34, %36, %cst_15 {dimension_numbers = #tpu.dot_dimension_numbers<[2], [2], [1], [1], [0, 0, 0, 1, 1, 1], [0], [0]>} : vector<2x16x64xbf16>, vector<2x16x64xbf16>, vector<2x16x16xf32> -> vector<2x16x16xf32>
    "tpu.trace_stop"() : () -> ()
    %cst_16 = arith.constant dense<0xFF800000> : vector<2x16xf32>
    %40 = vector.multi_reduction <maximumf>, %39, %cst_16 [2] : vector<2x16x16xf32> to vector<2x16xf32>
    %41 = vector.shape_cast %40 : vector<2x16xf32> to vector<2x16x1xf32>
    %42 = vector.broadcast %41 : vector<2x16x1xf32> to vector<2x16x16xf32>
    %43 = arith.subf %39, %42 : vector<2x16x16xf32>
    %44 = math.exp %43 : vector<2x16x16xf32>
    %cst_17 = arith.constant dense<0.000000e+00> : vector<2x16xf32>
    %45 = vector.multi_reduction <add>, %44, %cst_17 [2] : vector<2x16x16xf32> to vector<2x16xf32>
    %46 = vector.shape_cast %45 : vector<2x16xf32> to vector<2x16x1xf32>
    %47 = tpu.reciprocal %46 {approx = true} : vector<2x16x1xf32> -> vector<2x16x1xf32>
    %48 = vector.broadcast %47 : vector<2x16x1xf32> to vector<2x16x16xf32>
    %49 = arith.mulf %44, %48 : vector<2x16x16xf32>
    %50 = arith.truncf %49 : vector<2x16x16xf32> to vector<2x16x16xbf16>
    "tpu.trace_start"() <{level = 10 : i32, message = "bqk,bkd->bqd"}> : () -> ()
    %cst_18 = arith.constant dense<0.000000e+00> : vector<2x16x64xf32>
    %51 = tpu.matmul %50, %38, %cst_18 {dimension_numbers = #tpu.dot_dimension_numbers<[2], [1], [1], [2], [0, 0, 0, 1, 1, 2], [0], [0]>} : vector<2x16x16xbf16>, vector<2x16x64xbf16>, vector<2x16x64xf32> -> vector<2x16x64xf32>
    "tpu.trace_stop"() : () -> ()
    %52 = vector.shape_cast %51 : vector<2x16x64xf32> to vector<32x64xf32>
    %c0_19 = arith.constant 0 : index
    %c0_20 = arith.constant 0 : index
    %53 = vector.load %arg15[%c0_19, %c0_20] : memref<32x256xf32, #tpu.memory_space<vmem>>, vector<32x64xf32>
    tpu.vector_store %arg15[%c0_19, %c0_20], %52 {strides = array<i32>} : memref<32x256xf32, #tpu.memory_space<vmem>>, vector<32x64xf32>,
    %54 = vector.extract_strided_slice %32 {offsets = [0, 64], sizes = [32, 64], strides = [1, 1]} : vector<32x768xbf16> to vector<32x64xbf16>
    %55 = vector.shape_cast %54 : vector<32x64xbf16> to vector<2x16x64xbf16>
    %56 = vector.extract_strided_slice %32 {offsets = [0, 320], sizes = [32, 64], strides = [1, 1]} : vector<32x768xbf16> to vector<32x64xbf16>
    %57 = vector.shape_cast %56 : vector<32x64xbf16> to vector<2x16x64xbf16>
    %58 = vector.extract_strided_slice %32 {offsets = [0, 576], sizes = [32, 64], strides = [1, 1]} : vector<32x768xbf16> to vector<32x64xbf16>
    %59 = vector.shape_cast %58 : vector<32x64xbf16> to vector<2x16x64xbf16>
    "tpu.trace_start"() <{level = 10 : i32, message = "bqd,bkd->bqk"}> : () -> ()
    %cst_21 = arith.constant dense<0.000000e+00> : vector<2x16x16xf32>
    %60 = tpu.matmul %55, %57, %cst_21 {dimension_numbers = #tpu.dot_dimension_numbers<[2], [2], [1], [1], [0, 0, 0, 1, 1, 1], [0], [0]>} : vector<2x16x64xbf16>, vector<2x16x64xbf16>, vector<2x16x16xf32> -> vector<2x16x16xf32>
    "tpu.trace_stop"() : () -> ()
    %cst_22 = arith.constant dense<0xFF800000> : vector<2x16xf32>
    %61 = vector.multi_reduction <maximumf>, %60, %cst_22 [2] : vector<2x16x16xf32> to vector<2x16xf32>
    %62 = vector.shape_cast %61 : vector<2x16xf32> to vector<2x16x1xf32>
    %63 = vector.broadcast %62 : vector<2x16x1xf32> to vector<2x16x16xf32>
    %64 = arith.subf %60, %63 : vector<2x16x16xf32>
    %65 = math.exp %64 : vector<2x16x16xf32>
    %cst_23 = arith.constant dense<0.000000e+00> : vector<2x16xf32>
    %66 = vector.multi_reduction <add>, %65, %cst_23 [2] : vector<2x16x16xf32> to vector<2x16xf32>
    %67 = vector.shape_cast %66 : vector<2x16xf32> to vector<2x16x1xf32>
    %68 = tpu.reciprocal %67 {approx = true} : vector<2x16x1xf32> -> vector<2x16x1xf32>
    %69 = vector.broadcast %68 : vector<2x16x1xf32> to vector<2x16x16xf32>
    %70 = arith.mulf %65, %69 : vector<2x16x16xf32>
    %71 = arith.truncf %70 : vector<2x16x16xf32> to vector<2x16x16xbf16>
    "tpu.trace_start"() <{level = 10 : i32, message = "bqk,bkd->bqd"}> : () -> ()
    %cst_24 = arith.constant dense<0.000000e+00> : vector<2x16x64xf32>
    %72 = tpu.matmul %71, %59, %cst_24 {dimension_numbers = #tpu.dot_dimension_numbers<[2], [1], [1], [2], [0, 0, 0, 1, 1, 2], [0], [0]>} : vector<2x16x16xbf16>, vector<2x16x64xbf16>, vector<2x16x64xf32> -> vector<2x16x64xf32>
    "tpu.trace_stop"() : () -> ()
    %73 = vector.shape_cast %72 : vector<2x16x64xf32> to vector<32x64xf32>
    %c0_25 = arith.constant 0 : index
    %c64 = arith.constant 64 : index
    %74 = vector.load %arg15[%c0_25, %c64] : memref<32x256xf32, #tpu.memory_space<vmem>>, vector<32x64xf32>
    tpu.vector_store %arg15[%c0_25, %c64], %73 {strides = array<i32>} : memref<32x256xf32, #tpu.memory_space<vmem>>, vector<32x64xf32>,
    %75 = vector.extract_strided_slice %32 {offsets = [0, 128], sizes = [32, 64], strides = [1, 1]} : vector<32x768xbf16> to vector<32x64xbf16>
    %76 = vector.shape_cast %75 : vector<32x64xbf16> to vector<2x16x64xbf16>
    %77 = vector.extract_strided_slice %32 {offsets = [0, 384], sizes = [32, 64], strides = [1, 1]} : vector<32x768xbf16> to vector<32x64xbf16>
    %78 = vector.shape_cast %77 : vector<32x64xbf16> to vector<2x16x64xbf16>
    %79 = vector.extract_strided_slice %32 {offsets = [0, 640], sizes = [32, 64], strides = [1, 1]} : vector<32x768xbf16> to vector<32x64xbf16>
    %80 = vector.shape_cast %79 : vector<32x64xbf16> to vector<2x16x64xbf16>
    "tpu.trace_start"() <{level = 10 : i32, message = "bqd,bkd->bqk"}> : () -> ()
    %cst_26 = arith.constant dense<0.000000e+00> : vector<2x16x16xf32>
    %81 = tpu.matmul %76, %78, %cst_26 {dimension_numbers = #tpu.dot_dimension_numbers<[2], [2], [1], [1], [0, 0, 0, 1, 1, 1], [0], [0]>} : vector<2x16x64xbf16>, vector<2x16x64xbf16>, vector<2x16x16xf32> -> vector<2x16x16xf32>
    "tpu.trace_stop"() : () -> ()
    %cst_27 = arith.constant dense<0xFF800000> : vector<2x16xf32>
    %82 = vector.multi_reduction <maximumf>, %81, %cst_27 [2] : vector<2x16x16xf32> to vector<2x16xf32>
    %83 = vector.shape_cast %82 : vector<2x16xf32> to vector<2x16x1xf32>
    %84 = vector.broadcast %83 : vector<2x16x1xf32> to vector<2x16x16xf32>
    %85 = arith.subf %81, %84 : vector<2x16x16xf32>
    %86 = math.exp %85 : vector<2x16x16xf32>
    %cst_28 = arith.constant dense<0.000000e+00> : vector<2x16xf32>
    %87 = vector.multi_reduction <add>, %86, %cst_28 [2] : vector<2x16x16xf32> to vector<2x16xf32>
    %88 = vector.shape_cast %87 : vector<2x16xf32> to vector<2x16x1xf32>
    %89 = tpu.reciprocal %88 {approx = true} : vector<2x16x1xf32> -> vector<2x16x1xf32>
    %90 = vector.broadcast %89 : vector<2x16x1xf32> to vector<2x16x16xf32>
    %91 = arith.mulf %86, %90 : vector<2x16x16xf32>
    %92 = arith.truncf %91 : vector<2x16x16xf32> to vector<2x16x16xbf16>
    "tpu.trace_start"() <{level = 10 : i32, message = "bqk,bkd->bqd"}> : () -> ()
    %cst_29 = arith.constant dense<0.000000e+00> : vector<2x16x64xf32>
    %93 = tpu.matmul %92, %80, %cst_29 {dimension_numbers = #tpu.dot_dimension_numbers<[2], [1], [1], [2], [0, 0, 0, 1, 1, 2], [0], [0]>} : vector<2x16x16xbf16>, vector<2x16x64xbf16>, vector<2x16x64xf32> -> vector<2x16x64xf32>
    "tpu.trace_stop"() : () -> ()
    %94 = vector.shape_cast %93 : vector<2x16x64xf32> to vector<32x64xf32>
    %c0_30 = arith.constant 0 : index
    %c128 = arith.constant 128 : index
    %95 = vector.load %arg15[%c0_30, %c128] : memref<32x256xf32, #tpu.memory_space<vmem>>, vector<32x64xf32>
    tpu.vector_store %arg15[%c0_30, %c128], %94 {strides = array<i32>} : memref<32x256xf32, #tpu.memory_space<vmem>>, vector<32x64xf32>,
    %96 = vector.extract_strided_slice %32 {offsets = [0, 192], sizes = [32, 64], strides = [1, 1]} : vector<32x768xbf16> to vector<32x64xbf16>
    %97 = vector.shape_cast %96 : vector<32x64xbf16> to vector<2x16x64xbf16>
    %98 = vector.extract_strided_slice %32 {offsets = [0, 448], sizes = [32, 64], strides = [1, 1]} : vector<32x768xbf16> to vector<32x64xbf16>
    %99 = vector.shape_cast %98 : vector<32x64xbf16> to vector<2x16x64xbf16>
    %100 = vector.extract_strided_slice %32 {offsets = [0, 704], sizes = [32, 64], strides = [1, 1]} : vector<32x768xbf16> to vector<32x64xbf16>
    %101 = vector.shape_cast %100 : vector<32x64xbf16> to vector<2x16x64xbf16>
    "tpu.trace_start"() <{level = 10 : i32, message = "bqd,bkd->bqk"}> : () -> ()
    %cst_31 = arith.constant dense<0.000000e+00> : vector<2x16x16xf32>
    %102 = tpu.matmul %97, %99, %cst_31 {dimension_numbers = #tpu.dot_dimension_numbers<[2], [2], [1], [1], [0, 0, 0, 1, 1, 1], [0], [0]>} : vector<2x16x64xbf16>, vector<2x16x64xbf16>, vector<2x16x16xf32> -> vector<2x16x16xf32>
    "tpu.trace_stop"() : () -> ()
    %cst_32 = arith.constant dense<0xFF800000> : vector<2x16xf32>
    %103 = vector.multi_reduction <maximumf>, %102, %cst_32 [2] : vector<2x16x16xf32> to vector<2x16xf32>
    %104 = vector.shape_cast %103 : vector<2x16xf32> to vector<2x16x1xf32>
    %105 = vector.broadcast %104 : vector<2x16x1xf32> to vector<2x16x16xf32>
    %106 = arith.subf %102, %105 : vector<2x16x16xf32>
    %107 = math.exp %106 : vector<2x16x16xf32>
    %cst_33 = arith.constant dense<0.000000e+00> : vector<2x16xf32>
    %108 = vector.multi_reduction <add>, %107, %cst_33 [2] : vector<2x16x16xf32> to vector<2x16xf32>
    %109 = vector.shape_cast %108 : vector<2x16xf32> to vector<2x16x1xf32>
    %110 = tpu.reciprocal %109 {approx = true} : vector<2x16x1xf32> -> vector<2x16x1xf32>
    %111 = vector.broadcast %110 : vector<2x16x1xf32> to vector<2x16x16xf32>
    %112 = arith.mulf %107, %111 : vector<2x16x16xf32>
    %113 = arith.truncf %112 : vector<2x16x16xf32> to vector<2x16x16xbf16>
    "tpu.trace_start"() <{level = 10 : i32, message = "bqk,bkd->bqd"}> : () -> ()
    %cst_34 = arith.constant dense<0.000000e+00> : vector<2x16x64xf32>
    %114 = tpu.matmul %113, %101, %cst_34 {dimension_numbers = #tpu.dot_dimension_numbers<[2], [1], [1], [2], [0, 0, 0, 1, 1, 2], [0], [0]>} : vector<2x16x16xbf16>, vector<2x16x64xbf16>, vector<2x16x64xf32> -> vector<2x16x64xf32>
    "tpu.trace_stop"() : () -> ()
    %115 = vector.shape_cast %114 : vector<2x16x64xf32> to vector<32x64xf32>
    %c0_35 = arith.constant 0 : index
    %c192 = arith.constant 192 : index
    %116 = vector.load %arg15[%c0_35, %c192] : memref<32x256xf32, #tpu.memory_space<vmem>>, vector<32x64xf32>
    tpu.vector_store %arg15[%c0_35, %c192], %115 {strides = array<i32>} : memref<32x256xf32, #tpu.memory_space<vmem>>, vector<32x64xf32>,
    %c0_36 = arith.constant 0 : index
    %c0_37 = arith.constant 0 : index
    %117 = vector.load %arg15[%c0_36, %c0_37] : memref<32x256xf32, #tpu.memory_space<vmem>>, vector<32x256xf32>
    %118 = arith.truncf %117 : vector<32x256xf32> to vector<32x256xbf16>
    %c0_38 = arith.constant 0 : index
    %c0_39 = arith.constant 0 : index
    %119 = vector.load %arg6[%c0_38, %c0_39] : memref<256x256xbf16, #tpu.memory_space<vmem>>, vector<256x256xbf16>
    %cst_40 = arith.constant dense<0.000000e+00> : vector<32x256xf32>
    %120 = tpu.matmul %118, %119, %cst_40 {dimension_numbers = #tpu.dot_dimension_numbers<[1], [0], [0], [1], [0, 0, 1, 1], [], []>} : vector<32x256xbf16>, vector<256x256xbf16>, vector<32x256xf32> -> vector<32x256xf32>
    %c0_41 = arith.constant 0 : index
    %c0_42 = arith.constant 0 : index
    %121 = vector.load %arg7[%c0_41, %c0_42] : memref<1x256xf32, #tpu.memory_space<vmem>>, vector<1x256xf32>
    %122 = vector.broadcast %121 : vector<1x256xf32> to vector<32x256xf32>
    %123 = arith.addf %120, %122 : vector<32x256xf32>
    %124 = arith.addf %1, %123 : vector<32x256xf32>
    %c0_43 = arith.constant 0 : index
    %c0_44 = arith.constant 0 : index
    %125 = vector.load %arg8[%c0_43, %c0_44] : memref<1x256xf32, #tpu.memory_space<vmem>>, vector<1x256xf32>
    %c0_45 = arith.constant 0 : index
    %c0_46 = arith.constant 0 : index
    %126 = vector.load %arg9[%c0_45, %c0_46] : memref<1x256xf32, #tpu.memory_space<vmem>>, vector<1x256xf32>
    %cst_47 = arith.constant dense<0.000000e+00> : vector<32xf32>
    %127 = vector.multi_reduction <add>, %124, %cst_47 [1] : vector<32x256xf32> to vector<32xf32>
    %128 = vector.shape_cast %127 : vector<32xf32> to vector<32x1xf32>
    %cst_48 = arith.constant 2.560000e+02 : f32
    %129 = vector.broadcast %cst_48 : f32 to vector<32x1xf32>
    %130 = arith.divf %128, %129 : vector<32x1xf32>
    %131 = vector.broadcast %130 : vector<32x1xf32> to vector<32x256xf32>
    %132 = arith.subf %124, %131 : vector<32x256xf32>
    %133 = arith.mulf %132, %132 : vector<32x256xf32>
    %cst_49 = arith.constant dense<0.000000e+00> : vector<32xf32>
    %134 = vector.multi_reduction <add>, %133, %cst_49 [1] : vector<32x256xf32> to vector<32xf32>
    %135 = vector.shape_cast %134 : vector<32xf32> to vector<32x1xf32>
    %cst_50 = arith.constant 2.560000e+02 : f32
    %136 = vector.broadcast %cst_50 : f32 to vector<32x1xf32>
    %137 = arith.divf %135, %136 : vector<32x1xf32>
    %138 = vector.broadcast %130 : vector<32x1xf32> to vector<32x256xf32>
    %139 = arith.subf %124, %138 : vector<32x256xf32>
    %cst_51 = arith.constant 9.99999974E-6 : f32
    %140 = vector.broadcast %cst_51 : f32 to vector<32x1xf32>
    %141 = arith.addf %137, %140 : vector<32x1xf32>
    %142 = math.rsqrt %141 : vector<32x1xf32>
    %143 = vector.broadcast %142 : vector<32x1xf32> to vector<32x256xf32>
    %144 = arith.mulf %139, %143 : vector<32x256xf32>
    %145 = vector.broadcast %125 : vector<1x256xf32> to vector<32x256xf32>
    %146 = arith.mulf %144, %145 : vector<32x256xf32>
    %147 = vector.broadcast %126 : vector<1x256xf32> to vector<32x256xf32>
    %148 = arith.addf %146, %147 : vector<32x256xf32>
    %149 = arith.truncf %148 : vector<32x256xf32> to vector<32x256xbf16>
    %c0_52 = arith.constant 0 : index
    %c0_53 = arith.constant 0 : index
    %150 = vector.load %arg10[%c0_52, %c0_53] : memref<256x1024xbf16, #tpu.memory_space<vmem>>, vector<256x1024xbf16>
    %cst_54 = arith.constant dense<0.000000e+00> : vector<32x1024xf32>
    %151 = tpu.matmul %149, %150, %cst_54 {dimension_numbers = #tpu.dot_dimension_numbers<[1], [0], [0], [1], [0, 0, 1, 1], [], []>} : vector<32x256xbf16>, vector<256x1024xbf16>, vector<32x1024xf32> -> vector<32x1024xf32>
    %c0_55 = arith.constant 0 : index
    %c0_56 = arith.constant 0 : index
    %152 = vector.load %arg11[%c0_55, %c0_56] : memref<1x1024xf32, #tpu.memory_space<vmem>>, vector<1x1024xf32>
    %153 = vector.broadcast %152 : vector<1x1024xf32> to vector<32x1024xf32>
    %154 = arith.addf %151, %153 : vector<32x1024xf32>
    %cst_57 = arith.constant 1.702000e+00 : f32
    %155 = vector.broadcast %cst_57 : f32 to vector<32x1024xf32>
    %156 = arith.mulf %155, %154 : vector<32x1024xf32>
    %157 = arith.negf %156 : vector<32x1024xf32>
    %158 = math.exp %157 : vector<32x1024xf32>
    %cst_58 = arith.constant 1.000000e+00 : f32
    %159 = vector.broadcast %cst_58 : f32 to vector<32x1024xf32>
    %160 = arith.addf %159, %158 : vector<32x1024xf32>
    %161 = arith.divf %159, %160 : vector<32x1024xf32>
    %162 = arith.mulf %154, %161 : vector<32x1024xf32>
    %163 = arith.truncf %162 : vector<32x1024xf32> to vector<32x1024xbf16>
    %c0_59 = arith.constant 0 : index
    %c0_60 = arith.constant 0 : index
    %164 = vector.load %arg12[%c0_59, %c0_60] : memref<1024x256xbf16, #tpu.memory_space<vmem>>, vector<1024x256xbf16>
    %cst_61 = arith.constant dense<0.000000e+00> : vector<32x256xf32>
    %165 = tpu.matmul %163, %164, %cst_61 {dimension_numbers = #tpu.dot_dimension_numbers<[1], [0], [0], [1], [0, 0, 1, 1], [], []>} : vector<32x1024xbf16>, vector<1024x256xbf16>, vector<32x256xf32> -> vector<32x256xf32>
    %c0_62 = arith.constant 0 : index
    %c0_63 = arith.constant 0 : index
    %166 = vector.load %arg13[%c0_62, %c0_63] : memref<1x256xf32, #tpu.memory_space<vmem>>, vector<1x256xf32>
    %167 = vector.broadcast %166 : vector<1x256xf32> to vector<32x256xf32>
    %168 = arith.addf %165, %167 : vector<32x256xf32>
    %169 = arith.addf %124, %168 : vector<32x256xf32>
    %170 = vector.shape_cast %169 : vector<32x256xf32> to vector<2x16x256xf32>
    %c0_64 = arith.constant 0 : index
    %c0_65 = arith.constant 0 : index
    %c0_66 = arith.constant 0 : index
    %171 = vector.load %arg14[%c0_64, %c0_65, %c0_66] : memref<2x16x256xf32, #tpu.memory_space<vmem>>, vector<2x16x256xf32>
    tpu.vector_store %arg14[%c0_64, %c0_65, %c0_66], %170 {strides = array<i32>} : memref<2x16x256xf32, #tpu.memory_space<vmem>>, vector<2x16x256xf32>,
    return
  }
  func.func @transform_0(%arg0: i32) -> (i32, i32, i32) {
    %c0_i32 = arith.constant 0 : i32
    %c0_i32_0 = arith.constant 0 : i32
    %c0_i32_1 = arith.constant 0 : i32
    return %arg0, %c0_i32, %c0_i32_0 : i32, i32, i32
  }
  func.func @transform_1(%arg0: i32) -> (i32, i32) {
    %c0_i32 = arith.constant 0 : i32
    %c0_i32_0 = arith.constant 0 : i32
    %c0_i32_1 = arith.constant 0 : i32
    return %c0_i32, %c0_i32_0 : i32, i32
  }
  func.func @transform_2(%arg0: i32) -> (i32, i32) {
    %c0_i32 = arith.constant 0 : i32
    %c0_i32_0 = arith.constant 0 : i32
    %c0_i32_1 = arith.constant 0 : i32
    return %c0_i32, %c0_i32_0 : i32, i32
  }
  func.func @transform_3(%arg0: i32) -> (i32, i32) {
    %c0_i32 = arith.constant 0 : i32
    %c0_i32_0 = arith.constant 0 : i32
    %c0_i32_1 = arith.constant 0 : i32
    return %c0_i32, %c0_i32_0 : i32, i32
  }
  func.func @transform_4(%arg0: i32) -> (i32, i32) {
    %c0_i32 = arith.constant 0 : i32
    %c0_i32_0 = arith.constant 0 : i32
    %c0_i32_1 = arith.constant 0 : i32
    return %c0_i32, %c0_i32_0 : i32, i32
  }
  func.func @transform_5(%arg0: i32) -> (i32, i32) {
    %c0_i32 = arith.constant 0 : i32
    %c0_i32_0 = arith.constant 0 : i32
    %c0_i32_1 = arith.constant 0 : i32
    return %c0_i32, %c0_i32_0 : i32, i32
  }
  func.func @transform_6(%arg0: i32) -> (i32, i32) {
    %c0_i32 = arith.constant 0 : i32
    %c0_i32_0 = arith.constant 0 : i32
    %c0_i32_1 = arith.constant 0 : i32
    return %c0_i32, %c0_i32_0 : i32, i32
  }
  func.func @transform_7(%arg0: i32) -> (i32, i32) {
    %c0_i32 = arith.constant 0 : i32
    %c0_i32_0 = arith.constant 0 : i32
    %c0_i32_1 = arith.constant 0 : i32
    return %c0_i32, %c0_i32_0 : i32, i32
  }
  func.func @transform_8(%arg0: i32) -> (i32, i32) {
    %c0_i32 = arith.constant 0 : i32
    %c0_i32_0 = arith.constant 0 : i32
    %c0_i32_1 = arith.constant 0 : i32
    return %c0_i32, %c0_i32_0 : i32, i32
  }
  func.func @transform_9(%arg0: i32) -> (i32, i32) {
    %c0_i32 = arith.constant 0 : i32
    %c0_i32_0 = arith.constant 0 : i32
    %c0_i32_1 = arith.constant 0 : i32
    return %c0_i32, %c0_i32_0 : i32, i32
  }
  func.func @transform_10(%arg0: i32) -> (i32, i32) {
    %c0_i32 = arith.constant 0 : i32
    %c0_i32_0 = arith.constant 0 : i32
    %c0_i32_1 = arith.constant 0 : i32
    return %c0_i32, %c0_i32_0 : i32, i32
  }
  func.func @transform_11(%arg0: i32) -> (i32, i32) {
    %c0_i32 = arith.constant 0 : i32
    %c0_i32_0 = arith.constant 0 : i32
    %c0_i32_1 = arith.constant 0 : i32
    return %c0_i32, %c0_i32_0 : i32, i32
  }
  func.func @transform_12(%arg0: i32) -> (i32, i32) {
    %c0_i32 = arith.constant 0 : i32
    %c0_i32_0 = arith.constant 0 : i32
    %c0_i32_1 = arith.constant 0 : i32
    return %c0_i32, %c0_i32_0 : i32, i32
  }
  func.func @transform_13(%arg0: i32) -> (i32, i32, i32) {
    %c0_i32 = arith.constant 0 : i32
    %c0_i32_0 = arith.constant 0 : i32
    %c0_i32_1 = arith.constant 0 : i32
    return %arg0, %c0_i32, %c0_i32_0 : i32, i32, i32
  }
}

</mosaic_0001>

<llo_original>
// kernel: tpu_custom_call.1
$region0: #{tpu_custom_call.1}
  #allocation0 [shape = 'u32[]', space=smem, size = 0x4, offset = 0x4, fixed_abs, tag = 'smem constant byte address 0x4 - core index']
  #allocation1 [shape = 'u32[144,128]{1,0:T(1,128)}', space=vmem, size = 0x12000, scoped, tag = 'internal scratch']
  #allocation2 [shape = 'f32[32,256]{1,0:T(8,128)}', space=vmem, size = 0x8000, scoped, tag = 'scratch operand']
  %s0 = inlined_call_operand.hbm [shape: f32[4,16,256], index: 0, kind: input, shape index: {}]
  %s1 = inlined_call_operand.hbm [shape: f32[1,256], index: 1, kind: input, shape index: {}]
  %s2 = inlined_call_operand.hbm [shape: f32[1,256], index: 2, kind: input, shape index: {}]
  %s3 = inlined_call_operand.hbm [shape: bf16[256,768], index: 3, kind: input, shape index: {}]
  %s4 = inlined_call_operand.hbm [shape: f32[1,768], index: 4, kind: input, shape index: {}]
  %s5 = inlined_call_operand.hbm [shape: bf16[256,256], index: 5, kind: input, shape index: {}]
  %s6 = inlined_call_operand.hbm [shape: f32[1,256], index: 6, kind: input, shape index: {}]
  %s7 = inlined_call_operand.hbm [shape: f32[1,256], index: 7, kind: input, shape index: {}]
  %s8 = inlined_call_operand.hbm [shape: f32[1,256], index: 8, kind: input, shape index: {}]
  %s9 = inlined_call_operand.hbm [shape: bf16[256,1024], index: 9, kind: input, shape index: {}]
  %s10 = inlined_call_operand.hbm [shape: f32[1,1024], index: 10, kind: input, shape index: {}]
  %s11 = inlined_call_operand.hbm [shape: bf16[1024,256], index: 11, kind: input, shape index: {}]
  %s12 = inlined_call_operand.hbm [shape: f32[1,256], index: 12, kind: input, shape index: {}]
  %s13 = inlined_call_operand.hbm [shape: f32[4,16,256], index: 13, kind: output, shape index: {}]
  %s14 = sld [smem:[#allocation0]]
  $region137: #{tpu_custom_call.1} parent=0
    _
  %s16 = ssub.s32 1, %s14
  %s17 = scalar_select 0, %s16, %s14
  $region1: #{tpu_custom_call.1} parent=0
    #allocation3 [shape = 'u8[65536]{0}', space=vmem, size = 0x10000, scoped, tag = 'input window, operand 0']
    #allocation4 [shape = 's32[2]{0}', space=sflag, size = 0x8, scoped, tag = 'scoped memory for tpu_custom_call.1']
    #allocation5 [shape = 's32[2]{0}', space=sflag, size = 0x8, scoped, tag = 'scoped memory for tpu_custom_call.1']
    #allocation6 [shape = 'u8[1024]{0}', space=vmem, size = 0x400, scoped, tag = 'input window, operand 1, single buffered']
    #allocation7 [shape = 's32[1]{0}', space=sflag, size = 0x4, scoped, tag = 'scoped memory for tpu_custom_call.1']
    #allocation8 [shape = 'u8[1024]{0}', space=vmem, size = 0x400, scoped, tag = 'input window, operand 2, single buffered']
    #allocation9 [shape = 'u8[393216]{0}', space=vmem, size = 0x60000, scoped, tag = 'input window, operand 3, single buffered']
    #allocation10 [shape = 's32[1]{0}', space=sflag, size = 0x4, scoped, tag = 'scoped memory for tpu_custom_call.1']
    #allocation11 [shape = 'u8[3072]{0}', space=vmem, size = 0xc00, scoped, tag = 'input window, operand 4, single buffered']
    #allocation12 [shape = 'u8[131072]{0}', space=vmem, size = 0x20000, scoped, tag = 'input window, operand 5, single buffered']
    #allocation13 [shape = 's32[1]{0}', space=sflag, size = 0x4, scoped, tag = 'scoped memory for tpu_custom_call.1']
    #allocation14 [shape = 'u8[1024]{0}', space=vmem, size = 0x400, scoped, tag = 'input window, operand 6, single buffered']
    #allocation15 [shape = 'u8[1024]{0}', space=vmem, size = 0x400, scoped, tag = 'input window, operand 7, single buffered']
    #allocation16 [shape = 's32[1]{0}', space=sflag, size = 0x4, scoped, tag = 'scoped memory for tpu_custom_call.1']
    #allocation17 [shape = 'u8[1024]{0}', space=vmem, size = 0x400, scoped, tag = 'input window, operand 8, single buffered']
    #allocation18 [shape = 'u8[524288]{0}', space=vmem, size = 0x80000, scoped, tag = 'input window, operand 9, single buffered']
    #allocation19 [shape = 's32[1]{0}', space=sflag, size = 0x4, scoped, tag = 'scoped memory for tpu_custom_call.1']
    #allocation20 [shape = 'u8[4096]{0}', space=vmem, size = 0x1000, scoped, tag = 'input window, operand 10, single buffered']
    #allocation21 [shape = 'u8[524288]{0}', space=vmem, size = 0x80000, scoped, tag = 'input window, operand 11, single buffered']
    #allocation22 [shape = 's32[1]{0}', space=sflag, size = 0x4, scoped, tag = 'scoped memory for tpu_custom_call.1']
    #allocation23 [shape = 'u8[1024]{0}', space=vmem, size = 0x400, scoped, tag = 'input window, operand 12, single buffered']
    #allocation24 [shape = 'u8[65536]{0}', space=vmem, size = 0x10000, scoped, tag = 'output window, operand 0']
    %18 = vsyncpa [#allocation4], 0
    %s19 = scalar_lea.sflag [#allocation4], 1
    %20 = vsyncpa %s19, 0
    %21 = vsyncpa [#allocation7], 0
    %22 = vsyncpa [#allocation10], 0
    %23 = vsyncpa [#allocation13], 0
    %24 = vsyncpa [#allocation16], 0
    %25 = vsyncpa [#allocation19], 0
    %26 = vsyncpa [#allocation22], 0
    %27 = vsyncpa [#allocation5], 0
    %s28 = scalar_lea.sflag [#allocation5], 1
    %29 = vsyncpa %s28, 0
    loop: start=0, step=1, limit=4
    $region2: #{tpu_custom_call.1} parent=1 // loop_pre_header
      _
    $region3: #{tpu_custom_call.1} parent=1 // loop_header
      %s31 = sphi 0, %s35
      %p32 = scmp.ge.s32.totalorder %s31, 4
      %s41 = sphi 0, %s43
      %s44 = sphi 0, %s41
      %s45 = sphi 0, %s44
      %s61 = sphi 0, %s45
      %s65 = sphi 0, %s65
      %s67 = sphi 0, %s65
      %s68 = sphi 0, %s67
      %s82 = sphi 0, %s68
      %s86 = sphi 0, %s86
      %s88 = sphi 0, %s86
      %s89 = sphi 0, %s88
      %s103 = sphi 0, %s89
      %s107 = sphi 0, %s107
      %s109 = sphi 0, %s107
      %s110 = sphi 0, %s109
      %s124 = sphi 0, %s110
      %s128 = sphi 0, %s128
      %s130 = sphi 0, %s128
      %s131 = sphi 0, %s130
      %s145 = sphi 0, %s131
      %s149 = sphi 0, %s149
      %s151 = sphi 0, %s149
      %s152 = sphi 0, %s151
      %s166 = sphi 0, %s152
      %s170 = sphi 0, %s170
      %s172 = sphi 0, %s170
      %s173 = sphi 0, %s172
      %s187 = sphi 0, %s173
      %s191 = sphi 0, %s191
      %s193 = sphi 0, %s191
      %s194 = sphi 0, %s193
      %s208 = sphi 0, %s194
      %s212 = sphi 0, %s212
      %s214 = sphi 0, %s212
      %s215 = sphi 0, %s214
      %s229 = sphi 0, %s215
      %s233 = sphi 0, %s233
      %s235 = sphi 0, %s233
      %s236 = sphi 0, %s235
      %s250 = sphi 0, %s236
      %s254 = sphi 0, %s254
      %s256 = sphi 0, %s254
      %s257 = sphi 0, %s256
      %s271 = sphi 0, %s257
      %s275 = sphi 0, %s275
      %s277 = sphi 0, %s275
      %s278 = sphi 0, %s277
      %s292 = sphi 0, %s278
      %s296 = sphi 0, %s296
      %s298 = sphi 0, %s296
      %s299 = sphi 0, %s298
      %s313 = sphi 0, %s299
      %s319 = sphi 0, %s321
      %s322 = sphi 0, %s319
      %s323 = sphi 0, %s322
      %s339 = sphi 0, %s323
    $region4: #{tpu_custom_call.1} parent=1 // loop_header_branch
      %34 = sbr.rel (%p32) target = $region8
    $region5: #{tpu_custom_call.1} parent=1 // loop_body
      %s36 = ssub.s32 %s31, 1
      %s37 = ssub.s32 %s31, 2
      %s38 = sadd.s32 %s31, 1
      %s39 = ssub.s32 %s31, %s38
      %p40 = scmp.eq.s32.totalorder %s39, 0
      %s42 = sadd.s32 %s41, 1
      %s43 = scalar_select %p40, %s41, %s42
      %p46 = pneg %p40
      %p47 = scmp.eq.s32.totalorder %s31, 1
      %p48 = por %p46, %p47
      %p49 = scmp.ne.s32.totalorder %s41, %s44
      %p50 = scmp.eq.s32.totalorder %s31, 0
      %p51 = por %p49, %p50
      %p52 = scmp.ne.s32.totalorder %s41, %s44
      %p53 = scmp.eq.s32.totalorder %s36, 1
      %p54 = por %p52, %p53
      %p55 = scmp.ne.s32.totalorder %s44, %s45
      %p56 = scmp.eq.s32.totalorder %s36, 0
      %p57 = por %p55, %p56
      %p58 = scmp.ne.s32.totalorder %s44, %s45
      %p59 = scmp.eq.s32.totalorder %s37, 1
      %p60 = por %p58, %p59
      %p62 = scmp.ne.s32.totalorder %s45, %s61
      %p63 = scmp.eq.s32.totalorder %s37, 0
      %p64 = por %p62, %p63
      %s66 = sadd.s32 %s65, 1
      %p69 = scmp.eq.s32.totalorder %s31, 1
      %p70 = scmp.ne.s32.totalorder %s65, %s67
      %p71 = scmp.eq.s32.totalorder %s31, 0
      %p72 = por %p70, %p71
      %p73 = scmp.ne.s32.totalorder %s65, %s67
      %p74 = scmp.eq.s32.totalorder %s36, 1
      %p75 = por %p73, %p74
      %p76 = scmp.ne.s32.totalorder %s67, %s68
      %p77 = scmp.eq.s32.totalorder %s36, 0
      %p78 = por %p76, %p77
      %p79 = scmp.ne.s32.totalorder %s67, %s68
      %p80 = scmp.eq.s32.totalorder %s37, 1
      %p81 = por %p79, %p80
      %p83 = scmp.ne.s32.totalorder %s68, %s82
      %p84 = scmp.eq.s32.totalorder %s37, 0
      %p85 = por %p83, %p84
      %s87 = sadd.s32 %s86, 1
      %p90 = scmp.eq.s32.totalorder %s31, 1
      %p91 = scmp.ne.s32.totalorder %s86, %s88
      %p92 = scmp.eq.s32.totalorder %s31, 0
      %p93 = por %p91, %p92
      %p94 = scmp.ne.s32.totalorder %s86, %s88
      %p95 = scmp.eq.s32.totalorder %s36, 1
      %p96 = por %p94, %p95
      %p97 = scmp.ne.s32.totalorder %s88, %s89
      %p98 = scmp.eq.s32.totalorder %s36, 0
      %p99 = por %p97, %p98
      %p100 = scmp.ne.s32.totalorder %s88, %s89
      %p101 = scmp.eq.s32.totalorder %s37, 1
      %p102 = por %p100, %p101
      %p104 = scmp.ne.s32.totalorder %s89, %s103
      %p105 = scmp.eq.s32.totalorder %s37, 0
      %p106 = por %p104, %p105
      %s108 = sadd.s32 %s107, 1
      %p111 = scmp.eq.s32.totalorder %s31, 1
      %p112 = scmp.ne.s32.totalorder %s107, %s109
      %p113 = scmp.eq.s32.totalorder %s31, 0
      %p114 = por %p112, %p113
      %p115 = scmp.ne.s32.totalorder %s107, %s109
      %p116 = scmp.eq.s32.totalorder %s36, 1
      %p117 = por %p115, %p116
      %p118 = scmp.ne.s32.totalorder %s109, %s110
      %p119 = scmp.eq.s32.totalorder %s36, 0
      %p120 = por %p118, %p119
      %p121 = scmp.ne.s32.totalorder %s109, %s110
      %p122 = scmp.eq.s32.totalorder %s37, 1
      %p123 = por %p121, %p122
      %p125 = scmp.ne.s32.totalorder %s110, %s124
      %p126 = scmp.eq.s32.totalorder %s37, 0
      %p127 = por %p125, %p126
      %s129 = sadd.s32 %s128, 1
      %p132 = scmp.eq.s32.totalorder %s31, 1
      %p133 = scmp.ne.s32.totalorder %s128, %s130
      %p134 = scmp.eq.s32.totalorder %s31, 0
      %p135 = por %p133, %p134
      %p136 = scmp.ne.s32.totalorder %s128, %s130
      %p137 = scmp.eq.s32.totalorder %s36, 1
      %p138 = por %p136, %p137
      %p139 = scmp.ne.s32.totalorder %s130, %s131
      %p140 = scmp.eq.s32.totalorder %s36, 0
      %p141 = por %p139, %p140
      %p142 = scmp.ne.s32.totalorder %s130, %s131
      %p143 = scmp.eq.s32.totalorder %s37, 1
      %p144 = por %p142, %p143
      %p146 = scmp.ne.s32.totalorder %s131, %s145
      %p147 = scmp.eq.s32.totalorder %s37, 0
      %p148 = por %p146, %p147
      %s150 = sadd.s32 %s149, 1
      %p153 = scmp.eq.s32.totalorder %s31, 1
      %p154 = scmp.ne.s32.totalorder %s149, %s151
      %p155 = scmp.eq.s32.totalorder %s31, 0
      %p156 = por %p154, %p155
      %p157 = scmp.ne.s32.totalorder %s149, %s151
      %p158 = scmp.eq.s32.totalorder %s36, 1
      %p159 = por %p157, %p158
      %p160 = scmp.ne.s32.totalorder %s151, %s152
      %p161 = scmp.eq.s32.totalorder %s36, 0
      %p162 = por %p160, %p161
      %p163 = scmp.ne.s32.totalorder %s151, %s152
      %p164 = scmp.eq.s32.totalorder %s37, 1
      %p165 = por %p163, %p164
      %p167 = scmp.ne.s32.totalorder %s152, %s166
      %p168 = scmp.eq.s32.totalorder %s37, 0
      %p169 = por %p167, %p168
      %s171 = sadd.s32 %s170, 1
      %p174 = scmp.eq.s32.totalorder %s31, 1
      %p175 = scmp.ne.s32.totalorder %s170, %s172
      %p176 = scmp.eq.s32.totalorder %s31, 0
      %p177 = por %p175, %p176
      %p178 = scmp.ne.s32.totalorder %s170, %s172
      %p179 = scmp.eq.s32.totalorder %s36, 1
      %p180 = por %p178, %p179
      %p181 = scmp.ne.s32.totalorder %s172, %s173
      %p182 = scmp.eq.s32.totalorder %s36, 0
      %p183 = por %p181, %p182
      %p184 = scmp.ne.s32.totalorder %s172, %s173
      %p185 = scmp.eq.s32.totalorder %s37, 1
      %p186 = por %p184, %p185
      %p188 = scmp.ne.s32.totalorder %s173, %s187
      %p189 = scmp.eq.s32.totalorder %s37, 0
      %p190 = por %p188, %p189
      %s192 = sadd.s32 %s191, 1
      %p195 = scmp.eq.s32.totalorder %s31, 1
      %p196 = scmp.ne.s32.totalorder %s191, %s193
      %p197 = scmp.eq.s32.totalorder %s31, 0
      %p198 = por %p196, %p197
      %p199 = scmp.ne.s32.totalorder %s191, %s193
      %p200 = scmp.eq.s32.totalorder %s36, 1
      %p201 = por %p199, %p200
      %p202 = scmp.ne.s32.totalorder %s193, %s194
      %p203 = scmp.eq.s32.totalorder %s36, 0
      %p204 = por %p202, %p203
      %p205 = scmp.ne.s32.totalorder %s193, %s194
      %p206 = scmp.eq.s32.totalorder %s37, 1
      %p207 = por %p205, %p206
      %p209 = scmp.ne.s32.totalorder %s194, %s208
      %p210 = scmp.eq.s32.totalorder %s37, 0
      %p211 = por %p209, %p210
      %s213 = sadd.s32 %s212, 1
      %p216 = scmp.eq.s32.totalorder %s31, 1
      %p217 = scmp.ne.s32.totalorder %s212, %s214
      %p218 = scmp.eq.s32.totalorder %s31, 0
      %p219 = por %p217, %p218
      %p220 = scmp.ne.s32.totalorder %s212, %s214
      %p221 = scmp.eq.s32.totalorder %s36, 1
      %p222 = por %p220, %p221
      %p223 = scmp.ne.s32.totalorder %s214, %s215
      %p224 = scmp.eq.s32.totalorder %s36, 0
      %p225 = por %p223, %p224
      %p226 = scmp.ne.s32.totalorder %s214, %s215
      %p227 = scmp.eq.s32.totalorder %s37, 1
      %p228 = por %p226, %p227
      %p230 = scmp.ne.s32.totalorder %s215, %s229
      %p231 = scmp.eq.s32.totalorder %s37, 0
      %p232 = por %p230, %p231
      %s234 = sadd.s32 %s233, 1
      %p237 = scmp.eq.s32.totalorder %s31, 1
      %p238 = scmp.ne.s32.totalorder %s233, %s235
      %p239 = scmp.eq.s32.totalorder %s31, 0
      %p240 = por %p238, %p239
      %p241 = scmp.ne.s32.totalorder %s233, %s235
      %p242 = scmp.eq.s32.totalorder %s36, 1
      %p243 = por %p241, %p242
      %p244 = scmp.ne.s32.totalorder %s235, %s236
      %p245 = scmp.eq.s32.totalorder %s36, 0
      %p246 = por %p244, %p245
      %p247 = scmp.ne.s32.totalorder %s235, %s236
      %p248 = scmp.eq.s32.totalorder %s37, 1
      %p249 = por %p247, %p248
      %p251 = scmp.ne.s32.totalorder %s236, %s250
      %p252 = scmp.eq.s32.totalorder %s37, 0
      %p253 = por %p251, %p252
      %s255 = sadd.s32 %s254, 1
      %p258 = scmp.eq.s32.totalorder %s31, 1
      %p259 = scmp.ne.s32.totalorder %s254, %s256
      %p260 = scmp.eq.s32.totalorder %s31, 0
      %p261 = por %p259, %p260
      %p262 = scmp.ne.s32.totalorder %s254, %s256
      %p263 = scmp.eq.s32.totalorder %s36, 1
      %p264 = por %p262, %p263
      %p265 = scmp.ne.s32.totalorder %s256, %s257
      %p266 = scmp.eq.s32.totalorder %s36, 0
      %p267 = por %p265, %p266
      %p268 = scmp.ne.s32.totalorder %s256, %s257
      %p269 = scmp.eq.s32.totalorder %s37, 1
      %p270 = por %p268, %p269
      %p272 = scmp.ne.s32.totalorder %s257, %s271
      %p273 = scmp.eq.s32.totalorder %s37, 0
      %p274 = por %p272, %p273
      %s276 = sadd.s32 %s275, 1
      %p279 = scmp.eq.s32.totalorder %s31, 1
      %p280 = scmp.ne.s32.totalorder %s275, %s277
      %p281 = scmp.eq.s32.totalorder %s31, 0
      %p282 = por %p280, %p281
      %p283 = scmp.ne.s32.totalorder %s275, %s277
      %p284 = scmp.eq.s32.totalorder %s36, 1
      %p285 = por %p283, %p284
      %p286 = scmp.ne.s32.totalorder %s277, %s278
      %p287 = scmp.eq.s32.totalorder %s36, 0
      %p288 = por %p286, %p287
      %p289 = scmp.ne.s32.totalorder %s277, %s278
      %p290 = scmp.eq.s32.totalorder %s37, 1
      %p291 = por %p289, %p290
      %p293 = scmp.ne.s32.totalorder %s278, %s292
      %p294 = scmp.eq.s32.totalorder %s37, 0
      %p295 = por %p293, %p294
      %s297 = sadd.s32 %s296, 1
      %p300 = scmp.eq.s32.totalorder %s31, 1
      %p301 = scmp.ne.s32.totalorder %s296, %s298
      %p302 = scmp.eq.s32.totalorder %s31, 0
      %p303 = por %p301, %p302
      %p304 = scmp.ne.s32.totalorder %s296, %s298
      %p305 = scmp.eq.s32.totalorder %s36, 1
      %p306 = por %p304, %p305
      %p307 = scmp.ne.s32.totalorder %s298, %s299
      %p308 = scmp.eq.s32.totalorder %s36, 0
      %p309 = por %p307, %p308
      %p310 = scmp.ne.s32.totalorder %s298, %s299
      %p311 = scmp.eq.s32.totalorder %s37, 1
      %p312 = por %p310, %p311
      %p314 = scmp.ne.s32.totalorder %s299, %s313
      %p315 = scmp.eq.s32.totalorder %s37, 0
      %p316 = por %p314, %p315
      %s317 = ssub.s32 %s31, %s38
      %p318 = scmp.eq.s32.totalorder %s317, 0
      %s320 = sadd.s32 %s319, 1
      %s321 = scalar_select %p318, %s319, %s320
      %p324 = pneg %p318
      %p325 = scmp.eq.s32.totalorder %s31, 1
      %p326 = por %p324, %p325
      %p327 = scmp.ne.s32.totalorder %s319, %s322
      %p328 = scmp.eq.s32.totalorder %s31, 0
      %p329 = por %p327, %p328
      %p330 = scmp.ne.s32.totalorder %s319, %s322
      %p331 = scmp.eq.s32.totalorder %s36, 1
      %p332 = por %p330, %p331
      %p333 = scmp.ne.s32.totalorder %s322, %s323
      %p334 = scmp.eq.s32.totalorder %s36, 0
      %p335 = por %p333, %p334
      %p336 = scmp.ne.s32.totalorder %s322, %s323
      %p337 = scmp.eq.s32.totalorder %s37, 1
      %p338 = por %p336, %p337
      %p340 = scmp.ne.s32.totalorder %s323, %s339
      %p341 = scmp.eq.s32.totalorder %s37, 0
      %p342 = por %p340, %p341
      %p343 = scmp.le.s32.totalorder 1, %s31
      %p344 = scmp.lt.s32.totalorder %s31, 3
      %p345 = pnand %p343, %p344
      %p346 = pneg %p345
      // Predicated region
      $region9: #{tpu_custom_call.1} parent=5 // pred_check
        _
      $region10: #{tpu_custom_call.1} parent=5 // pred_check_branch
        %348 = sbr.rel (%p345) target = $region12
      $region11: #{tpu_custom_call.1} parent=5 // pred_region
        %s349 = ssub.s32 %s31, 1
        // Predicated region
        $region13: #{tpu_custom_call.1} parent=11 // pred_check
          %p350 = pneg %p78
        $region14: #{tpu_custom_call.1} parent=11 // pred_check_branch
          %352 = sbr.rel (%p350) target = $region16
        $region15: #{tpu_custom_call.1} parent=11 // pred_region
          %s354 = ssub.s32 32, 32
          %355 = vsyncadd [#allocation7], %s354
          %s357 = sshll.u32 [#allocation6], 4
          %s358 = int_to_ptr.vmem [resolvable:$true] %s357
          %360 = dma.hbm_to_vmem [thread:$0]  %s1, 32, %s358, [#allocation7]
        $region16: #{tpu_custom_call.1} parent=11 // pred_fallthru
          _
        // Predicated region
        $region17: #{tpu_custom_call.1} parent=11 // pred_check
          %p361 = pneg %p99
        $region18: #{tpu_custom_call.1} parent=11 // pred_check_branch
          %363 = sbr.rel (%p361) target = $region20
        $region19: #{tpu_custom_call.1} parent=11 // pred_region
          %s365 = ssub.s32 32, 32
          %366 = vsyncadd [#allocation7], %s365
          %s368 = sshll.u32 [#allocation8], 4
          %s369 = int_to_ptr.vmem [resolvable:$true] %s368
          %371 = dma.hbm_to_vmem [thread:$0]  %s2, 32, %s369, [#allocation7]
        $region20: #{tpu_custom_call.1} parent=11 // pred_fallthru
          _
        // Predicated region
        $region21: #{tpu_custom_call.1} parent=11 // pred_check
          %p372 = pneg %p120
        $region22: #{tpu_custom_call.1} parent=11 // pred_check_branch
          %374 = sbr.rel (%p372) target = $region24
        $region23: #{tpu_custom_call.1} parent=11 // pred_region
          %s376 = ssub.s32 12288, 12288
          %377 = vsyncadd [#allocation10], %s376
          %s378 = sshll.u32 [#allocation9], 4
          %s379 = int_to_ptr.vmem [resolvable:$true] %s378
          %384 = dma.hbm_to_vmem [thread:$0]  %s3, 12288, %s379, [#allocation10], 384, 384, 24
        $region24: #{tpu_custom_call.1} parent=11 // pred_fallthru
          _
        // Predicated region
        $region25: #{tpu_custom_call.1} parent=11 // pred_check
          %p385 = pneg %p141
        $region26: #{tpu_custom_call.1} parent=11 // pred_check_branch
          %387 = sbr.rel (%p385) target = $region28
        $region27: #{tpu_custom_call.1} parent=11 // pred_region
          %s389 = ssub.s32 96, 96
          %390 = vsyncadd [#allocation10], %s389
          %s392 = sshll.u32 [#allocation11], 4
          %s393 = int_to_ptr.vmem [resolvable:$true] %s392
          %395 = dma.hbm_to_vmem [thread:$0]  %s4, 96, %s393, [#allocation10]
        $region28: #{tpu_custom_call.1} parent=11 // pred_fallthru
          _
        // Predicated region
        $region29: #{tpu_custom_call.1} parent=11 // pred_check
          %p396 = pneg %p162
        $region30: #{tpu_custom_call.1} parent=11 // pred_check_branch
          %398 = sbr.rel (%p396) target = $region32
        $region31: #{tpu_custom_call.1} parent=11 // pred_region
          %s400 = ssub.s32 4096, 4096
          %401 = vsyncadd [#allocation13], %s400
          %s402 = sshll.u32 [#allocation12], 4
          %s403 = int_to_ptr.vmem [resolvable:$true] %s402
          %408 = dma.hbm_to_vmem [thread:$0]  %s5, 4096, %s403, [#allocation13], 128, 128, 8
        $region32: #{tpu_custom_call.1} parent=11 // pred_fallthru
          _
        // Predicated region
        $region33: #{tpu_custom_call.1} parent=11 // pred_check
          %p409 = pneg %p183
        $region34: #{tpu_custom_call.1} parent=11 // pred_check_branch
          %411 = sbr.rel (%p409) target = $region36
        $region35: #{tpu_custom_call.1} parent=11 // pred_region
          %s413 = ssub.s32 32, 32
          %414 = vsyncadd [#allocation13], %s413
          %s416 = sshll.u32 [#allocation14], 4
          %s417 = int_to_ptr.vmem [resolvable:$true] %s416
          %419 = dma.hbm_to_vmem [thread:$0]  %s6, 32, %s417, [#allocation13]
        $region36: #{tpu_custom_call.1} parent=11 // pred_fallthru
          _
        // Predicated region
        $region37: #{tpu_custom_call.1} parent=11 // pred_check
          %p420 = pneg %p204
        $region38: #{tpu_custom_call.1} parent=11 // pred_check_branch
          %422 = sbr.rel (%p420) target = $region40
        $region39: #{tpu_custom_call.1} parent=11 // pred_region
          %s424 = ssub.s32 32, 32
          %425 = vsyncadd [#allocation16], %s424
          %s427 = sshll.u32 [#allocation15], 4
          %s428 = int_to_ptr.vmem [resolvable:$true] %s427
          %430 = dma.hbm_to_vmem [thread:$0]  %s7, 32, %s428, [#allocation16]
        $region40: #{tpu_custom_call.1} parent=11 // pred_fallthru
          _
        // Predicated region
        $region41: #{tpu_custom_call.1} parent=11 // pred_check
          %p431 = pneg %p225
        $region42: #{tpu_custom_call.1} parent=11 // pred_check_branch
          %433 = sbr.rel (%p431) target = $region44
        $region43: #{tpu_custom_call.1} parent=11 // pred_region
          %s435 = ssub.s32 32, 32
          %436 = vsyncadd [#allocation16], %s435
          %s438 = sshll.u32 [#allocation17], 4
          %s439 = int_to_ptr.vmem [resolvable:$true] %s438
          %441 = dma.hbm_to_vmem [thread:$0]  %s8, 32, %s439, [#allocation16]
        $region44: #{tpu_custom_call.1} parent=11 // pred_fallthru
          _
        // Predicated region
        $region45: #{tpu_custom_call.1} parent=11 // pred_check
          %p442 = pneg %p246
        $region46: #{tpu_custom_call.1} parent=11 // pred_check_branch
          %444 = sbr.rel (%p442) target = $region48
        $region47: #{tpu_custom_call.1} parent=11 // pred_region
          %s446 = ssub.s32 16384, 16384
          %447 = vsyncadd [#allocation19], %s446
          %s448 = sshll.u32 [#allocation18], 4
          %s449 = int_to_ptr.vmem [resolvable:$true] %s448
          %454 = dma.hbm_to_vmem [thread:$0]  %s9, 16384, %s449, [#allocation19], 512, 512, 32
        $region48: #{tpu_custom_call.1} parent=11 // pred_fallthru
          _
        // Predicated region
        $region49: #{tpu_custom_call.1} parent=11 // pred_check
          %p455 = pneg %p267
        $region50: #{tpu_custom_call.1} parent=11 // pred_check_branch
          %457 = sbr.rel (%p455) target = $region52
        $region51: #{tpu_custom_call.1} parent=11 // pred_region
          %s459 = ssub.s32 128, 128
          %460 = vsyncadd [#allocation19], %s459
          %s462 = sshll.u32 [#allocation20], 4
          %s463 = int_to_ptr.vmem [resolvable:$true] %s462
          %465 = dma.hbm_to_vmem [thread:$0]  %s10, 128, %s463, [#allocation19]
        $region52: #{tpu_custom_call.1} parent=11 // pred_fallthru
          _
        // Predicated region
        $region53: #{tpu_custom_call.1} parent=11 // pred_check
          %p466 = pneg %p288
        $region54: #{tpu_custom_call.1} parent=11 // pred_check_branch
          %468 = sbr.rel (%p466) target = $region56
        $region55: #{tpu_custom_call.1} parent=11 // pred_region
          %s470 = ssub.s32 16384, 16384
          %471 = vsyncadd [#allocation22], %s470
          %s472 = sshll.u32 [#allocation21], 4
          %s473 = int_to_ptr.vmem [resolvable:$true] %s472
          %478 = dma.hbm_to_vmem [thread:$0]  %s11, 16384, %s473, [#allocation22], 128, 128, 8
        $region56: #{tpu_custom_call.1} parent=11 // pred_fallthru
          _
        // Predicated region
        $region57: #{tpu_custom_call.1} parent=11 // pred_check
          %p479 = pneg %p309
        $region58: #{tpu_custom_call.1} parent=11 // pred_check_branch
          %481 = sbr.rel (%p479) target = $region60
        $region59: #{tpu_custom_call.1} parent=11 // pred_region
          %s483 = ssub.s32 32, 32
          %484 = vsyncadd [#allocation22], %s483
          %s486 = sshll.u32 [#allocation23], 4
          %s487 = int_to_ptr.vmem [resolvable:$true] %s486
          %489 = dma.hbm_to_vmem [thread:$0]  %s12, 32, %s487, [#allocation22]
        $region60: #{tpu_custom_call.1} parent=11 // pred_fallthru
          _
      $region12: #{tpu_custom_call.1} parent=5 // pred_fallthru
        _
      %p490 = scmp.lt.s32.totalorder %s31, 2
      // Predicated region
      $region61: #{tpu_custom_call.1} parent=5 // pred_check
        %p491 = pneg %p490
      $region62: #{tpu_custom_call.1} parent=5 // pred_check_branch
        %493 = sbr.rel (%p491) target = $region64
      $region63: #{tpu_custom_call.1} parent=5 // pred_region
        // Predicated region
        $region65: #{tpu_custom_call.1} parent=63 // pred_check
          %p494 = pneg %p51
        $region66: #{tpu_custom_call.1} parent=63 // pred_check_branch
          %496 = sbr.rel (%p494) target = $region68
        $region67: #{tpu_custom_call.1} parent=63 // pred_region
          %s497 = sand.u32 %s41, 1
          %s498 = scalar_lea.sflag [#allocation4], %s497
          %s499 = sand.u32 %s41, 1
          %s500 = smul.addr %s499, 64
          %s501 = scalar_lea.vmem [#allocation3], %s500
          %s502 = smul.u32 2, %s31
          %s504 = ssub.s32 1024, 1024
          %505 = vsyncadd %s498, %s504
          %s506 = smul.addr %s502, 4
          %s507 = smul.addr %s506, 128
          %s508 = scalar_lea.hbm %s0, %s507
          %s509 = sshll.u32 %s501, 4
          %s510 = int_to_ptr.vmem [resolvable:$true] %s509
          %515 = dma.hbm_to_vmem [thread:$0]  %s508, 1024, %s510, %s498, 256, 256, 16
        $region68: #{tpu_custom_call.1} parent=63 // pred_fallthru
          _
      $region64: #{tpu_custom_call.1} parent=5 // pred_fallthru
        _
      %p516 = scmp.le.s32.totalorder 1, %s31
      %p517 = scmp.lt.s32.totalorder %s31, 3
      %p518 = pnand %p516, %p517
      %p519 = pneg %p518
      // Predicated region
      $region69: #{tpu_custom_call.1} parent=5 // pred_check
        _
      $region70: #{tpu_custom_call.1} parent=5 // pred_check_branch
        %521 = sbr.rel (%p518) target = $region72
      $region71: #{tpu_custom_call.1} parent=5 // pred_region
        %s522 = ssub.s32 %s31, 1
        %s523 = sand.u32 %s44, 1
        %s524 = scalar_lea.sflag [#allocation4], %s523
        %s525 = sand.u32 %s44, 1
        %s526 = smul.addr %s525, 64
        %s527 = scalar_lea.vmem [#allocation3], %s526
        // Predicated region
        $region73: #{tpu_custom_call.1} parent=71 // pred_check
          %p528 = pneg %p57
        $region74: #{tpu_custom_call.1} parent=71 // pred_check_branch
          %530 = sbr.rel (%p528) target = $region76
        $region75: #{tpu_custom_call.1} parent=71 // pred_region
          %531 = dma.done %s524, 1024
        $region76: #{tpu_custom_call.1} parent=71 // pred_fallthru
          _
        // Predicated region
        $region77: #{tpu_custom_call.1} parent=71 // pred_check
          %p532 = pneg %p78
        $region78: #{tpu_custom_call.1} parent=71 // pred_check_branch
          %534 = sbr.rel (%p532) target = $region80
        $region79: #{tpu_custom_call.1} parent=71 // pred_region
          %535 = dma.done [#allocation7], 32
        $region80: #{tpu_custom_call.1} parent=71 // pred_fallthru
          _
        // Predicated region
        $region81: #{tpu_custom_call.1} parent=71 // pred_check
          %p536 = pneg %p99
        $region82: #{tpu_custom_call.1} parent=71 // pred_check_branch
          %538 = sbr.rel (%p536) target = $region84
        $region83: #{tpu_custom_call.1} parent=71 // pred_region
          %539 = dma.done [#allocation7], 32
        $region84: #{tpu_custom_call.1} parent=71 // pred_fallthru
          _
        // Predicated region
        $region85: #{tpu_custom_call.1} parent=71 // pred_check
          %p540 = pneg %p120
        $region86: #{tpu_custom_call.1} parent=71 // pred_check_branch
          %542 = sbr.rel (%p540) target = $region88
        $region87: #{tpu_custom_call.1} parent=71 // pred_region
          %543 = dma.done [#allocation10], 12288
        $region88: #{tpu_custom_call.1} parent=71 // pred_fallthru
          _
        // Predicated region
        $region89: #{tpu_custom_call.1} parent=71 // pred_check
          %p544 = pneg %p141
        $region90: #{tpu_custom_call.1} parent=71 // pred_check_branch
          %546 = sbr.rel (%p544) target = $region92
        $region91: #{tpu_custom_call.1} parent=71 // pred_region
          %547 = dma.done [#allocation10], 96
        $region92: #{tpu_custom_call.1} parent=71 // pred_fallthru
          _
        // Predicated region
        $region93: #{tpu_custom_call.1} parent=71 // pred_check
          %p548 = pneg %p162
        $region94: #{tpu_custom_call.1} parent=71 // pred_check_branch
          %550 = sbr.rel (%p548) target = $region96
        $region95: #{tpu_custom_call.1} parent=71 // pred_region
          %551 = dma.done [#allocation13], 4096
        $region96: #{tpu_custom_call.1} parent=71 // pred_fallthru
          _
        // Predicated region
        $region97: #{tpu_custom_call.1} parent=71 // pred_check
          %p552 = pneg %p183
        $region98: #{tpu_custom_call.1} parent=71 // pred_check_branch
          %554 = sbr.rel (%p552) target = $region100
        $region99: #{tpu_custom_call.1} parent=71 // pred_region
          %555 = dma.done [#allocation13], 32
        $region100: #{tpu_custom_call.1} parent=71 // pred_fallthru
          _
        // Predicated region
        $region101: #{tpu_custom_call.1} parent=71 // pred_check
          %p556 = pneg %p204
        $region102: #{tpu_custom_call.1} parent=71 // pred_check_branch
          %558 = sbr.rel (%p556) target = $region104
        $region103: #{tpu_custom_call.1} parent=71 // pred_region
          %559 = dma.done [#allocation16], 32
        $region104: #{tpu_custom_call.1} parent=71 // pred_fallthru
          _
        // Predicated region
        $region105: #{tpu_custom_call.1} parent=71 // pred_check
          %p560 = pneg %p225
        $region106: #{tpu_custom_call.1} parent=71 // pred_check_branch
          %562 = sbr.rel (%p560) target = $region108
        $region107: #{tpu_custom_call.1} parent=71 // pred_region
          %563 = dma.done [#allocation16], 32
        $region108: #{tpu_custom_call.1} parent=71 // pred_fallthru
          _
        // Predicated region
        $region109: #{tpu_custom_call.1} parent=71 // pred_check
          %p564 = pneg %p246
        $region110: #{tpu_custom_call.1} parent=71 // pred_check_branch
          %566 = sbr.rel (%p564) target = $region112
        $region111: #{tpu_custom_call.1} parent=71 // pred_region
          %567 = dma.done [#allocation19], 16384
        $region112: #{tpu_custom_call.1} parent=71 // pred_fallthru
          _
        // Predicated region
        $region113: #{tpu_custom_call.1} parent=71 // pred_check
          %p568 = pneg %p267
        $region114: #{tpu_custom_call.1} parent=71 // pred_check_branch
          %570 = sbr.rel (%p568) target = $region116
        $region115: #{tpu_custom_call.1} parent=71 // pred_region
          %571 = dma.done [#allocation19], 128
        $region116: #{tpu_custom_call.1} parent=71 // pred_fallthru
          _
        // Predicated region
        $region117: #{tpu_custom_call.1} parent=71 // pred_check
          %p572 = pneg %p288
        $region118: #{tpu_custom_call.1} parent=71 // pred_check_branch
          %574 = sbr.rel (%p572) target = $region120
        $region119: #{tpu_custom_call.1} parent=71 // pred_region
          %575 = dma.done [#allocation22], 16384
        $region120: #{tpu_custom_call.1} parent=71 // pred_fallthru
          _
        // Predicated region
        $region121: #{tpu_custom_call.1} parent=71 // pred_check
          %p576 = pneg %p309
        $region122: #{tpu_custom_call.1} parent=71 // pred_check_branch
          %578 = sbr.rel (%p576) target = $region124
        $region123: #{tpu_custom_call.1} parent=71 // pred_region
          %579 = dma.done [#allocation22], 32
        $region124: #{tpu_custom_call.1} parent=71 // pred_fallthru
          _
        %s580 = sand.u32 %s44, 1
        %s581 = scalar_lea.sflag [#allocation4], %s580
        %s582 = sand.u32 %s44, 1
        %s583 = smul.addr %s582, 64
        %s584 = scalar_lea.vmem [#allocation3], %s583
        %p585 = pneg %p57
        %p586 = pneg %p54
        %p587 = pneg %p78
        %p588 = pneg %p75
        %p589 = pneg %p99
        %p590 = pneg %p96
        %p591 = pneg %p120
        %p592 = pneg %p117
        %p593 = pneg %p141
        %p594 = pneg %p138
        %p595 = pneg %p162
        %p596 = pneg %p159
        %p597 = pneg %p183
        %p598 = pneg %p180
        %p599 = pneg %p204
        %p600 = pneg %p201
        %p601 = pneg %p225
        %p602 = pneg %p222
        %p603 = pneg %p246
        %p604 = pneg %p243
        %p605 = pneg %p267
        %p606 = pneg %p264
        %p607 = pneg %p288
        %p608 = pneg %p285
        %p609 = pneg %p309
        %p610 = pneg %p306
        %p611 = pneg %p335
        %p612 = pneg %p332
        %s613 = sand.u32 %s322, 1
        %s614 = scalar_lea.sflag [#allocation5], %s613
        %s615 = sand.u32 %s322, 1
        %s616 = smul.addr %s615, 64
        %s617 = scalar_lea.vmem [#allocation24], %s616
        %s618 = smul.u32 2, %s36
        %s619 = smul.u32 2, %s36
        %v621 = vld [vmem:[%s527] sm:$0xff]
        %v622 = vld [vmem:[%s527 + $0x8] sm:$0xff]
        %v623 = vld [vmem:[%s527 + $0x10] sm:$0xff]
        %v624 = vld [vmem:[%s527 + $0x18] sm:$0xff]
        %v625 = vld [vmem:[%s527 + $0x20] sm:$0xff]
        %v626 = vld [vmem:[%s527 + $0x28] sm:$0xff]
        %v627 = vld [vmem:[%s527 + $0x30] sm:$0xff]
        %v628 = vld [vmem:[%s527 + $0x38] sm:$0xff]
        %v629 = vld [vmem:[#allocation6] sm:$0x3]
        %v630 = vld [vmem:[#allocation8] sm:$0x3]
        %v631 = vadd.f32 %v621, %v622
        %632 = vadd.xlane.f32.xlu0 %v631
        %v633 = vpop.xlane.xlu0 %632
        %v634 = vadd.f32 %v623, %v624
        %635 = vadd.xlane.f32.xlu0 %v634
        %v636 = vpop.xlane.xlu0 %635
        %v637 = vadd.f32 %v625, %v626
        %638 = vadd.xlane.f32.xlu0 %v637
        %v639 = vpop.xlane.xlu0 %638
        %v640 = vadd.f32 %v627, %v628
        %641 = vadd.xlane.f32.xlu0 %v640
        %v642 = vpop.xlane.xlu0 %641
        %v643 = vrcp.pop 256.0
        %v644 = vmul.f32 %v633, %v643
        %v645 = vmul.f32 %v636, %v643
        %v646 = vmul.f32 %v639, %v643
        %v647 = vmul.f32 %v642, %v643
        %v648 = vsub.f32 %v621, %v644
        %v649 = vsub.f32 %v622, %v644
        %v650 = vsub.f32 %v623, %v645
        %v651 = vsub.f32 %v624, %v645
        %v652 = vsub.f32 %v625, %v646
        %v653 = vsub.f32 %v626, %v646
        %v654 = vsub.f32 %v627, %v647
        %v655 = vsub.f32 %v628, %v647
        %v656 = vmul.f32 %v648, %v648
        %v657 = vmul.f32 %v649, %v649
        %v658 = vmul.f32 %v650, %v650
        %v659 = vmul.f32 %v651, %v651
        %v660 = vmul.f32 %v652, %v652
        %v661 = vmul.f32 %v653, %v653
        %v662 = vmul.f32 %v654, %v654
        %v663 = vmul.f32 %v655, %v655
        %v664 = vadd.f32 %v656, %v657
        %665 = vadd.xlane.f32.xlu0 %v664
        %v666 = vpop.xlane.xlu0 %665
        %v667 = vadd.f32 %v658, %v659
        %668 = vadd.xlane.f32.xlu0 %v667
        %v669 = vpop.xlane.xlu0 %668
        %v670 = vadd.f32 %v660, %v661
        %671 = vadd.xlane.f32.xlu0 %v670
        %v672 = vpop.xlane.xlu0 %671
        %v673 = vadd.f32 %v662, %v663
        %674 = vadd.xlane.f32.xlu0 %v673
        %v675 = vpop.xlane.xlu0 %674
        %v676 = vmul.f32 %v666, %v643
        %v677 = vmul.f32 %v669, %v643
        %v678 = vmul.f32 %v672, %v643
        %v679 = vmul.f32 %v675, %v643
        %v680 = vadd.f32 %v676, 1e-05
        %v681 = vadd.f32 %v677, 1e-05
        %v682 = vadd.f32 %v678, 1e-05
        %v683 = vadd.f32 %v679, 1e-05
        %v684 = vrsqrt.pop %v680
        %v685 = vrsqrt.pop %v681
        %v686 = vrsqrt.pop %v682
        %v687 = vrsqrt.pop %v683
        %v688 = vmul.f32 %v648, %v684
        %v689 = vmul.f32 %v649, %v684
        %v690 = vmul.f32 %v650, %v685
        %v691 = vmul.f32 %v651, %v685
        %v692 = vmul.f32 %v652, %v686
        %v693 = vmul.f32 %v653, %v686
        %v694 = vmul.f32 %v654, %v687
        %v695 = vmul.f32 %v655, %v687
        %v697 = vlaneseq
        %v698 = vshrl.u32 %v697, 7
        %v699 = vsub.s32 0, %v698
        %v700 = vrot.slane %v629, %v699
        %v701 = vlaneseq
        %v702 = vshrl.u32 %v701, 7
        %v703 = vsub.s32 1, %v702
        %v704 = vrot.slane %v629, %v703
        %v707 = vmul.f32 %v688, %v700
        %v708 = vmul.f32 %v689, %v704
        %v709 = vmul.f32 %v690, %v700
        %v710 = vmul.f32 %v691, %v704
        %v711 = vmul.f32 %v692, %v700
        %v712 = vmul.f32 %v693, %v704
        %v713 = vmul.f32 %v694, %v700
        %v714 = vmul.f32 %v695, %v704
        %v716 = vlaneseq
        %v717 = vshrl.u32 %v716, 7
        %v718 = vsub.s32 0, %v717
        %v719 = vrot.slane %v630, %v718
        %v720 = vlaneseq
        %v721 = vshrl.u32 %v720, 7
        %v722 = vsub.s32 1, %v721
        %v723 = vrot.slane %v630, %v722
        %v726 = vadd.f32 %v707, %v719
        %v727 = vadd.f32 %v708, %v723
        %v728 = vadd.f32 %v709, %v719
        %v729 = vadd.f32 %v710, %v723
        %v730 = vadd.f32 %v711, %v719
        %v731 = vadd.f32 %v712, %v723
        %v732 = vadd.f32 %v713, %v719
        %v733 = vadd.f32 %v714, %v723
        %v734 = vpack.c.bf16 %v728, %v726
        %v735 = vpack.c.bf16 %v729, %v727
        %v736 = vpack.c.bf16 %v732, %v730
        %v737 = vpack.c.bf16 %v733, %v731
        %v738 = vld [vmem:[#allocation9] sm:$0xff]
        %v739 = vld [vmem:[#allocation9 + $0x8] sm:$0xff]
        %v740 = vld [vmem:[#allocation9 + $0x10] sm:$0xff]
        %v741 = vld [vmem:[#allocation9 + $0x18] sm:$0xff]
        %v742 = vld [vmem:[#allocation9 + $0x20] sm:$0xff]
        %v743 = vld [vmem:[#allocation9 + $0x28] sm:$0xff]
        %v744 = vld [vmem:[#allocation9 + $0x30] sm:$0xff]
        %v745 = vld [vmem:[#allocation9 + $0x38] sm:$0xff]
        %v746 = vld [vmem:[#allocation9 + $0x40] sm:$0xff]
        %v747 = vld [vmem:[#allocation9 + $0x48] sm:$0xff]
        %v748 = vld [vmem:[#allocation9 + $0x50] sm:$0xff]
        %v749 = vld [vmem:[#allocation9 + $0x58] sm:$0xff]
        %v750 = vld [vmem:[#allocation9 + $0x60] sm:$0xff]
        %v751 = vld [vmem:[#allocation9 + $0x68] sm:$0xff]
        %v752 = vld [vmem:[#allocation9 + $0x70] sm:$0xff]
        %v753 = vld [vmem:[#allocation9 + $0x78] sm:$0xff]
        %v754 = vld [vmem:[#allocation9 + $0x80] sm:$0xff]
        %v755 = vld [vmem:[#allocation9 + $0x88] sm:$0xff]
        %v756 = vld [vmem:[#allocation9 + $0x90] sm:$0xff]
        %v757 = vld [vmem:[#allocation9 + $0x98] sm:$0xff]
        %v758 = vld [vmem:[#allocation9 + $0xa0] sm:$0xff]
        %v759 = vld [vmem:[#allocation9 + $0xa8] sm:$0xff]
        %v760 = vld [vmem:[#allocation9 + $0xb0] sm:$0xff]
        %v761 = vld [vmem:[#allocation9 + $0xb8] sm:$0xff]
        %v762 = vld [vmem:[#allocation9 + $0xc0] sm:$0xff]
        %v763 = vld [vmem:[#allocation9 + $0xc8] sm:$0xff]
        %v764 = vld [vmem:[#allocation9 + $0xd0] sm:$0xff]
        %v765 = vld [vmem:[#allocation9 + $0xd8] sm:$0xff]
        %v766 = vld [vmem:[#allocation9 + $0xe0] sm:$0xff]
        %v767 = vld [vmem:[#allocation9 + $0xe8] sm:$0xff]
        %v768 = vld [vmem:[#allocation9 + $0xf0] sm:$0xff]
        %v769 = vld [vmem:[#allocation9 + $0xf8] sm:$0xff]
        %v770 = vld [vmem:[#allocation9 + $0x100] sm:$0xff]
        %v771 = vld [vmem:[#allocation9 + $0x108] sm:$0xff]
        %v772 = vld [vmem:[#allocation9 + $0x110] sm:$0xff]
        %v773 = vld [vmem:[#allocation9 + $0x118] sm:$0xff]
        %v774 = vld [vmem:[#allocation9 + $0x120] sm:$0xff]
        %v775 = vld [vmem:[#allocation9 + $0x128] sm:$0xff]
        %v776 = vld [vmem:[#allocation9 + $0x130] sm:$0xff]
        %v777 = vld [vmem:[#allocation9 + $0x138] sm:$0xff]
        %v778 = vld [vmem:[#allocation9 + $0x140] sm:$0xff]
        %v779 = vld [vmem:[#allocation9 + $0x148] sm:$0xff]
        %v780 = vld [vmem:[#allocation9 + $0x150] sm:$0xff]
        %v781 = vld [vmem:[#allocation9 + $0x158] sm:$0xff]
        %v782 = vld [vmem:[#allocation9 + $0x160] sm:$0xff]
        %v783 = vld [vmem:[#allocation9 + $0x168] sm:$0xff]
        %v784 = vld [vmem:[#allocation9 + $0x170] sm:$0xff]
        %v785 = vld [vmem:[#allocation9 + $0x178] sm:$0xff]
        %v786 = vld [vmem:[#allocation9 + $0x180] sm:$0xff]
        %v787 = vld [vmem:[#allocation9 + $0x188] sm:$0xff]
        %v788 = vld [vmem:[#allocation9 + $0x190] sm:$0xff]
        %v789 = vld [vmem:[#allocation9 + $0x198] sm:$0xff]
        %v790 = vld [vmem:[#allocation9 + $0x1a0] sm:$0xff]
        %v791 = vld [vmem:[#allocation9 + $0x1a8] sm:$0xff]
        %v792 = vld [vmem:[#allocation9 + $0x1b0] sm:$0xff]
        %v793 = vld [vmem:[#allocation9 + $0x1b8] sm:$0xff]
        %v794 = vld [vmem:[#allocation9 + $0x1c0] sm:$0xff]
        %v795 = vld [vmem:[#allocation9 + $0x1c8] sm:$0xff]
        %v796 = vld [vmem:[#allocation9 + $0x1d0] sm:$0xff]
        %v797 = vld [vmem:[#allocation9 + $0x1d8] sm:$0xff]
        %v798 = vld [vmem:[#allocation9 + $0x1e0] sm:$0xff]
        %v799 = vld [vmem:[#allocation9 + $0x1e8] sm:$0xff]
        %v800 = vld [vmem:[#allocation9 + $0x1f0] sm:$0xff]
        %v801 = vld [vmem:[#allocation9 + $0x1f8] sm:$0xff]
        %v802 = vld [vmem:[#allocation9 + $0x200] sm:$0xff]
        %v803 = vld [vmem:[#allocation9 + $0x208] sm:$0xff]
        %v804 = vld [vmem:[#allocation9 + $0x210] sm:$0xff]
        %v805 = vld [vmem:[#allocation9 + $0x218] sm:$0xff]
        %v806 = vld [vmem:[#allocation9 + $0x220] sm:$0xff]
        %v807 = vld [vmem:[#allocation9 + $0x228] sm:$0xff]
        %v808 = vld [vmem:[#allocation9 + $0x230] sm:$0xff]
        %v809 = vld [vmem:[#allocation9 + $0x238] sm:$0xff]
        %v810 = vld [vmem:[#allocation9 + $0x240] sm:$0xff]
        %v811 = vld [vmem:[#allocation9 + $0x248] sm:$0xff]
        %v812 = vld [vmem:[#allocation9 + $0x250] sm:$0xff]
        %v813 = vld [vmem:[#allocation9 + $0x258] sm:$0xff]
        %v814 = vld [vmem:[#allocation9 + $0x260] sm:$0xff]
        %v815 = vld [vmem:[#allocation9 + $0x268] sm:$0xff]
        %v816 = vld [vmem:[#allocation9 + $0x270] sm:$0xff]
        %v817 = vld [vmem:[#allocation9 + $0x278] sm:$0xff]
        %v818 = vld [vmem:[#allocation9 + $0x280] sm:$0xff]
        %v819 = vld [vmem:[#allocation9 + $0x288] sm:$0xff]
        %v820 = vld [vmem:[#allocation9 + $0x290] sm:$0xff]
        %v821 = vld [vmem:[#allocation9 + $0x298] sm:$0xff]
        %v822 = vld [vmem:[#allocation9 + $0x2a0] sm:$0xff]
        %v823 = vld [vmem:[#allocation9 + $0x2a8] sm:$0xff]
        %v824 = vld [vmem:[#allocation9 + $0x2b0] sm:$0xff]
        %v825 = vld [vmem:[#allocation9 + $0x2b8] sm:$0xff]
        %v826 = vld [vmem:[#allocation9 + $0x2c0] sm:$0xff]
        %v827 = vld [vmem:[#allocation9 + $0x2c8] sm:$0xff]
        %v828 = vld [vmem:[#allocation9 + $0x2d0] sm:$0xff]
        %v829 = vld [vmem:[#allocation9 + $0x2d8] sm:$0xff]
        %v830 = vld [vmem:[#allocation9 + $0x2e0] sm:$0xff]
        %v831 = vld [vmem:[#allocation9 + $0x2e8] sm:$0xff]
        %v832 = vld [vmem:[#allocation9 + $0x2f0] sm:$0xff]
        %v833 = vld [vmem:[#allocation9 + $0x2f8] sm:$0xff]
        %v834 = vld [vmem:[#allocation11] sm:$0x3f]
        %v836 = vlaneseq
        %v837 = vshrl.u32 %v836, 7
        %v838 = vsub.s32 0, %v837
        %v839 = vrot.slane %v834, %v838
        %v840 = vlaneseq
        %v841 = vshrl.u32 %v840, 7
        %v842 = vsub.s32 1, %v841
        %v843 = vrot.slane %v834, %v842
        %v844 = vlaneseq
        %v845 = vshrl.u32 %v844, 7
        %v846 = vsub.s32 2, %v845
        %v847 = vrot.slane %v834, %v846
        %v848 = vlaneseq
        %v849 = vshrl.u32 %v848, 7
        %v850 = vsub.s32 3, %v849
        %v851 = vrot.slane %v834, %v850
        %v852 = vlaneseq
        %v853 = vshrl.u32 %v852, 7
        %v854 = vsub.s32 4, %v853
        %v855 = vrot.slane %v834, %v854
        %v856 = vlaneseq
        %v857 = vshrl.u32 %v856, 7
        %v858 = vsub.s32 5, %v857
        %v859 = vrot.slane %v834, %v858
        %v962 = vunpack.c.l.b16 %v738
        %v963 = vunpack.c.h.b16 %v738
        %v964 = vunpack.c.l.b16 %v739
        %v965 = vunpack.c.h.b16 %v739
        %v966 = vunpack.c.l.b16 %v740
        %v967 = vunpack.c.h.b16 %v740
        %v968 = vunpack.c.l.b16 %v741
        %v969 = vunpack.c.h.b16 %v741
        %v970 = vunpack.c.l.b16 %v742
        %v971 = vunpack.c.h.b16 %v742
        %v972 = vunpack.c.l.b16 %v743
        %v973 = vunpack.c.h.b16 %v743
        %v974 = vunpack.c.l.b16 %v744
        %v975 = vunpack.c.h.b16 %v744
        %v976 = vunpack.c.l.b16 %v745
        %v977 = vunpack.c.h.b16 %v745
        %v978 = vunpack.c.l.b16 %v746
        %v979 = vunpack.c.h.b16 %v746
        %v980 = vunpack.c.l.b16 %v747
        %v981 = vunpack.c.h.b16 %v747
        %v982 = vunpack.c.l.b16 %v748
        %v983 = vunpack.c.h.b16 %v748
        %v984 = vunpack.c.l.b16 %v749
        %v985 = vunpack.c.h.b16 %v749
        %v986 = vunpack.c.l.b16 %v750
        %v987 = vunpack.c.h.b16 %v750
        %v988 = vunpack.c.l.b16 %v751
        %v989 = vunpack.c.h.b16 %v751
        %v990 = vunpack.c.l.b16 %v752
        %v991 = vunpack.c.h.b16 %v752
        %v992 = vunpack.c.l.b16 %v753
        %v993 = vunpack.c.h.b16 %v753
        %v994 = vunpack.c.l.b16 %v754
        %v995 = vunpack.c.h.b16 %v754
        %v996 = vunpack.c.l.b16 %v755
        %v997 = vunpack.c.h.b16 %v755
        %v998 = vunpack.c.l.b16 %v756
        %v999 = vunpack.c.h.b16 %v756
        %v1000 = vunpack.c.l.b16 %v757
        %v1001 = vunpack.c.h.b16 %v757
        %v1002 = vunpack.c.l.b16 %v758
        %v1003 = vunpack.c.h.b16 %v758
        %v1004 = vunpack.c.l.b16 %v759
        %v1005 = vunpack.c.h.b16 %v759
        %v1006 = vunpack.c.l.b16 %v760
        %v1007 = vunpack.c.h.b16 %v760
        %v1008 = vunpack.c.l.b16 %v761
        %v1009 = vunpack.c.h.b16 %v761
        %v1010 = vunpack.c.l.b16 %v762
        %v1011 = vunpack.c.h.b16 %v762
        %v1012 = vunpack.c.l.b16 %v763
        %v1013 = vunpack.c.h.b16 %v763
        %v1014 = vunpack.c.l.b16 %v764
        %v1015 = vunpack.c.h.b16 %v764
        %v1016 = vunpack.c.l.b16 %v765
        %v1017 = vunpack.c.h.b16 %v765
        %v1018 = vunpack.c.l.b16 %v766
        %v1019 = vunpack.c.h.b16 %v766
        %v1020 = vunpack.c.l.b16 %v767
        %v1021 = vunpack.c.h.b16 %v767
        %v1022 = vunpack.c.l.b16 %v768
        %v1023 = vunpack.c.h.b16 %v768
        %v1024 = vunpack.c.l.b16 %v769
        %v1025 = vunpack.c.h.b16 %v769
        %v1026 = vunpack.c.l.b16 %v770
        %v1027 = vunpack.c.h.b16 %v770
        %v1028 = vunpack.c.l.b16 %v771
        %v1029 = vunpack.c.h.b16 %v771
        %v1030 = vunpack.c.l.b16 %v772
        %v1031 = vunpack.c.h.b16 %v772
        %v1032 = vunpack.c.l.b16 %v773
        %v1033 = vunpack.c.h.b16 %v773
        %v1034 = vunpack.c.l.b16 %v774
        %v1035 = vunpack.c.h.b16 %v774
        %v1036 = vunpack.c.l.b16 %v775
        %v1037 = vunpack.c.h.b16 %v775
        %v1038 = vunpack.c.l.b16 %v776
        %v1039 = vunpack.c.h.b16 %v776
        %v1040 = vunpack.c.l.b16 %v777
        %v1041 = vunpack.c.h.b16 %v777
        %v1042 = vunpack.c.l.b16 %v778
        %v1043 = vunpack.c.h.b16 %v778
        %v1044 = vunpack.c.l.b16 %v779
        %v1045 = vunpack.c.h.b16 %v779
        %v1046 = vunpack.c.l.b16 %v780
        %v1047 = vunpack.c.h.b16 %v780
        %v1048 = vunpack.c.l.b16 %v781
        %v1049 = vunpack.c.h.b16 %v781
        %v1050 = vunpack.c.l.b16 %v782
        %v1051 = vunpack.c.h.b16 %v782
        %v1052 = vunpack.c.l.b16 %v783
        %v1053 = vunpack.c.h.b16 %v783
        %v1054 = vunpack.c.l.b16 %v784
        %v1055 = vunpack.c.h.b16 %v784
        %v1056 = vunpack.c.l.b16 %v785
        %v1057 = vunpack.c.h.b16 %v785
        %v1058 = vunpack.c.l.b16 %v786
        %v1059 = vunpack.c.h.b16 %v786
        %v1060 = vunpack.c.l.b16 %v787
        %v1061 = vunpack.c.h.b16 %v787
        %v1062 = vunpack.c.l.b16 %v788
        %v1063 = vunpack.c.h.b16 %v788
        %v1064 = vunpack.c.l.b16 %v789
        %v1065 = vunpack.c.h.b16 %v789
        %v1066 = vunpack.c.l.b16 %v790
        %v1067 = vunpack.c.h.b16 %v790
        %v1068 = vunpack.c.l.b16 %v791
        %v1069 = vunpack.c.h.b16 %v791
        %v1070 = vunpack.c.l.b16 %v792
        %v1071 = vunpack.c.h.b16 %v792
        %v1072 = vunpack.c.l.b16 %v793
        %v1073 = vunpack.c.h.b16 %v793
        %v1074 = vunpack.c.l.b16 %v794
        %v1075 = vunpack.c.h.b16 %v794
        %v1076 = vunpack.c.l.b16 %v795
        %v1077 = vunpack.c.h.b16 %v795
        %v1078 = vunpack.c.l.b16 %v796
        %v1079 = vunpack.c.h.b16 %v796
        %v1080 = vunpack.c.l.b16 %v797
        %v1081 = vunpack.c.h.b16 %v797
        %v1082 = vunpack.c.l.b16 %v798
        %v1083 = vunpack.c.h.b16 %v798
        %v1084 = vunpack.c.l.b16 %v799
        %v1085 = vunpack.c.h.b16 %v799
        %v1086 = vunpack.c.l.b16 %v800
        %v1087 = vunpack.c.h.b16 %v800
        %v1088 = vunpack.c.l.b16 %v801
        %v1089 = vunpack.c.h.b16 %v801
        %v1090 = vunpack.c.l.b16 %v802
        %v1091 = vunpack.c.h.b16 %v802
        %v1092 = vunpack.c.l.b16 %v803
        %v1093 = vunpack.c.h.b16 %v803
        %v1094 = vunpack.c.l.b16 %v804
        %v1095 = vunpack.c.h.b16 %v804
        %v1096 = vunpack.c.l.b16 %v805
        %v1097 = vunpack.c.h.b16 %v805
        %v1098 = vunpack.c.l.b16 %v806
        %v1099 = vunpack.c.h.b16 %v806
        %v1100 = vunpack.c.l.b16 %v807
        %v1101 = vunpack.c.h.b16 %v807
        %v1102 = vunpack.c.l.b16 %v808
        %v1103 = vunpack.c.h.b16 %v808
        %v1104 = vunpack.c.l.b16 %v809
        %v1105 = vunpack.c.h.b16 %v809
        %v1106 = vunpack.c.l.b16 %v810
        %v1107 = vunpack.c.h.b16 %v810
        %v1108 = vunpack.c.l.b16 %v811
        %v1109 = vunpack.c.h.b16 %v811
        %v1110 = vunpack.c.l.b16 %v812
        %v1111 = vunpack.c.h.b16 %v812
        %v1112 = vunpack.c.l.b16 %v813
        %v1113 = vunpack.c.h.b16 %v813
        %v1114 = vunpack.c.l.b16 %v814
        %v1115 = vunpack.c.h.b16 %v814
        %v1116 = vunpack.c.l.b16 %v815
        %v1117 = vunpack.c.h.b16 %v815
        %v1118 = vunpack.c.l.b16 %v816
        %v1119 = vunpack.c.h.b16 %v816
        %v1120 = vunpack.c.l.b16 %v817
        %v1121 = vunpack.c.h.b16 %v817
        %v1122 = vunpack.c.l.b16 %v818
        %v1123 = vunpack.c.h.b16 %v818
        %v1124 = vunpack.c.l.b16 %v819
        %v1125 = vunpack.c.h.b16 %v819
        %v1126 = vunpack.c.l.b16 %v820
        %v1127 = vunpack.c.h.b16 %v820
        %v1128 = vunpack.c.l.b16 %v821
        %v1129 = vunpack.c.h.b16 %v821
        %v1130 = vunpack.c.l.b16 %v822
        %v1131 = vunpack.c.h.b16 %v822
        %v1132 = vunpack.c.l.b16 %v823
        %v1133 = vunpack.c.h.b16 %v823
        %v1134 = vunpack.c.l.b16 %v824
        %v1135 = vunpack.c.h.b16 %v824
        %v1136 = vunpack.c.l.b16 %v825
        %v1137 = vunpack.c.h.b16 %v825
        %v1138 = vunpack.c.l.b16 %v826
        %v1139 = vunpack.c.h.b16 %v826
        %v1140 = vunpack.c.l.b16 %v827
        %v1141 = vunpack.c.h.b16 %v827
        %v1142 = vunpack.c.l.b16 %v828
        %v1143 = vunpack.c.h.b16 %v828
        %v1144 = vunpack.c.l.b16 %v829
        %v1145 = vunpack.c.h.b16 %v829
        %v1146 = vunpack.c.l.b16 %v830
        %v1147 = vunpack.c.h.b16 %v830
        %v1148 = vunpack.c.l.b16 %v831
        %v1149 = vunpack.c.h.b16 %v831
        %v1150 = vunpack.c.l.b16 %v832
        %v1151 = vunpack.c.h.b16 %v832
        %v1152 = vunpack.c.l.b16 %v833
        %v1153 = vunpack.c.h.b16 %v833
        %v1154 = vpack.c.b16 %v968, %v962
        %v1155 = vpack.c.b16 %v969, %v963
        %v1156 = vpack.c.b16 %v970, %v964
        %v1157 = vpack.c.b16 %v971, %v965
        %v1158 = vpack.c.b16 %v972, %v966
        %v1159 = vpack.c.b16 %v973, %v967
        %v1160 = vpack.c.b16 %v980, %v974
        %v1161 = vpack.c.b16 %v981, %v975
        %v1162 = vpack.c.b16 %v982, %v976
        %v1163 = vpack.c.b16 %v983, %v977
        %v1164 = vpack.c.b16 %v984, %v978
        %v1165 = vpack.c.b16 %v985, %v979
        %v1166 = vpack.c.b16 %v992, %v986
        %v1167 = vpack.c.b16 %v993, %v987
        %v1168 = vpack.c.b16 %v994, %v988
        %v1169 = vpack.c.b16 %v995, %v989
        %v1170 = vpack.c.b16 %v996, %v990
        %v1171 = vpack.c.b16 %v997, %v991
        %v1172 = vpack.c.b16 %v1004, %v998
        %v1173 = vpack.c.b16 %v1005, %v999
        %v1174 = vpack.c.b16 %v1006, %v1000
        %v1175 = vpack.c.b16 %v1007, %v1001
        %v1176 = vpack.c.b16 %v1008, %v1002
        %v1177 = vpack.c.b16 %v1009, %v1003
        %v1178 = vpack.c.b16 %v1016, %v1010
        %v1179 = vpack.c.b16 %v1017, %v1011
        %v1180 = vpack.c.b16 %v1018, %v1012
        %v1181 = vpack.c.b16 %v1019, %v1013
        %v1182 = vpack.c.b16 %v1020, %v1014
        %v1183 = vpack.c.b16 %v1021, %v1015
        %v1184 = vpack.c.b16 %v1028, %v1022
        %v1185 = vpack.c.b16 %v1029, %v1023
        %v1186 = vpack.c.b16 %v1030, %v1024
        %v1187 = vpack.c.b16 %v1031, %v1025
        %v1188 = vpack.c.b16 %v1032, %v1026
        %v1189 = vpack.c.b16 %v1033, %v1027
        %v1190 = vpack.c.b16 %v1040, %v1034
        %v1191 = vpack.c.b16 %v1041, %v1035
        %v1192 = vpack.c.b16 %v1042, %v1036
        %v1193 = vpack.c.b16 %v1043, %v1037
        %v1194 = vpack.c.b16 %v1044, %v1038
        %v1195 = vpack.c.b16 %v1045, %v1039
        %v1196 = vpack.c.b16 %v1052, %v1046
        %v1197 = vpack.c.b16 %v1053, %v1047
        %v1198 = vpack.c.b16 %v1054, %v1048
        %v1199 = vpack.c.b16 %v1055, %v1049
        %v1200 = vpack.c.b16 %v1056, %v1050
        %v1201 = vpack.c.b16 %v1057, %v1051
        %v1202 = vpack.c.b16 %v1064, %v1058
        %v1203 = vpack.c.b16 %v1065, %v1059
        %v1204 = vpack.c.b16 %v1066, %v1060
        %v1205 = vpack.c.b16 %v1067, %v1061
        %v1206 = vpack.c.b16 %v1068, %v1062
        %v1207 = vpack.c.b16 %v1069, %v1063
        %v1208 = vpack.c.b16 %v1076, %v1070
        %v1209 = vpack.c.b16 %v1077, %v1071
        %v1210 = vpack.c.b16 %v1078, %v1072
        %v1211 = vpack.c.b16 %v1079, %v1073
        %v1212 = vpack.c.b16 %v1080, %v1074
        %v1213 = vpack.c.b16 %v1081, %v1075
        %v1214 = vpack.c.b16 %v1088, %v1082
        %v1215 = vpack.c.b16 %v1089, %v1083
        %v1216 = vpack.c.b16 %v1090, %v1084
        %v1217 = vpack.c.b16 %v1091, %v1085
        %v1218 = vpack.c.b16 %v1092, %v1086
        %v1219 = vpack.c.b16 %v1093, %v1087
        %v1220 = vpack.c.b16 %v1100, %v1094
        %v1221 = vpack.c.b16 %v1101, %v1095
        %v1222 = vpack.c.b16 %v1102, %v1096
        %v1223 = vpack.c.b16 %v1103, %v1097
        %v1224 = vpack.c.b16 %v1104, %v1098
        %v1225 = vpack.c.b16 %v1105, %v1099
        %v1226 = vpack.c.b16 %v1112, %v1106
        %v1227 = vpack.c.b16 %v1113, %v1107
        %v1228 = vpack.c.b16 %v1114, %v1108
        %v1229 = vpack.c.b16 %v1115, %v1109
        %v1230 = vpack.c.b16 %v1116, %v1110
        %v1231 = vpack.c.b16 %v1117, %v1111
        %v1232 = vpack.c.b16 %v1124, %v1118
        %v1233 = vpack.c.b16 %v1125, %v1119
        %v1234 = vpack.c.b16 %v1126, %v1120
        %v1235 = vpack.c.b16 %v1127, %v1121
        %v1236 = vpack.c.b16 %v1128, %v1122
        %v1237 = vpack.c.b16 %v1129, %v1123
        %v1238 = vpack.c.b16 %v1136, %v1130
        %v1239 = vpack.c.b16 %v1137, %v1131
        %v1240 = vpack.c.b16 %v1138, %v1132
        %v1241 = vpack.c.b16 %v1139, %v1133
        %v1242 = vpack.c.b16 %v1140, %v1134
        %v1243 = vpack.c.b16 %v1141, %v1135
        %v1244 = vpack.c.b16 %v1148, %v1142
        %v1245 = vpack.c.b16 %v1149, %v1143
        %v1246 = vpack.c.b16 %v1150, %v1144
        %v1247 = vpack.c.b16 %v1151, %v1145
        %v1248 = vpack.c.b16 %v1152, %v1146
        %v1249 = vpack.c.b16 %v1153, %v1147
        %1346 = vmatprep.subr.bf16.mxu0 %v1155
        %1347 = vmatpush1.bf16.msra.mxu0 %v1154
        %1348 = vmatprep.subr.bf16.mxu0 %v1161
        %1349 = vmatpush1.bf16.msra.mxu0 %v1160
        %1350 = vmatprep.subr.bf16.mxu0 %v1167
        %1351 = vmatpush1.bf16.msra.mxu0 %v1166
        %1352 = vmatprep.subr.bf16.mxu0 %v1173
        %1353 = vmatpush1.bf16.msra.mxu0 %v1172
        %1354 = vmatprep.subr.bf16.mxu0 %v1179
        %1355 = vmatpush1.bf16.msra.mxu0 %v1178
        %1356 = vmatprep.subr.bf16.mxu0 %v1185
        %1357 = vmatpush1.bf16.msra.mxu0 %v1184
        %1358 = vmatprep.subr.bf16.mxu0 %v1191
        %1359 = vmatpush1.bf16.msra.mxu0 %v1190
        %1360 = vmatprep.subr.bf16.mxu0 %v1197
        %1361 = vmatpush1.bf16.msra.mxu0 %v1196
        %1362 = vmatprep.subr.bf16.mxu0 %v1203
        %1363 = vmatpush1.bf16.msra.mxu0 %v1202
        %1364 = vmatprep.subr.bf16.mxu0 %v1209
        %1365 = vmatpush1.bf16.msra.mxu0 %v1208
        %1366 = vmatprep.subr.bf16.mxu0 %v1215
        %1367 = vmatpush1.bf16.msra.mxu0 %v1214
        %1368 = vmatprep.subr.bf16.mxu0 %v1221
        %1369 = vmatpush1.bf16.msra.mxu0 %v1220
        %1370 = vmatprep.subr.bf16.mxu0 %v1227
        %1371 = vmatpush1.bf16.msra.mxu0 %v1226
        %1372 = vmatprep.subr.bf16.mxu0 %v1233
        %1373 = vmatpush1.bf16.msra.mxu0 %v1232
        %1374 = vmatprep.subr.bf16.mxu0 %v1239
        %1375 = vmatpush1.bf16.msra.mxu0 %v1238
        %1376 = vmatprep.subr.bf16.mxu0 %v1245
        %1377 = vmatpush1.bf16.msra.mxu0 %v1244
        %1378 = vmatprep.mubr.bf16.mxu0 %v735
        %1379 = vmatmul.mubr.bf16.gmra.mrb[0].mxu0 %v734
        %v1380 = vpop.f32.mrb[0].mxu0
        %v1381 = vadd.f32 %v839, %v1380
        %v1382 = vpop.f32.mrb[0].mxu0
        %v1383 = vadd.f32 %v843, %v1382
        %v1384 = vpop.f32.mrb[0].mxu0
        %v1385 = vadd.f32 %v839, %v1384
        %v1386 = vpop.f32.mrb[0].mxu0
        %v1387 = vadd.f32 %v843, %v1386
        %1388 = vmatprep.mubr.bf16.mxu0 %v737
        %1389 = vmatmul.mubr.bf16.gmra.mrb[0].mxu0 %v736
        %v1390 = vpop.f32.mrb[0].mxu0
        %v1391 = vadd.f32 %v839, %v1390
        %v1392 = vpop.f32.mrb[0].mxu0
        %v1393 = vadd.f32 %v843, %v1392
        %v1394 = vpop.f32.mrb[0].mxu0
        %v1395 = vadd.f32 %v839, %v1394
        %v1396 = vpop.f32.mrb[0].mxu0
        %v1397 = vadd.f32 %v843, %v1396
        %1398 = vdwg.mxu0
        %1399 = vmatprep.subr.bf16.mxu0 %v1157
        %1400 = vmatpush1.bf16.msra.mxu0 %v1156
        %1401 = vmatprep.subr.bf16.mxu0 %v1163
        %1402 = vmatpush1.bf16.msra.mxu0 %v1162
        %1403 = vmatprep.subr.bf16.mxu0 %v1169
        %1404 = vmatpush1.bf16.msra.mxu0 %v1168
        %1405 = vmatprep.subr.bf16.mxu0 %v1175
        %1406 = vmatpush1.bf16.msra.mxu0 %v1174
        %1407 = vmatprep.subr.bf16.mxu0 %v1181
        %1408 = vmatpush1.bf16.msra.mxu0 %v1180
        %1409 = vmatprep.subr.bf16.mxu0 %v1187
        %1410 = vmatpush1.bf16.msra.mxu0 %v1186
        %1411 = vmatprep.subr.bf16.mxu0 %v1193
        %1412 = vmatpush1.bf16.msra.mxu0 %v1192
        %1413 = vmatprep.subr.bf16.mxu0 %v1199
        %1414 = vmatpush1.bf16.msra.mxu0 %v1198
        %1415 = vmatprep.subr.bf16.mxu0 %v1205
        %1416 = vmatpush1.bf16.msra.mxu0 %v1204
        %1417 = vmatprep.subr.bf16.mxu0 %v1211
        %1418 = vmatpush1.bf16.msra.mxu0 %v1210
        %1419 = vmatprep.subr.bf16.mxu0 %v1217
        %1420 = vmatpush1.bf16.msra.mxu0 %v1216
        %1421 = vmatprep.subr.bf16.mxu0 %v1223
        %1422 = vmatpush1.bf16.msra.mxu0 %v1222
        %1423 = vmatprep.subr.bf16.mxu0 %v1229
        %1424 = vmatpush1.bf16.msra.mxu0 %v1228
        %1425 = vmatprep.subr.bf16.mxu0 %v1235
        %1426 = vmatpush1.bf16.msra.mxu0 %v1234
        %1427 = vmatprep.subr.bf16.mxu0 %v1241
        %1428 = vmatpush1.bf16.msra.mxu0 %v1240
        %1429 = vmatprep.subr.bf16.mxu0 %v1247
        %1430 = vmatpush1.bf16.msra.mxu0 %v1246
        %1431 = vmatprep.mubr.bf16.mxu0 %v735
        %1432 = vmatmul.mubr.bf16.gmra.mrb[0].mxu0 %v734
        %v1433 = vpop.f32.mrb[0].mxu0
        %v1434 = vadd.f32 %v847, %v1433
        %v1435 = vpop.f32.mrb[0].mxu0
        %v1436 = vadd.f32 %v851, %v1435
        %v1437 = vpop.f32.mrb[0].mxu0
        %v1438 = vadd.f32 %v847, %v1437
        %v1439 = vpop.f32.mrb[0].mxu0
        %v1440 = vadd.f32 %v851, %v1439
        %1441 = vmatprep.mubr.bf16.mxu0 %v737
        %1442 = vmatmul.mubr.bf16.gmra.mrb[0].mxu0 %v736
        %v1443 = vpop.f32.mrb[0].mxu0
        %v1444 = vadd.f32 %v847, %v1443
        %v1445 = vpop.f32.mrb[0].mxu0
        %v1446 = vadd.f32 %v851, %v1445
        %v1447 = vpop.f32.mrb[0].mxu0
        %v1448 = vadd.f32 %v847, %v1447
        %v1449 = vpop.f32.mrb[0].mxu0
        %v1450 = vadd.f32 %v851, %v1449
        %1451 = vdwg.mxu0
        %1452 = vmatprep.subr.bf16.mxu0 %v1159
        %1453 = vmatpush1.bf16.msra.mxu0 %v1158
        %1454 = vmatprep.subr.bf16.mxu0 %v1165
        %1455 = vmatpush1.bf16.msra.mxu0 %v1164
        %1456 = vmatprep.subr.bf16.mxu0 %v1171
        %1457 = vmatpush1.bf16.msra.mxu0 %v1170
        %1458 = vmatprep.subr.bf16.mxu0 %v1177
        %1459 = vmatpush1.bf16.msra.mxu0 %v1176
        %1460 = vmatprep.subr.bf16.mxu0 %v1183
        %1461 = vmatpush1.bf16.msra.mxu0 %v1182
        %1462 = vmatprep.subr.bf16.mxu0 %v1189
        %1463 = vmatpush1.bf16.msra.mxu0 %v1188
        %1464 = vmatprep.subr.bf16.mxu0 %v1195
        %1465 = vmatpush1.bf16.msra.mxu0 %v1194
        %1466 = vmatprep.subr.bf16.mxu0 %v1201
        %1467 = vmatpush1.bf16.msra.mxu0 %v1200
        %1468 = vmatprep.subr.bf16.mxu0 %v1207
        %1469 = vmatpush1.bf16.msra.mxu0 %v1206
        %1470 = vmatprep.subr.bf16.mxu0 %v1213
        %1471 = vmatpush1.bf16.msra.mxu0 %v1212
        %1472 = vmatprep.subr.bf16.mxu0 %v1219
        %1473 = vmatpush1.bf16.msra.mxu0 %v1218
        %1474 = vmatprep.subr.bf16.mxu0 %v1225
        %1475 = vmatpush1.bf16.msra.mxu0 %v1224
        %1476 = vmatprep.subr.bf16.mxu0 %v1231
        %1477 = vmatpush1.bf16.msra.mxu0 %v1230
        %1478 = vmatprep.subr.bf16.mxu0 %v1237
        %1479 = vmatpush1.bf16.msra.mxu0 %v1236
        %1480 = vmatprep.subr.bf16.mxu0 %v1243
        %1481 = vmatpush1.bf16.msra.mxu0 %v1242
        %1482 = vmatprep.subr.bf16.mxu0 %v1249
        %1483 = vmatpush1.bf16.msra.mxu0 %v1248
        %1484 = vmatprep.mubr.bf16.mxu0 %v735
        %1485 = vmatmul.mubr.bf16.gmra.mrb[0].mxu0 %v734
        %v1486 = vpop.f32.mrb[0].mxu0
        %v1487 = vadd.f32 %v855, %v1486
        %v1488 = vpop.f32.mrb[0].mxu0
        %v1489 = vadd.f32 %v859, %v1488
        %v1490 = vpop.f32.mrb[0].mxu0
        %v1491 = vadd.f32 %v855, %v1490
        %v1492 = vpop.f32.mrb[0].mxu0
        %v1493 = vadd.f32 %v859, %v1492
        %1494 = vmatprep.mubr.bf16.mxu0 %v737
        %1495 = vmatmul.mubr.bf16.gmra.mrb[0].mxu0 %v736
        %v1496 = vpop.f32.mrb[0].mxu0
        %v1497 = vadd.f32 %v855, %v1496
        %v1498 = vpop.f32.mrb[0].mxu0
        %v1499 = vadd.f32 %v859, %v1498
        %v1500 = vpop.f32.mrb[0].mxu0
        %v1501 = vadd.f32 %v855, %v1500
        %v1502 = vpop.f32.mrb[0].mxu0
        %v1503 = vadd.f32 %v859, %v1502
        %1504 = vdwg.mxu0
        %v1505 = vpack.c.bf16 %v1385, %v1381
        %v1506 = vpack.c.bf16 %v1387, %v1383
        %v1507 = vpack.c.bf16 %v1438, %v1434
        %v1508 = vpack.c.bf16 %v1440, %v1436
        %v1509 = vpack.c.bf16 %v1491, %v1487
        %v1510 = vpack.c.bf16 %v1493, %v1489
        %v1511 = vpack.c.bf16 %v1395, %v1391
        %v1512 = vpack.c.bf16 %v1397, %v1393
        %v1513 = vpack.c.bf16 %v1448, %v1444
        %v1514 = vpack.c.bf16 %v1450, %v1446
        %v1515 = vpack.c.bf16 %v1501, %v1497
        %v1516 = vpack.c.bf16 %v1503, %v1499
        %vm1517 = vcmask 523264
        %v1519 = vsel %vm1517, %v1505, 0
        %v1522 = vsel %vm1517, %v1507, 0
        %1524 = vmatprep.subr.bf16.mxu0 0
        %1525 = vmatpush1.bf16.xpose.msra.mxu0 %v1522
        %1526 = vmatprep.subr.bf16.mxu0 0
        %1527 = vmatpush1.bf16.xpose.msra.mxu0 0
        %1528 = vmatprep.subr.bf16.mxu0 0
        %1529 = vmatpush1.bf16.xpose.msra.mxu0 0
        %1530 = vmatprep.subr.bf16.mxu0 0
        %1531 = vmatpush1.bf16.xpose.msra.mxu0 0
        %1532 = vmatprep.subr.bf16.mxu0 0
        %1533 = vmatpush1.bf16.xpose.msra.mxu0 0
        %1534 = vmatprep.subr.bf16.mxu0 0
        %1535 = vmatpush1.bf16.xpose.msra.mxu0 0
        %1536 = vmatprep.subr.bf16.mxu0 0
        %1537 = vmatpush1.bf16.xpose.msra.mxu0 0
        %1538 = vmatprep.subr.bf16.mxu0 0
        %1539 = vmatpush1.bf16.xpose.msra.mxu0 0
        %1540 = vmatprep.subr.bf16.mxu0 0
        %1541 = vmatpush1.bf16.xpose.msra.mxu0 0
        %1542 = vmatprep.subr.bf16.mxu0 0
        %1543 = vmatpush1.bf16.xpose.msra.mxu0 0
        %1544 = vmatprep.subr.bf16.mxu0 0
        %1545 = vmatpush1.bf16.xpose.msra.mxu0 0
        %1546 = vmatprep.subr.bf16.mxu0 0
        %1547 = vmatpush1.bf16.xpose.msra.mxu0 0
        %1548 = vmatprep.subr.bf16.mxu0 0
        %1549 = vmatpush1.bf16.xpose.msra.mxu0 0
        %1550 = vmatprep.subr.bf16.mxu0 0
        %1551 = vmatpush1.bf16.xpose.msra.mxu0 0
        %1552 = vmatprep.subr.bf16.mxu0 0
        %1553 = vmatpush1.bf16.xpose.msra.mxu0 0
        %1554 = vmatprep.subr.bf16.mxu0 0
        %1555 = vmatpush1.bf16.xpose.msra.mxu0 0
        %1556 = vmatprep.mubr.bf16.mxu0 0
        %1557 = vmatmul.mubr.bf16.gmra.mrb[0].mxu0 %v1519
        %v1558 = vpop.f32.mrb[0].mxu0
        %v1559 = vadd.f32 0.0, %v1558
        %v1560 = vpop.f32.mrb[0].mxu0
        %v1561 = vpop.f32.mrb[0].mxu0
        %v1562 = vadd.f32 0.0, %v1561
        %v1563 = vpop.f32.mrb[0].mxu0
        %1564 = vdwg.mxu0
        %v1566 = vsel %vm1517, %v1511, 0
        %v1569 = vsel %vm1517, %v1513, 0
        %1571 = vmatprep.subr.bf16.mxu0 0
        %1572 = vmatpush1.bf16.xpose.msra.mxu0 %v1569
        %1573 = vmatprep.subr.bf16.mxu0 0
        %1574 = vmatpush1.bf16.xpose.msra.mxu0 0
        %1575 = vmatprep.subr.bf16.mxu0 0
        %1576 = vmatpush1.bf16.xpose.msra.mxu0 0
        %1577 = vmatprep.subr.bf16.mxu0 0
        %1578 = vmatpush1.bf16.xpose.msra.mxu0 0
        %1579 = vmatprep.subr.bf16.mxu0 0
        %1580 = vmatpush1.bf16.xpose.msra.mxu0 0
        %1581 = vmatprep.subr.bf16.mxu0 0
        %1582 = vmatpush1.bf16.xpose.msra.mxu0 0
        %1583 = vmatprep.subr.bf16.mxu0 0
        %1584 = vmatpush1.bf16.xpose.msra.mxu0 0
        %1585 = vmatprep.subr.bf16.mxu0 0
        %1586 = vmatpush1.bf16.xpose.msra.mxu0 0
        %1587 = vmatprep.subr.bf16.mxu0 0
        %1588 = vmatpush1.bf16.xpose.msra.mxu0 0
        %1589 = vmatprep.subr.bf16.mxu0 0
        %1590 = vmatpush1.bf16.xpose.msra.mxu0 0
        %1591 = vmatprep.subr.bf16.mxu0 0
        %1592 = vmatpush1.bf16.xpose.msra.mxu0 0
        %1593 = vmatprep.subr.bf16.mxu0 0
        %1594 = vmatpush1.bf16.xpose.msra.mxu0 0
        %1595 = vmatprep.subr.bf16.mxu0 0
        %1596 = vmatpush1.bf16.xpose.msra.mxu0 0
        %1597 = vmatprep.subr.bf16.mxu0 0
        %1598 = vmatpush1.bf16.xpose.msra.mxu0 0
        %1599 = vmatprep.subr.bf16.mxu0 0
        %1600 = vmatpush1.bf16.xpose.msra.mxu0 0
        %1601 = vmatprep.subr.bf16.mxu0 0
        %1602 = vmatpush1.bf16.xpose.msra.mxu0 0
        %1603 = vmatprep.mubr.bf16.mxu0 0
        %1604 = vmatmul.mubr.bf16.gmra.mrb[0].mxu0 %v1566
        %v1605 = vpop.f32.mrb[0].mxu0
        %v1606 = vadd.f32 0.0, %v1605
        %v1607 = vpop.f32.mrb[0].mxu0
        %v1608 = vpop.f32.mrb[0].mxu0
        %v1609 = vadd.f32 0.0, %v1608
        %v1610 = vpop.f32.mrb[0].mxu0
        %1611 = vdwg.mxu0
        %vm1612 = vcmask 130048
        %v1613 = vsel %vm1612, %v1559, -inf
        %1614 = vmax.xlane.f32.xlu0 %v1613
        %v1615 = vpop.xlane.xlu0 %1614
        %v1616 = vsel %vm1612, %v1562, -inf
        %1617 = vmax.xlane.f32.xlu0 %v1616
        %v1618 = vpop.xlane.xlu0 %1617
        %v1619 = vsel %vm1612, %v1606, -inf
        %1620 = vmax.xlane.f32.xlu0 %v1619
        %v1621 = vpop.xlane.xlu0 %1620
        %v1622 = vsel %vm1612, %v1609, -inf
        %1623 = vmax.xlane.f32.xlu0 %v1622
        %v1624 = vpop.xlane.xlu0 %1623
        %v1625 = vsub.f32 %v1559, %v1615
        %v1626 = vsub.f32 %v1562, %v1618
        %v1627 = vsub.f32 %v1606, %v1621
        %v1628 = vsub.f32 %v1609, %v1624
        %v1629 = vmul.f32 %v1625, 1.442695
        %v1630 = vpow.pop %v1629
        %v1631 = vmul.f32 %v1626, 1.442695
        %v1632 = vpow.pop %v1631
        %v1633 = vmul.f32 %v1627, 1.442695
        %v1634 = vpow.pop %v1633
        %v1635 = vmul.f32 %v1628, 1.442695
        %v1636 = vpow.pop %v1635
        %v1637 = vsel %vm1612, %v1630, 0.0
        %1638 = vadd.xlane.f32.xlu0 %v1637
        %v1639 = vpop.xlane.xlu0 %1638
        %v1640 = vsel %vm1612, %v1632, 0.0
        %1641 = vadd.xlane.f32.xlu0 %v1640
        %v1642 = vpop.xlane.xlu0 %1641
        %v1643 = vsel %vm1612, %v1634, 0.0
        %1644 = vadd.xlane.f32.xlu0 %v1643
        %v1645 = vpop.xlane.xlu0 %1644
        %v1646 = vsel %vm1612, %v1636, 0.0
        %1647 = vadd.xlane.f32.xlu0 %v1646
        %v1648 = vpop.xlane.xlu0 %1647
        %v1649 = vrcp.pop %v1639
        %v1650 = vrcp.pop %v1642
        %v1651 = vrcp.pop %v1645
        %v1652 = vrcp.pop %v1648
        %v1653 = vmul.f32 %v1630, %v1649
        %v1654 = vmul.f32 %v1632, %v1650
        %v1655 = vmul.f32 %v1634, %v1651
        %v1656 = vmul.f32 %v1636, %v1652
        %v1657 = vpack.c.bf16 %v1654, %v1653
        %v1658 = vpack.c.bf16 %v1656, %v1655
        %v1660 = vsel %vm1612, %v1657, 0
        %1662 = vmatprep.subr.bf16.mxu0 0
        %1663 = vmatpush1.bf16.msra.mxu0 %v1509
        %1664 = vmatprep.subr.bf16.mxu0 0
        %1665 = vmatpush1.bf16.msra.mxu0 0
        %1666 = vmatprep.subr.bf16.mxu0 0
        %1667 = vmatpush1.bf16.msra.mxu0 0
        %1668 = vmatprep.subr.bf16.mxu0 0
        %1669 = vmatpush1.bf16.msra.mxu0 0
        %1670 = vmatprep.subr.bf16.mxu0 0
        %1671 = vmatpush1.bf16.msra.mxu0 0
        %1672 = vmatprep.subr.bf16.mxu0 0
        %1673 = vmatpush1.bf16.msra.mxu0 0
        %1674 = vmatprep.subr.bf16.mxu0 0
        %1675 = vmatpush1.bf16.msra.mxu0 0
        %1676 = vmatprep.subr.bf16.mxu0 0
        %1677 = vmatpush1.bf16.msra.mxu0 0
        %1678 = vmatprep.subr.bf16.mxu0 0
        %1679 = vmatpush1.bf16.msra.mxu0 0
        %1680 = vmatprep.subr.bf16.mxu0 0
        %1681 = vmatpush1.bf16.msra.mxu0 0
        %1682 = vmatprep.subr.bf16.mxu0 0
        %1683 = vmatpush1.bf16.msra.mxu0 0
        %1684 = vmatprep.subr.bf16.mxu0 0
        %1685 = vmatpush1.bf16.msra.mxu0 0
        %1686 = vmatprep.subr.bf16.mxu0 0
        %1687 = vmatpush1.bf16.msra.mxu0 0
        %1688 = vmatprep.subr.bf16.mxu0 0
        %1689 = vmatpush1.bf16.msra.mxu0 0
        %1690 = vmatprep.subr.bf16.mxu0 0
        %1691 = vmatpush1.bf16.msra.mxu0 0
        %1692 = vmatprep.subr.bf16.mxu0 0
        %1693 = vmatpush1.bf16.msra.mxu0 0
        %1694 = vmatprep.mubr.bf16.mxu0 0
        %1695 = vmatmul.mubr.bf16.gmra.mrb[0].mxu0 %v1660
        %v1696 = vpop.f32.mrb[0].mxu0
        %v1697 = vadd.f32 0.0, %v1696
        %v1698 = vpop.f32.mrb[0].mxu0
        %v1699 = vpop.f32.mrb[0].mxu0
        %v1700 = vadd.f32 0.0, %v1699
        %v1701 = vpop.f32.mrb[0].mxu0
        %1702 = vdwg.mxu0
        %v1704 = vsel %vm1612, %v1658, 0
        %1706 = vmatprep.subr.bf16.mxu0 0
        %1707 = vmatpush1.bf16.msra.mxu0 %v1515
        %1708 = vmatprep.subr.bf16.mxu0 0
        %1709 = vmatpush1.bf16.msra.mxu0 0
        %1710 = vmatprep.subr.bf16.mxu0 0
        %1711 = vmatpush1.bf16.msra.mxu0 0
        %1712 = vmatprep.subr.bf16.mxu0 0
        %1713 = vmatpush1.bf16.msra.mxu0 0
        %1714 = vmatprep.subr.bf16.mxu0 0
        %1715 = vmatpush1.bf16.msra.mxu0 0
        %1716 = vmatprep.subr.bf16.mxu0 0
        %1717 = vmatpush1.bf16.msra.mxu0 0
        %1718 = vmatprep.subr.bf16.mxu0 0
        %1719 = vmatpush1.bf16.msra.mxu0 0
        %1720 = vmatprep.subr.bf16.mxu0 0
        %1721 = vmatpush1.bf16.msra.mxu0 0
        %1722 = vmatprep.subr.bf16.mxu0 0
        %1723 = vmatpush1.bf16.msra.mxu0 0
        %1724 = vmatprep.subr.bf16.mxu0 0
        %1725 = vmatpush1.bf16.msra.mxu0 0
        %1726 = vmatprep.subr.bf16.mxu0 0
        %1727 = vmatpush1.bf16.msra.mxu0 0
        %1728 = vmatprep.subr.bf16.mxu0 0
        %1729 = vmatpush1.bf16.msra.mxu0 0
        %1730 = vmatprep.subr.bf16.mxu0 0
        %1731 = vmatpush1.bf16.msra.mxu0 0
        %1732 = vmatprep.subr.bf16.mxu0 0
        %1733 = vmatpush1.bf16.msra.mxu0 0
        %1734 = vmatprep.subr.bf16.mxu0 0
        %1735 = vmatpush1.bf16.msra.mxu0 0
        %1736 = vmatprep.subr.bf16.mxu0 0
        %1737 = vmatpush1.bf16.msra.mxu0 0
        %1738 = vmatprep.mubr.bf16.mxu0 0
        %1739 = vmatmul.mubr.bf16.gmra.mrb[0].mxu0 %v1704
        %v1740 = vpop.f32.mrb[0].mxu0
        %v1741 = vadd.f32 0.0, %v1740
        %v1742 = vpop.f32.mrb[0].mxu0
        %v1743 = vpop.f32.mrb[0].mxu0
        %v1744 = vadd.f32 0.0, %v1743
        %v1745 = vpop.f32.mrb[0].mxu0
        %1746 = vdwg.mxu0
        %1747 = vst.msk [vmem:[#allocation2] sm:$0xff] %vm1517, %v1697
        %1748 = vst.msk [vmem:[#allocation2 + $0x10] sm:$0xff] %vm1517, %v1700
        %1749 = vst.msk [vmem:[#allocation2 + $0x20] sm:$0xff] %vm1517, %v1741
        %1750 = vst.msk [vmem:[#allocation2 + $0x30] sm:$0xff] %vm1517, %v1744
        %1752 = vrot.lane.b32.xlu0 %v1505, 64
        %v1753 = vpop.permute.xlu0 %1752
        %1755 = vrot.lane.b32.xlu0 %v1507, 64
        %v1756 = vpop.permute.xlu0 %1755
        %v1758 = vsel %vm1517, %v1753, 0
        %v1761 = vsel %vm1517, %v1756, 0
        %1763 = vmatprep.subr.bf16.mxu0 0
        %1764 = vmatpush1.bf16.xpose.msra.mxu0 %v1761
        %1765 = vmatprep.subr.bf16.mxu0 0
        %1766 = vmatpush1.bf16.xpose.msra.mxu0 0
        %1767 = vmatprep.subr.bf16.mxu0 0
        %1768 = vmatpush1.bf16.xpose.msra.mxu0 0
        %1769 = vmatprep.subr.bf16.mxu0 0
        %1770 = vmatpush1.bf16.xpose.msra.mxu0 0
        %1771 = vmatprep.subr.bf16.mxu0 0
        %1772 = vmatpush1.bf16.xpose.msra.mxu0 0
        %1773 = vmatprep.subr.bf16.mxu0 0
        %1774 = vmatpush1.bf16.xpose.msra.mxu0 0
        %1775 = vmatprep.subr.bf16.mxu0 0
        %1776 = vmatpush1.bf16.xpose.msra.mxu0 0
        %1777 = vmatprep.subr.bf16.mxu0 0
        %1778 = vmatpush1.bf16.xpose.msra.mxu0 0
        %1779 = vmatprep.subr.bf16.mxu0 0
        %1780 = vmatpush1.bf16.xpose.msra.mxu0 0
        %1781 = vmatprep.subr.bf16.mxu0 0
        %1782 = vmatpush1.bf16.xpose.msra.mxu0 0
        %1783 = vmatprep.subr.bf16.mxu0 0
        %1784 = vmatpush1.bf16.xpose.msra.mxu0 0
        %1785 = vmatprep.subr.bf16.mxu0 0
        %1786 = vmatpush1.bf16.xpose.msra.mxu0 0
        %1787 = vmatprep.subr.bf16.mxu0 0
        %1788 = vmatpush1.bf16.xpose.msra.mxu0 0
        %1789 = vmatprep.subr.bf16.mxu0 0
        %1790 = vmatpush1.bf16.xpose.msra.mxu0 0
        %1791 = vmatprep.subr.bf16.mxu0 0
        %1792 = vmatpush1.bf16.xpose.msra.mxu0 0
        %1793 = vmatprep.subr.bf16.mxu0 0
        %1794 = vmatpush1.bf16.xpose.msra.mxu0 0
        %1795 = vmatprep.mubr.bf16.mxu0 0
        %1796 = vmatmul.mubr.bf16.gmra.mrb[0].mxu0 %v1758
        %v1797 = vpop.f32.mrb[0].mxu0
        %v1798 = vadd.f32 0.0, %v1797
        %v1799 = vpop.f32.mrb[0].mxu0
        %v1800 = vpop.f32.mrb[0].mxu0
        %v1801 = vadd.f32 0.0, %v1800
        %v1802 = vpop.f32.mrb[0].mxu0
        %1803 = vdwg.mxu0
        %1805 = vrot.lane.b32.xlu0 %v1511, 64
        %v1806 = vpop.permute.xlu0 %1805
        %1808 = vrot.lane.b32.xlu0 %v1513, 64
        %v1809 = vpop.permute.xlu0 %1808
        %v1811 = vsel %vm1517, %v1806, 0
        %v1814 = vsel %vm1517, %v1809, 0
        %1816 = vmatprep.subr.bf16.mxu0 0
        %1817 = vmatpush1.bf16.xpose.msra.mxu0 %v1814
        %1818 = vmatprep.subr.bf16.mxu0 0
        %1819 = vmatpush1.bf16.xpose.msra.mxu0 0
        %1820 = vmatprep.subr.bf16.mxu0 0
        %1821 = vmatpush1.bf16.xpose.msra.mxu0 0
        %1822 = vmatprep.subr.bf16.mxu0 0
        %1823 = vmatpush1.bf16.xpose.msra.mxu0 0
        %1824 = vmatprep.subr.bf16.mxu0 0
        %1825 = vmatpush1.bf16.xpose.msra.mxu0 0
        %1826 = vmatprep.subr.bf16.mxu0 0
        %1827 = vmatpush1.bf16.xpose.msra.mxu0 0
        %1828 = vmatprep.subr.bf16.mxu0 0
        %1829 = vmatpush1.bf16.xpose.msra.mxu0 0
        %1830 = vmatprep.subr.bf16.mxu0 0
        %1831 = vmatpush1.bf16.xpose.msra.mxu0 0
        %1832 = vmatprep.subr.bf16.mxu0 0
        %1833 = vmatpush1.bf16.xpose.msra.mxu0 0
        %1834 = vmatprep.subr.bf16.mxu0 0
        %1835 = vmatpush1.bf16.xpose.msra.mxu0 0
        %1836 = vmatprep.subr.bf16.mxu0 0
        %1837 = vmatpush1.bf16.xpose.msra.mxu0 0
        %1838 = vmatprep.subr.bf16.mxu0 0
        %1839 = vmatpush1.bf16.xpose.msra.mxu0 0
        %1840 = vmatprep.subr.bf16.mxu0 0
        %1841 = vmatpush1.bf16.xpose.msra.mxu0 0
        %1842 = vmatprep.subr.bf16.mxu0 0
        %1843 = vmatpush1.bf16.xpose.msra.mxu0 0
        %1844 = vmatprep.subr.bf16.mxu0 0
        %1845 = vmatpush1.bf16.xpose.msra.mxu0 0
        %1846 = vmatprep.subr.bf16.mxu0 0
        %1847 = vmatpush1.bf16.xpose.msra.mxu0 0
        %1848 = vmatprep.mubr.bf16.mxu0 0
        %1849 = vmatmul.mubr.bf16.gmra.mrb[0].mxu0 %v1811
        %v1850 = vpop.f32.mrb[0].mxu0
        %v1851 = vadd.f32 0.0, %v1850
        %v1852 = vpop.f32.mrb[0].mxu0
        %v1853 = vpop.f32.mrb[0].mxu0
        %v1854 = vadd.f32 0.0, %v1853
        %v1855 = vpop.f32.mrb[0].mxu0
        %1856 = vdwg.mxu0
        %v1857 = vsel %vm1612, %v1798, -inf
        %1858 = vmax.xlane.f32.xlu0 %v1857
        %v1859 = vpop.xlane.xlu0 %1858
        %v1860 = vsel %vm1612, %v1801, -inf
        %1861 = vmax.xlane.f32.xlu0 %v1860
        %v1862 = vpop.xlane.xlu0 %1861
        %v1863 = vsel %vm1612, %v1851, -inf
        %1864 = vmax.xlane.f32.xlu0 %v1863
        %v1865 = vpop.xlane.xlu0 %1864
        %v1866 = vsel %vm1612, %v1854, -inf
        %1867 = vmax.xlane.f32.xlu0 %v1866
        %v1868 = vpop.xlane.xlu0 %1867
        %v1869 = vsub.f32 %v1798, %v1859
        %v1870 = vsub.f32 %v1801, %v1862
        %v1871 = vsub.f32 %v1851, %v1865
        %v1872 = vsub.f32 %v1854, %v1868
        %v1873 = vmul.f32 %v1869, 1.442695
        %v1874 = vpow.pop %v1873
        %v1875 = vmul.f32 %v1870, 1.442695
        %v1876 = vpow.pop %v1875
        %v1877 = vmul.f32 %v1871, 1.442695
        %v1878 = vpow.pop %v1877
        %v1879 = vmul.f32 %v1872, 1.442695
        %v1880 = vpow.pop %v1879
        %v1881 = vsel %vm1612, %v1874, 0.0
        %1882 = vadd.xlane.f32.xlu0 %v1881
        %v1883 = vpop.xlane.xlu0 %1882
        %v1884 = vsel %vm1612, %v1876, 0.0
        %1885 = vadd.xlane.f32.xlu0 %v1884
        %v1886 = vpop.xlane.xlu0 %1885
        %v1887 = vsel %vm1612, %v1878, 0.0
        %1888 = vadd.xlane.f32.xlu0 %v1887
        %v1889 = vpop.xlane.xlu0 %1888
        %v1890 = vsel %vm1612, %v1880, 0.0
        %1891 = vadd.xlane.f32.xlu0 %v1890
        %v1892 = vpop.xlane.xlu0 %1891
        %v1893 = vrcp.pop %v1883
        %v1894 = vrcp.pop %v1886
        %v1895 = vrcp.pop %v1889
        %v1896 = vrcp.pop %v1892
        %v1897 = vmul.f32 %v1874, %v1893
        %v1898 = vmul.f32 %v1876, %v1894
        %v1899 = vmul.f32 %v1878, %v1895
        %v1900 = vmul.f32 %v1880, %v1896
        %v1901 = vpack.c.bf16 %v1898, %v1897
        %v1902 = vpack.c.bf16 %v1900, %v1899
        %1904 = vrot.lane.b32.xlu0 %v1509, 64
        %v1905 = vpop.permute.xlu0 %1904
        %v1908 = vsel %vm1612, %v1901, 0
        %1910 = vmatprep.subr.bf16.mxu0 0
        %1911 = vmatpush1.bf16.msra.mxu0 %v1905
        %1912 = vmatprep.subr.bf16.mxu0 0
        %1913 = vmatpush1.bf16.msra.mxu0 0
        %1914 = vmatprep.subr.bf16.mxu0 0
        %1915 = vmatpush1.bf16.msra.mxu0 0
        %1916 = vmatprep.subr.bf16.mxu0 0
        %1917 = vmatpush1.bf16.msra.mxu0 0
        %1918 = vmatprep.subr.bf16.mxu0 0
        %1919 = vmatpush1.bf16.msra.mxu0 0
        %1920 = vmatprep.subr.bf16.mxu0 0
        %1921 = vmatpush1.bf16.msra.mxu0 0
        %1922 = vmatprep.subr.bf16.mxu0 0
        %1923 = vmatpush1.bf16.msra.mxu0 0
        %1924 = vmatprep.subr.bf16.mxu0 0
        %1925 = vmatpush1.bf16.msra.mxu0 0
        %1926 = vmatprep.subr.bf16.mxu0 0
        %1927 = vmatpush1.bf16.msra.mxu0 0
        %1928 = vmatprep.subr.bf16.mxu0 0
        %1929 = vmatpush1.bf16.msra.mxu0 0
        %1930 = vmatprep.subr.bf16.mxu0 0
        %1931 = vmatpush1.bf16.msra.mxu0 0
        %1932 = vmatprep.subr.bf16.mxu0 0
        %1933 = vmatpush1.bf16.msra.mxu0 0
        %1934 = vmatprep.subr.bf16.mxu0 0
        %1935 = vmatpush1.bf16.msra.mxu0 0
        %1936 = vmatprep.subr.bf16.mxu0 0
        %1937 = vmatpush1.bf16.msra.mxu0 0
        %1938 = vmatprep.subr.bf16.mxu0 0
        %1939 = vmatpush1.bf16.msra.mxu0 0
        %1940 = vmatprep.subr.bf16.mxu0 0
        %1941 = vmatpush1.bf16.msra.mxu0 0
        %1942 = vmatprep.mubr.bf16.mxu0 0
        %1943 = vmatmul.mubr.bf16.gmra.mrb[0].mxu0 %v1908
        %v1944 = vpop.f32.mrb[0].mxu0
        %v1945 = vadd.f32 0.0, %v1944
        %v1946 = vpop.f32.mrb[0].mxu0
        %v1947 = vpop.f32.mrb[0].mxu0
        %v1948 = vadd.f32 0.0, %v1947
        %v1949 = vpop.f32.mrb[0].mxu0
        %1950 = vdwg.mxu0
        %1952 = vrot.lane.b32.xlu0 %v1515, 64
        %v1953 = vpop.permute.xlu0 %1952
        %v1956 = vsel %vm1612, %v1902, 0
        %1958 = vmatprep.subr.bf16.mxu0 0
        %1959 = vmatpush1.bf16.msra.mxu0 %v1953
        %1960 = vmatprep.subr.bf16.mxu0 0
        %1961 = vmatpush1.bf16.msra.mxu0 0
        %1962 = vmatprep.subr.bf16.mxu0 0
        %1963 = vmatpush1.bf16.msra.mxu0 0
        %1964 = vmatprep.subr.bf16.mxu0 0
        %1965 = vmatpush1.bf16.msra.mxu0 0
        %1966 = vmatprep.subr.bf16.mxu0 0
        %1967 = vmatpush1.bf16.msra.mxu0 0
        %1968 = vmatprep.subr.bf16.mxu0 0
        %1969 = vmatpush1.bf16.msra.mxu0 0
        %1970 = vmatprep.subr.bf16.mxu0 0
        %1971 = vmatpush1.bf16.msra.mxu0 0
        %1972 = vmatprep.subr.bf16.mxu0 0
        %1973 = vmatpush1.bf16.msra.mxu0 0
        %1974 = vmatprep.subr.bf16.mxu0 0
        %1975 = vmatpush1.bf16.msra.mxu0 0
        %1976 = vmatprep.subr.bf16.mxu0 0
        %1977 = vmatpush1.bf16.msra.mxu0 0
        %1978 = vmatprep.subr.bf16.mxu0 0
        %1979 = vmatpush1.bf16.msra.mxu0 0
        %1980 = vmatprep.subr.bf16.mxu0 0
        %1981 = vmatpush1.bf16.msra.mxu0 0
        %1982 = vmatprep.subr.bf16.mxu0 0
        %1983 = vmatpush1.bf16.msra.mxu0 0
        %1984 = vmatprep.subr.bf16.mxu0 0
        %1985 = vmatpush1.bf16.msra.mxu0 0
        %1986 = vmatprep.subr.bf16.mxu0 0
        %1987 = vmatpush1.bf16.msra.mxu0 0
        %1988 = vmatprep.subr.bf16.mxu0 0
        %1989 = vmatpush1.bf16.msra.mxu0 0
        %1990 = vmatprep.mubr.bf16.mxu0 0
        %1991 = vmatmul.mubr.bf16.gmra.mrb[0].mxu0 %v1956
        %v1992 = vpop.f32.mrb[0].mxu0
        %v1993 = vadd.f32 0.0, %v1992
        %v1994 = vpop.f32.mrb[0].mxu0
        %v1995 = vpop.f32.mrb[0].mxu0
        %v1996 = vadd.f32 0.0, %v1995
        %v1997 = vpop.f32.mrb[0].mxu0
        %1998 = vdwg.mxu0
        %2003 = vrot.lane.b32.xlu0 %v1945, 64
        %v2004 = vpop.permute.xlu0 %2003
        %2005 = vrot.lane.b32.xlu0 %v1948, 64
        %v2006 = vpop.permute.xlu0 %2005
        %2007 = vrot.lane.b32.xlu0 %v1993, 64
        %v2008 = vpop.permute.xlu0 %2007
        %2009 = vrot.lane.b32.xlu0 %v1996, 64
        %v2010 = vpop.permute.xlu0 %2009
        %vm2015 = vcmask 1048064
        %2016 = vst.msk [vmem:[#allocation2] sm:$0xff] %vm2015, %v2004
        %2017 = vst.msk [vmem:[#allocation2 + $0x10] sm:$0xff] %vm2015, %v2006
        %2018 = vst.msk [vmem:[#allocation2 + $0x20] sm:$0xff] %vm2015, %v2008
        %2019 = vst.msk [vmem:[#allocation2 + $0x30] sm:$0xff] %vm2015, %v2010
        %v2021 = vsel %vm1517, %v1506, 0
        %v2024 = vsel %vm1517, %v1508, 0
        %2026 = vmatprep.subr.bf16.mxu0 0
        %2027 = vmatpush1.bf16.xpose.msra.mxu0 %v2024
        %2028 = vmatprep.subr.bf16.mxu0 0
        %2029 = vmatpush1.bf16.xpose.msra.mxu0 0
        %2030 = vmatprep.subr.bf16.mxu0 0
        %2031 = vmatpush1.bf16.xpose.msra.mxu0 0
        %2032 = vmatprep.subr.bf16.mxu0 0
        %2033 = vmatpush1.bf16.xpose.msra.mxu0 0
        %2034 = vmatprep.subr.bf16.mxu0 0
        %2035 = vmatpush1.bf16.xpose.msra.mxu0 0
        %2036 = vmatprep.subr.bf16.mxu0 0
        %2037 = vmatpush1.bf16.xpose.msra.mxu0 0
        %2038 = vmatprep.subr.bf16.mxu0 0
        %2039 = vmatpush1.bf16.xpose.msra.mxu0 0
        %2040 = vmatprep.subr.bf16.mxu0 0
        %2041 = vmatpush1.bf16.xpose.msra.mxu0 0
        %2042 = vmatprep.subr.bf16.mxu0 0
        %2043 = vmatpush1.bf16.xpose.msra.mxu0 0
        %2044 = vmatprep.subr.bf16.mxu0 0
        %2045 = vmatpush1.bf16.xpose.msra.mxu0 0
        %2046 = vmatprep.subr.bf16.mxu0 0
        %2047 = vmatpush1.bf16.xpose.msra.mxu0 0
        %2048 = vmatprep.subr.bf16.mxu0 0
        %2049 = vmatpush1.bf16.xpose.msra.mxu0 0
        %2050 = vmatprep.subr.bf16.mxu0 0
        %2051 = vmatpush1.bf16.xpose.msra.mxu0 0
        %2052 = vmatprep.subr.bf16.mxu0 0
        %2053 = vmatpush1.bf16.xpose.msra.mxu0 0
        %2054 = vmatprep.subr.bf16.mxu0 0
        %2055 = vmatpush1.bf16.xpose.msra.mxu0 0
        %2056 = vmatprep.subr.bf16.mxu0 0
        %2057 = vmatpush1.bf16.xpose.msra.mxu0 0
        %2058 = vmatprep.mubr.bf16.mxu0 0
        %2059 = vmatmul.mubr.bf16.gmra.mrb[0].mxu0 %v2021
        %v2060 = vpop.f32.mrb[0].mxu0
        %v2061 = vadd.f32 0.0, %v2060
        %v2062 = vpop.f32.mrb[0].mxu0
        %v2063 = vpop.f32.mrb[0].mxu0
        %v2064 = vadd.f32 0.0, %v2063
        %v2065 = vpop.f32.mrb[0].mxu0
        %2066 = vdwg.mxu0
        %v2068 = vsel %vm1517, %v1512, 0
        %v2071 = vsel %vm1517, %v1514, 0
        %2073 = vmatprep.subr.bf16.mxu0 0
        %2074 = vmatpush1.bf16.xpose.msra.mxu0 %v2071
        %2075 = vmatprep.subr.bf16.mxu0 0
        %2076 = vmatpush1.bf16.xpose.msra.mxu0 0
        %2077 = vmatprep.subr.bf16.mxu0 0
        %2078 = vmatpush1.bf16.xpose.msra.mxu0 0
        %2079 = vmatprep.subr.bf16.mxu0 0
        %2080 = vmatpush1.bf16.xpose.msra.mxu0 0
        %2081 = vmatprep.subr.bf16.mxu0 0
        %2082 = vmatpush1.bf16.xpose.msra.mxu0 0
        %2083 = vmatprep.subr.bf16.mxu0 0
        %2084 = vmatpush1.bf16.xpose.msra.mxu0 0
        %2085 = vmatprep.subr.bf16.mxu0 0
        %2086 = vmatpush1.bf16.xpose.msra.mxu0 0
        %2087 = vmatprep.subr.bf16.mxu0 0
        %2088 = vmatpush1.bf16.xpose.msra.mxu0 0
        %2089 = vmatprep.subr.bf16.mxu0 0
        %2090 = vmatpush1.bf16.xpose.msra.mxu0 0
        %2091 = vmatprep.subr.bf16.mxu0 0
        %2092 = vmatpush1.bf16.xpose.msra.mxu0 0
        %2093 = vmatprep.subr.bf16.mxu0 0
        %2094 = vmatpush1.bf16.xpose.msra.mxu0 0
        %2095 = vmatprep.subr.bf16.mxu0 0
        %2096 = vmatpush1.bf16.xpose.msra.mxu0 0
        %2097 = vmatprep.subr.bf16.mxu0 0
        %2098 = vmatpush1.bf16.xpose.msra.mxu0 0
        %2099 = vmatprep.subr.bf16.mxu0 0
        %2100 = vmatpush1.bf16.xpose.msra.mxu0 0
        %2101 = vmatprep.subr.bf16.mxu0 0
        %2102 = vmatpush1.bf16.xpose.msra.mxu0 0
        %2103 = vmatprep.subr.bf16.mxu0 0
        %2104 = vmatpush1.bf16.xpose.msra.mxu0 0
        %2105 = vmatprep.mubr.bf16.mxu0 0
        %2106 = vmatmul.mubr.bf16.gmra.mrb[0].mxu0 %v2068
        %v2107 = vpop.f32.mrb[0].mxu0
        %v2108 = vadd.f32 0.0, %v2107
        %v2109 = vpop.f32.mrb[0].mxu0
        %v2110 = vpop.f32.mrb[0].mxu0
        %v2111 = vadd.f32 0.0, %v2110
        %v2112 = vpop.f32.mrb[0].mxu0
        %2113 = vdwg.mxu0
        %v2114 = vsel %vm1612, %v2061, -inf
        %2115 = vmax.xlane.f32.xlu0 %v2114
        %v2116 = vpop.xlane.xlu0 %2115
        %v2117 = vsel %vm1612, %v2064, -inf
        %2118 = vmax.xlane.f32.xlu0 %v2117
        %v2119 = vpop.xlane.xlu0 %2118
        %v2120 = vsel %vm1612, %v2108, -inf
        %2121 = vmax.xlane.f32.xlu0 %v2120
        %v2122 = vpop.xlane.xlu0 %2121
        %v2123 = vsel %vm1612, %v2111, -inf
        %2124 = vmax.xlane.f32.xlu0 %v2123
        %v2125 = vpop.xlane.xlu0 %2124
        %v2126 = vsub.f32 %v2061, %v2116
        %v2127 = vsub.f32 %v2064, %v2119
        %v2128 = vsub.f32 %v2108, %v2122
        %v2129 = vsub.f32 %v2111, %v2125
        %v2130 = vmul.f32 %v2126, 1.442695
        %v2131 = vpow.pop %v2130
        %v2132 = vmul.f32 %v2127, 1.442695
        %v2133 = vpow.pop %v2132
        %v2134 = vmul.f32 %v2128, 1.442695
        %v2135 = vpow.pop %v2134
        %v2136 = vmul.f32 %v2129, 1.442695
        %v2137 = vpow.pop %v2136
        %v2138 = vsel %vm1612, %v2131, 0.0
        %2139 = vadd.xlane.f32.xlu0 %v2138
        %v2140 = vpop.xlane.xlu0 %2139
        %v2141 = vsel %vm1612, %v2133, 0.0
        %2142 = vadd.xlane.f32.xlu0 %v2141
        %v2143 = vpop.xlane.xlu0 %2142
        %v2144 = vsel %vm1612, %v2135, 0.0
        %2145 = vadd.xlane.f32.xlu0 %v2144
        %v2146 = vpop.xlane.xlu0 %2145
        %v2147 = vsel %vm1612, %v2137, 0.0
        %2148 = vadd.xlane.f32.xlu0 %v2147
        %v2149 = vpop.xlane.xlu0 %2148
        %v2150 = vrcp.pop %v2140
        %v2151 = vrcp.pop %v2143
        %v2152 = vrcp.pop %v2146
        %v2153 = vrcp.pop %v2149
        %v2154 = vmul.f32 %v2131, %v2150
        %v2155 = vmul.f32 %v2133, %v2151
        %v2156 = vmul.f32 %v2135, %v2152
        %v2157 = vmul.f32 %v2137, %v2153
        %v2158 = vpack.c.bf16 %v2155, %v2154
        %v2159 = vpack.c.bf16 %v2157, %v2156
        %v2161 = vsel %vm1612, %v2158, 0
        %2163 = vmatprep.subr.bf16.mxu0 0
        %2164 = vmatpush1.bf16.msra.mxu0 %v1510
        %2165 = vmatprep.subr.bf16.mxu0 0
        %2166 = vmatpush1.bf16.msra.mxu0 0
        %2167 = vmatprep.subr.bf16.mxu0 0
        %2168 = vmatpush1.bf16.msra.mxu0 0
        %2169 = vmatprep.subr.bf16.mxu0 0
        %2170 = vmatpush1.bf16.msra.mxu0 0
        %2171 = vmatprep.subr.bf16.mxu0 0
        %2172 = vmatpush1.bf16.msra.mxu0 0
        %2173 = vmatprep.subr.bf16.mxu0 0
        %2174 = vmatpush1.bf16.msra.mxu0 0
        %2175 = vmatprep.subr.bf16.mxu0 0
        %2176 = vmatpush1.bf16.msra.mxu0 0
        %2177 = vmatprep.subr.bf16.mxu0 0
        %2178 = vmatpush1.bf16.msra.mxu0 0
        %2179 = vmatprep.subr.bf16.mxu0 0
        %2180 = vmatpush1.bf16.msra.mxu0 0
        %2181 = vmatprep.subr.bf16.mxu0 0
        %2182 = vmatpush1.bf16.msra.mxu0 0
        %2183 = vmatprep.subr.bf16.mxu0 0
        %2184 = vmatpush1.bf16.msra.mxu0 0
        %2185 = vmatprep.subr.bf16.mxu0 0
        %2186 = vmatpush1.bf16.msra.mxu0 0
        %2187 = vmatprep.subr.bf16.mxu0 0
        %2188 = vmatpush1.bf16.msra.mxu0 0
        %2189 = vmatprep.subr.bf16.mxu0 0
        %2190 = vmatpush1.bf16.msra.mxu0 0
        %2191 = vmatprep.subr.bf16.mxu0 0
        %2192 = vmatpush1.bf16.msra.mxu0 0
        %2193 = vmatprep.subr.bf16.mxu0 0
        %2194 = vmatpush1.bf16.msra.mxu0 0
        %2195 = vmatprep.mubr.bf16.mxu0 0
        %2196 = vmatmul.mubr.bf16.gmra.mrb[0].mxu0 %v2161
        %v2197 = vpop.f32.mrb[0].mxu0
        %v2198 = vadd.f32 0.0, %v2197
        %v2199 = vpop.f32.mrb[0].mxu0
        %v2200 = vpop.f32.mrb[0].mxu0
        %v2201 = vadd.f32 0.0, %v2200
        %v2202 = vpop.f32.mrb[0].mxu0
        %2203 = vdwg.mxu0
        %v2205 = vsel %vm1612, %v2159, 0
        %2207 = vmatprep.subr.bf16.mxu0 0
        %2208 = vmatpush1.bf16.msra.mxu0 %v1516
        %2209 = vmatprep.subr.bf16.mxu0 0
        %2210 = vmatpush1.bf16.msra.mxu0 0
        %2211 = vmatprep.subr.bf16.mxu0 0
        %2212 = vmatpush1.bf16.msra.mxu0 0
        %2213 = vmatprep.subr.bf16.mxu0 0
        %2214 = vmatpush1.bf16.msra.mxu0 0
        %2215 = vmatprep.subr.bf16.mxu0 0
        %2216 = vmatpush1.bf16.msra.mxu0 0
        %2217 = vmatprep.subr.bf16.mxu0 0
        %2218 = vmatpush1.bf16.msra.mxu0 0
        %2219 = vmatprep.subr.bf16.mxu0 0
        %2220 = vmatpush1.bf16.msra.mxu0 0
        %2221 = vmatprep.subr.bf16.mxu0 0
        %2222 = vmatpush1.bf16.msra.mxu0 0
        %2223 = vmatprep.subr.bf16.mxu0 0
        %2224 = vmatpush1.bf16.msra.mxu0 0
        %2225 = vmatprep.subr.bf16.mxu0 0
        %2226 = vmatpush1.bf16.msra.mxu0 0
        %2227 = vmatprep.subr.bf16.mxu0 0
        %2228 = vmatpush1.bf16.msra.mxu0 0
        %2229 = vmatprep.subr.bf16.mxu0 0
        %2230 = vmatpush1.bf16.msra.mxu0 0
        %2231 = vmatprep.subr.bf16.mxu0 0
        %2232 = vmatpush1.bf16.msra.mxu0 0
        %2233 = vmatprep.subr.bf16.mxu0 0
        %2234 = vmatpush1.bf16.msra.mxu0 0
        %2235 = vmatprep.subr.bf16.mxu0 0
        %2236 = vmatpush1.bf16.msra.mxu0 0
        %2237 = vmatprep.subr.bf16.mxu0 0
        %2238 = vmatpush1.bf16.msra.mxu0 0
        %2239 = vmatprep.mubr.bf16.mxu0 0
        %2240 = vmatmul.mubr.bf16.gmra.mrb[0].mxu0 %v2205
        %v2241 = vpop.f32.mrb[0].mxu0
        %v2242 = vadd.f32 0.0, %v2241
        %v2243 = vpop.f32.mrb[0].mxu0
        %v2244 = vpop.f32.mrb[0].mxu0
        %v2245 = vadd.f32 0.0, %v2244
        %v2246 = vpop.f32.mrb[0].mxu0
        %2247 = vdwg.mxu0
        %2248 = vst.msk [vmem:[#allocation2 + $0x8] sm:$0xff] %vm1517, %v2198
        %2249 = vst.msk [vmem:[#allocation2 + $0x18] sm:$0xff] %vm1517, %v2201
        %2250 = vst.msk [vmem:[#allocation2 + $0x28] sm:$0xff] %vm1517, %v2242
        %2251 = vst.msk [vmem:[#allocation2 + $0x38] sm:$0xff] %vm1517, %v2245
        %2253 = vrot.lane.b32.xlu0 %v1506, 64
        %v2254 = vpop.permute.xlu0 %2253
        %2256 = vrot.lane.b32.xlu0 %v1508, 64
        %v2257 = vpop.permute.xlu0 %2256
        %v2259 = vsel %vm1517, %v2254, 0
        %v2262 = vsel %vm1517, %v2257, 0
        %2264 = vmatprep.subr.bf16.mxu0 0
        %2265 = vmatpush1.bf16.xpose.msra.mxu0 %v2262
        %2266 = vmatprep.subr.bf16.mxu0 0
        %2267 = vmatpush1.bf16.xpose.msra.mxu0 0
        %2268 = vmatprep.subr.bf16.mxu0 0
        %2269 = vmatpush1.bf16.xpose.msra.mxu0 0
        %2270 = vmatprep.subr.bf16.mxu0 0
        %2271 = vmatpush1.bf16.xpose.msra.mxu0 0
        %2272 = vmatprep.subr.bf16.mxu0 0
        %2273 = vmatpush1.bf16.xpose.msra.mxu0 0
        %2274 = vmatprep.subr.bf16.mxu0 0
        %2275 = vmatpush1.bf16.xpose.msra.mxu0 0
        %2276 = vmatprep.subr.bf16.mxu0 0
        %2277 = vmatpush1.bf16.xpose.msra.mxu0 0
        %2278 = vmatprep.subr.bf16.mxu0 0
        %2279 = vmatpush1.bf16.xpose.msra.mxu0 0
        %2280 = vmatprep.subr.bf16.mxu0 0
        %2281 = vmatpush1.bf16.xpose.msra.mxu0 0
        %2282 = vmatprep.subr.bf16.mxu0 0
        %2283 = vmatpush1.bf16.xpose.msra.mxu0 0
        %2284 = vmatprep.subr.bf16.mxu0 0
        %2285 = vmatpush1.bf16.xpose.msra.mxu0 0
        %2286 = vmatprep.subr.bf16.mxu0 0
        %2287 = vmatpush1.bf16.xpose.msra.mxu0 0
        %2288 = vmatprep.subr.bf16.mxu0 0
        %2289 = vmatpush1.bf16.xpose.msra.mxu0 0
        %2290 = vmatprep.subr.bf16.mxu0 0
        %2291 = vmatpush1.bf16.xpose.msra.mxu0 0
        %2292 = vmatprep.subr.bf16.mxu0 0
        %2293 = vmatpush1.bf16.xpose.msra.mxu0 0
        %2294 = vmatprep.subr.bf16.mxu0 0
        %2295 = vmatpush1.bf16.xpose.msra.mxu0 0
        %2296 = vmatprep.mubr.bf16.mxu0 0
        %2297 = vmatmul.mubr.bf16.gmra.mrb[0].mxu0 %v2259
        %v2298 = vpop.f32.mrb[0].mxu0
        %v2299 = vadd.f32 0.0, %v2298
        %v2300 = vpop.f32.mrb[0].mxu0
        %v2301 = vpop.f32.mrb[0].mxu0
        %v2302 = vadd.f32 0.0, %v2301
        %v2303 = vpop.f32.mrb[0].mxu0
        %2304 = vdwg.mxu0
        %2306 = vrot.lane.b32.xlu0 %v1512, 64
        %v2307 = vpop.permute.xlu0 %2306
        %2309 = vrot.lane.b32.xlu0 %v1514, 64
        %v2310 = vpop.permute.xlu0 %2309
        %v2312 = vsel %vm1517, %v2307, 0
        %v2315 = vsel %vm1517, %v2310, 0
        %2317 = vmatprep.subr.bf16.mxu0 0
        %2318 = vmatpush1.bf16.xpose.msra.mxu0 %v2315
        %2319 = vmatprep.subr.bf16.mxu0 0
        %2320 = vmatpush1.bf16.xpose.msra.mxu0 0
        %2321 = vmatprep.subr.bf16.mxu0 0
        %2322 = vmatpush1.bf16.xpose.msra.mxu0 0
        %2323 = vmatprep.subr.bf16.mxu0 0
        %2324 = vmatpush1.bf16.xpose.msra.mxu0 0
        %2325 = vmatprep.subr.bf16.mxu0 0
        %2326 = vmatpush1.bf16.xpose.msra.mxu0 0
        %2327 = vmatprep.subr.bf16.mxu0 0
        %2328 = vmatpush1.bf16.xpose.msra.mxu0 0
        %2329 = vmatprep.subr.bf16.mxu0 0
        %2330 = vmatpush1.bf16.xpose.msra.mxu0 0
        %2331 = vmatprep.subr.bf16.mxu0 0
        %2332 = vmatpush1.bf16.xpose.msra.mxu0 0
        %2333 = vmatprep.subr.bf16.mxu0 0
        %2334 = vmatpush1.bf16.xpose.msra.mxu0 0
        %2335 = vmatprep.subr.bf16.mxu0 0
        %2336 = vmatpush1.bf16.xpose.msra.mxu0 0
        %2337 = vmatprep.subr.bf16.mxu0 0
        %2338 = vmatpush1.bf16.xpose.msra.mxu0 0
        %2339 = vmatprep.subr.bf16.mxu0 0
        %2340 = vmatpush1.bf16.xpose.msra.mxu0 0
        %2341 = vmatprep.subr.bf16.mxu0 0
        %2342 = vmatpush1.bf16.xpose.msra.mxu0 0
        %2343 = vmatprep.subr.bf16.mxu0 0
        %2344 = vmatpush1.bf16.xpose.msra.mxu0 0
        %2345 = vmatprep.subr.bf16.mxu0 0
        %2346 = vmatpush1.bf16.xpose.msra.mxu0 0
        %2347 = vmatprep.subr.bf16.mxu0 0
        %2348 = vmatpush1.bf16.xpose.msra.mxu0 0
        %2349 = vmatprep.mubr.bf16.mxu0 0
        %2350 = vmatmul.mubr.bf16.gmra.mrb[0].mxu0 %v2312
        %v2351 = vpop.f32.mrb[0].mxu0
        %v2352 = vadd.f32 0.0, %v2351
        %v2353 = vpop.f32.mrb[0].mxu0
        %v2354 = vpop.f32.mrb[0].mxu0
        %v2355 = vadd.f32 0.0, %v2354
        %v2356 = vpop.f32.mrb[0].mxu0
        %2357 = vdwg.mxu0
        %v2358 = vsel %vm1612, %v2299, -inf
        %2359 = vmax.xlane.f32.xlu0 %v2358
        %v2360 = vpop.xlane.xlu0 %2359
        %v2361 = vsel %vm1612, %v2302, -inf
        %2362 = vmax.xlane.f32.xlu0 %v2361
        %v2363 = vpop.xlane.xlu0 %2362
        %v2364 = vsel %vm1612, %v2352, -inf
        %2365 = vmax.xlane.f32.xlu0 %v2364
        %v2366 = vpop.xlane.xlu0 %2365
        %v2367 = vsel %vm1612, %v2355, -inf
        %2368 = vmax.xlane.f32.xlu0 %v2367
        %v2369 = vpop.xlane.xlu0 %2368
        %v2370 = vsub.f32 %v2299, %v2360
        %v2371 = vsub.f32 %v2302, %v2363
        %v2372 = vsub.f32 %v2352, %v2366
        %v2373 = vsub.f32 %v2355, %v2369
        %v2374 = vmul.f32 %v2370, 1.442695
        %v2375 = vpow.pop %v2374
        %v2376 = vmul.f32 %v2371, 1.442695
        %v2377 = vpow.pop %v2376
        %v2378 = vmul.f32 %v2372, 1.442695
        %v2379 = vpow.pop %v2378
        %v2380 = vmul.f32 %v2373, 1.442695
        %v2381 = vpow.pop %v2380
        %v2382 = vsel %vm1612, %v2375, 0.0
        %2383 = vadd.xlane.f32.xlu0 %v2382
        %v2384 = vpop.xlane.xlu0 %2383
        %v2385 = vsel %vm1612, %v2377, 0.0
        %2386 = vadd.xlane.f32.xlu0 %v2385
        %v2387 = vpop.xlane.xlu0 %2386
        %v2388 = vsel %vm1612, %v2379, 0.0
        %2389 = vadd.xlane.f32.xlu0 %v2388
        %v2390 = vpop.xlane.xlu0 %2389
        %v2391 = vsel %vm1612, %v2381, 0.0
        %2392 = vadd.xlane.f32.xlu0 %v2391
        %v2393 = vpop.xlane.xlu0 %2392
        %v2394 = vrcp.pop %v2384
        %v2395 = vrcp.pop %v2387
        %v2396 = vrcp.pop %v2390
        %v2397 = vrcp.pop %v2393
        %v2398 = vmul.f32 %v2375, %v2394
        %v2399 = vmul.f32 %v2377, %v2395
        %v2400 = vmul.f32 %v2379, %v2396
        %v2401 = vmul.f32 %v2381, %v2397
        %v2402 = vpack.c.bf16 %v2399, %v2398
        %v2403 = vpack.c.bf16 %v2401, %v2400
        %2405 = vrot.lane.b32.xlu0 %v1510, 64
        %v2406 = vpop.permute.xlu0 %2405
        %v2409 = vsel %vm1612, %v2402, 0
        %2411 = vmatprep.subr.bf16.mxu0 0
        %2412 = vmatpush1.bf16.msra.mxu0 %v2406
        %2413 = vmatprep.subr.bf16.mxu0 0
        %2414 = vmatpush1.bf16.msra.mxu0 0
        %2415 = vmatprep.subr.bf16.mxu0 0
        %2416 = vmatpush1.bf16.msra.mxu0 0
        %2417 = vmatprep.subr.bf16.mxu0 0
        %2418 = vmatpush1.bf16.msra.mxu0 0
        %2419 = vmatprep.subr.bf16.mxu0 0
        %2420 = vmatpush1.bf16.msra.mxu0 0
        %2421 = vmatprep.subr.bf16.mxu0 0
        %2422 = vmatpush1.bf16.msra.mxu0 0
        %2423 = vmatprep.subr.bf16.mxu0 0
        %2424 = vmatpush1.bf16.msra.mxu0 0
        %2425 = vmatprep.subr.bf16.mxu0 0
        %2426 = vmatpush1.bf16.msra.mxu0 0
        %2427 = vmatprep.subr.bf16.mxu0 0
        %2428 = vmatpush1.bf16.msra.mxu0 0
        %2429 = vmatprep.subr.bf16.mxu0 0
        %2430 = vmatpush1.bf16.msra.mxu0 0
        %2431 = vmatprep.subr.bf16.mxu0 0
        %2432 = vmatpush1.bf16.msra.mxu0 0
        %2433 = vmatprep.subr.bf16.mxu0 0
        %2434 = vmatpush1.bf16.msra.mxu0 0
        %2435 = vmatprep.subr.bf16.mxu0 0
        %2436 = vmatpush1.bf16.msra.mxu0 0
        %2437 = vmatprep.subr.bf16.mxu0 0
        %2438 = vmatpush1.bf16.msra.mxu0 0
        %2439 = vmatprep.subr.bf16.mxu0 0
        %2440 = vmatpush1.bf16.msra.mxu0 0
        %2441 = vmatprep.subr.bf16.mxu0 0
        %2442 = vmatpush1.bf16.msra.mxu0 0
        %2443 = vmatprep.mubr.bf16.mxu0 0
        %2444 = vmatmul.mubr.bf16.gmra.mrb[0].mxu0 %v2409
        %v2445 = vpop.f32.mrb[0].mxu0
        %v2446 = vadd.f32 0.0, %v2445
        %v2447 = vpop.f32.mrb[0].mxu0
        %v2448 = vpop.f32.mrb[0].mxu0
        %v2449 = vadd.f32 0.0, %v2448
        %v2450 = vpop.f32.mrb[0].mxu0
        %2451 = vdwg.mxu0
        %2453 = vrot.lane.b32.xlu0 %v1516, 64
        %v2454 = vpop.permute.xlu0 %2453
        %v2457 = vsel %vm1612, %v2403, 0
        %2459 = vmatprep.subr.bf16.mxu0 0
        %2460 = vmatpush1.bf16.msra.mxu0 %v2454
        %2461 = vmatprep.subr.bf16.mxu0 0
        %2462 = vmatpush1.bf16.msra.mxu0 0
        %2463 = vmatprep.subr.bf16.mxu0 0
        %2464 = vmatpush1.bf16.msra.mxu0 0
        %2465 = vmatprep.subr.bf16.mxu0 0
        %2466 = vmatpush1.bf16.msra.mxu0 0
        %2467 = vmatprep.subr.bf16.mxu0 0
        %2468 = vmatpush1.bf16.msra.mxu0 0
        %2469 = vmatprep.subr.bf16.mxu0 0
        %2470 = vmatpush1.bf16.msra.mxu0 0
        %2471 = vmatprep.subr.bf16.mxu0 0
        %2472 = vmatpush1.bf16.msra.mxu0 0
        %2473 = vmatprep.subr.bf16.mxu0 0
        %2474 = vmatpush1.bf16.msra.mxu0 0
        %2475 = vmatprep.subr.bf16.mxu0 0
        %2476 = vmatpush1.bf16.msra.mxu0 0
        %2477 = vmatprep.subr.bf16.mxu0 0
        %2478 = vmatpush1.bf16.msra.mxu0 0
        %2479 = vmatprep.subr.bf16.mxu0 0
        %2480 = vmatpush1.bf16.msra.mxu0 0
        %2481 = vmatprep.subr.bf16.mxu0 0
        %2482 = vmatpush1.bf16.msra.mxu0 0
        %2483 = vmatprep.subr.bf16.mxu0 0
        %2484 = vmatpush1.bf16.msra.mxu0 0
        %2485 = vmatprep.subr.bf16.mxu0 0
        %2486 = vmatpush1.bf16.msra.mxu0 0
        %2487 = vmatprep.subr.bf16.mxu0 0
        %2488 = vmatpush1.bf16.msra.mxu0 0
        %2489 = vmatprep.subr.bf16.mxu0 0
        %2490 = vmatpush1.bf16.msra.mxu0 0
        %2491 = vmatprep.mubr.bf16.mxu0 0
        %2492 = vmatmul.mubr.bf16.gmra.mrb[0].mxu0 %v2457
        %v2493 = vpop.f32.mrb[0].mxu0
        %v2494 = vadd.f32 0.0, %v2493
        %v2495 = vpop.f32.mrb[0].mxu0
        %v2496 = vpop.f32.mrb[0].mxu0
        %v2497 = vadd.f32 0.0, %v2496
        %v2498 = vpop.f32.mrb[0].mxu0
        %2499 = vdwg.mxu0
        %2504 = vrot.lane.b32.xlu0 %v2446, 64
        %v2505 = vpop.permute.xlu0 %2504
        %2506 = vrot.lane.b32.xlu0 %v2449, 64
        %v2507 = vpop.permute.xlu0 %2506
        %2508 = vrot.lane.b32.xlu0 %v2494, 64
        %v2509 = vpop.permute.xlu0 %2508
        %2510 = vrot.lane.b32.xlu0 %v2497, 64
        %v2511 = vpop.permute.xlu0 %2510
        %2516 = vst.msk [vmem:[#allocation2 + $0x8] sm:$0xff] %vm2015, %v2505
        %2517 = vst.msk [vmem:[#allocation2 + $0x18] sm:$0xff] %vm2015, %v2507
        %2518 = vst.msk [vmem:[#allocation2 + $0x28] sm:$0xff] %vm2015, %v2509
        %2519 = vst.msk [vmem:[#allocation2 + $0x38] sm:$0xff] %vm2015, %v2511
        %v2520 = vld [vmem:[#allocation2] sm:$0xff]
        %v2521 = vld [vmem:[#allocation2 + $0x8] sm:$0xff]
        %v2522 = vld [vmem:[#allocation2 + $0x10] sm:$0xff]
        %v2523 = vld [vmem:[#allocation2 + $0x18] sm:$0xff]
        %v2524 = vld [vmem:[#allocation2 + $0x20] sm:$0xff]
        %v2525 = vld [vmem:[#allocation2 + $0x28] sm:$0xff]
        %v2526 = vld [vmem:[#allocation2 + $0x30] sm:$0xff]
        %v2527 = vld [vmem:[#allocation2 + $0x38] sm:$0xff]
        %v2528 = vpack.c.bf16 %v2522, %v2520
        %v2529 = vpack.c.bf16 %v2523, %v2521
        %v2530 = vpack.c.bf16 %v2526, %v2524
        %v2531 = vpack.c.bf16 %v2527, %v2525
        %v2532 = vld [vmem:[#allocation12] sm:$0xff]
        %v2533 = vld [vmem:[#allocation12 + $0x8] sm:$0xff]
        %v2534 = vld [vmem:[#allocation12 + $0x10] sm:$0xff]
        %v2535 = vld [vmem:[#allocation12 + $0x18] sm:$0xff]
        %v2536 = vld [vmem:[#allocation12 + $0x20] sm:$0xff]
        %v2537 = vld [vmem:[#allocation12 + $0x28] sm:$0xff]
        %v2538 = vld [vmem:[#allocation12 + $0x30] sm:$0xff]
        %v2539 = vld [vmem:[#allocation12 + $0x38] sm:$0xff]
        %v2540 = vld [vmem:[#allocation12 + $0x40] sm:$0xff]
        %v2541 = vld [vmem:[#allocation12 + $0x48] sm:$0xff]
        %v2542 = vld [vmem:[#allocation12 + $0x50] sm:$0xff]
        %v2543 = vld [vmem:[#allocation12 + $0x58] sm:$0xff]
        %v2544 = vld [vmem:[#allocation12 + $0x60] sm:$0xff]
        %v2545 = vld [vmem:[#allocation12 + $0x68] sm:$0xff]
        %v2546 = vld [vmem:[#allocation12 + $0x70] sm:$0xff]
        %v2547 = vld [vmem:[#allocation12 + $0x78] sm:$0xff]
        %v2548 = vld [vmem:[#allocation12 + $0x80] sm:$0xff]
        %v2549 = vld [vmem:[#allocation12 + $0x88] sm:$0xff]
        %v2550 = vld [vmem:[#allocation12 + $0x90] sm:$0xff]
        %v2551 = vld [vmem:[#allocation12 + $0x98] sm:$0xff]
        %v2552 = vld [vmem:[#allocation12 + $0xa0] sm:$0xff]
        %v2553 = vld [vmem:[#allocation12 + $0xa8] sm:$0xff]
        %v2554 = vld [vmem:[#allocation12 + $0xb0] sm:$0xff]
        %v2555 = vld [vmem:[#allocation12 + $0xb8] sm:$0xff]
        %v2556 = vld [vmem:[#allocation12 + $0xc0] sm:$0xff]
        %v2557 = vld [vmem:[#allocation12 + $0xc8] sm:$0xff]
        %v2558 = vld [vmem:[#allocation12 + $0xd0] sm:$0xff]
        %v2559 = vld [vmem:[#allocation12 + $0xd8] sm:$0xff]
        %v2560 = vld [vmem:[#allocation12 + $0xe0] sm:$0xff]
        %v2561 = vld [vmem:[#allocation12 + $0xe8] sm:$0xff]
        %v2562 = vld [vmem:[#allocation12 + $0xf0] sm:$0xff]
        %v2563 = vld [vmem:[#allocation12 + $0xf8] sm:$0xff]
        %v2564 = vld [vmem:[#allocation14] sm:$0x3]
        %v2566 = vlaneseq
        %v2567 = vshrl.u32 %v2566, 7
        %v2568 = vsub.s32 0, %v2567
        %v2569 = vrot.slane %v2564, %v2568
        %v2570 = vlaneseq
        %v2571 = vshrl.u32 %v2570, 7
        %v2572 = vsub.s32 1, %v2571
        %v2573 = vrot.slane %v2564, %v2572
        %v2608 = vunpack.c.l.b16 %v2532
        %v2609 = vunpack.c.h.b16 %v2532
        %v2610 = vunpack.c.l.b16 %v2533
        %v2611 = vunpack.c.h.b16 %v2533
        %v2612 = vunpack.c.l.b16 %v2534
        %v2613 = vunpack.c.h.b16 %v2534
        %v2614 = vunpack.c.l.b16 %v2535
        %v2615 = vunpack.c.h.b16 %v2535
        %v2616 = vunpack.c.l.b16 %v2536
        %v2617 = vunpack.c.h.b16 %v2536
        %v2618 = vunpack.c.l.b16 %v2537
        %v2619 = vunpack.c.h.b16 %v2537
        %v2620 = vunpack.c.l.b16 %v2538
        %v2621 = vunpack.c.h.b16 %v2538
        %v2622 = vunpack.c.l.b16 %v2539
        %v2623 = vunpack.c.h.b16 %v2539
        %v2624 = vunpack.c.l.b16 %v2540
        %v2625 = vunpack.c.h.b16 %v2540
        %v2626 = vunpack.c.l.b16 %v2541
        %v2627 = vunpack.c.h.b16 %v2541
        %v2628 = vunpack.c.l.b16 %v2542
        %v2629 = vunpack.c.h.b16 %v2542
        %v2630 = vunpack.c.l.b16 %v2543
        %v2631 = vunpack.c.h.b16 %v2543
        %v2632 = vunpack.c.l.b16 %v2544
        %v2633 = vunpack.c.h.b16 %v2544
        %v2634 = vunpack.c.l.b16 %v2545
        %v2635 = vunpack.c.h.b16 %v2545
        %v2636 = vunpack.c.l.b16 %v2546
        %v2637 = vunpack.c.h.b16 %v2546
        %v2638 = vunpack.c.l.b16 %v2547
        %v2639 = vunpack.c.h.b16 %v2547
        %v2640 = vunpack.c.l.b16 %v2548
        %v2641 = vunpack.c.h.b16 %v2548
        %v2642 = vunpack.c.l.b16 %v2549
        %v2643 = vunpack.c.h.b16 %v2549
        %v2644 = vunpack.c.l.b16 %v2550
        %v2645 = vunpack.c.h.b16 %v2550
        %v2646 = vunpack.c.l.b16 %v2551
        %v2647 = vunpack.c.h.b16 %v2551
        %v2648 = vunpack.c.l.b16 %v2552
        %v2649 = vunpack.c.h.b16 %v2552
        %v2650 = vunpack.c.l.b16 %v2553
        %v2651 = vunpack.c.h.b16 %v2553
        %v2652 = vunpack.c.l.b16 %v2554
        %v2653 = vunpack.c.h.b16 %v2554
        %v2654 = vunpack.c.l.b16 %v2555
        %v2655 = vunpack.c.h.b16 %v2555
        %v2656 = vunpack.c.l.b16 %v2556
        %v2657 = vunpack.c.h.b16 %v2556
        %v2658 = vunpack.c.l.b16 %v2557
        %v2659 = vunpack.c.h.b16 %v2557
        %v2660 = vunpack.c.l.b16 %v2558
        %v2661 = vunpack.c.h.b16 %v2558
        %v2662 = vunpack.c.l.b16 %v2559
        %v2663 = vunpack.c.h.b16 %v2559
        %v2664 = vunpack.c.l.b16 %v2560
        %v2665 = vunpack.c.h.b16 %v2560
        %v2666 = vunpack.c.l.b16 %v2561
        %v2667 = vunpack.c.h.b16 %v2561
        %v2668 = vunpack.c.l.b16 %v2562
        %v2669 = vunpack.c.h.b16 %v2562
        %v2670 = vunpack.c.l.b16 %v2563
        %v2671 = vunpack.c.h.b16 %v2563
        %v2672 = vpack.c.b16 %v2610, %v2608
        %v2673 = vpack.c.b16 %v2611, %v2609
        %v2674 = vpack.c.b16 %v2614, %v2612
        %v2675 = vpack.c.b16 %v2615, %v2613
        %v2676 = vpack.c.b16 %v2618, %v2616
        %v2677 = vpack.c.b16 %v2619, %v2617
        %v2678 = vpack.c.b16 %v2622, %v2620
        %v2679 = vpack.c.b16 %v2623, %v2621
        %v2680 = vpack.c.b16 %v2626, %v2624
        %v2681 = vpack.c.b16 %v2627, %v2625
        %v2682 = vpack.c.b16 %v2630, %v2628
        %v2683 = vpack.c.b16 %v2631, %v2629
        %v2684 = vpack.c.b16 %v2634, %v2632
        %v2685 = vpack.c.b16 %v2635, %v2633
        %v2686 = vpack.c.b16 %v2638, %v2636
        %v2687 = vpack.c.b16 %v2639, %v2637
        %v2688 = vpack.c.b16 %v2642, %v2640
        %v2689 = vpack.c.b16 %v2643, %v2641
        %v2690 = vpack.c.b16 %v2646, %v2644
        %v2691 = vpack.c.b16 %v2647, %v2645
        %v2692 = vpack.c.b16 %v2650, %v2648
        %v2693 = vpack.c.b16 %v2651, %v2649
        %v2694 = vpack.c.b16 %v2654, %v2652
        %v2695 = vpack.c.b16 %v2655, %v2653
        %v2696 = vpack.c.b16 %v2658, %v2656
        %v2697 = vpack.c.b16 %v2659, %v2657
        %v2698 = vpack.c.b16 %v2662, %v2660
        %v2699 = vpack.c.b16 %v2663, %v2661
        %v2700 = vpack.c.b16 %v2666, %v2664
        %v2701 = vpack.c.b16 %v2667, %v2665
        %v2702 = vpack.c.b16 %v2670, %v2668
        %v2703 = vpack.c.b16 %v2671, %v2669
        %2736 = vmatprep.subr.bf16.mxu0 %v2673
        %2737 = vmatpush1.bf16.msra.mxu0 %v2672
        %2738 = vmatprep.subr.bf16.mxu0 %v2675
        %2739 = vmatpush1.bf16.msra.mxu0 %v2674
        %2740 = vmatprep.subr.bf16.mxu0 %v2677
        %2741 = vmatpush1.bf16.msra.mxu0 %v2676
        %2742 = vmatprep.subr.bf16.mxu0 %v2679
        %2743 = vmatpush1.bf16.msra.mxu0 %v2678
        %2744 = vmatprep.subr.bf16.mxu0 %v2681
        %2745 = vmatpush1.bf16.msra.mxu0 %v2680
        %2746 = vmatprep.subr.bf16.mxu0 %v2683
        %2747 = vmatpush1.bf16.msra.mxu0 %v2682
        %2748 = vmatprep.subr.bf16.mxu0 %v2685
        %2749 = vmatpush1.bf16.msra.mxu0 %v2684
        %2750 = vmatprep.subr.bf16.mxu0 %v2687
        %2751 = vmatpush1.bf16.msra.mxu0 %v2686
        %2752 = vmatprep.subr.bf16.mxu0 %v2689
        %2753 = vmatpush1.bf16.msra.mxu0 %v2688
        %2754 = vmatprep.subr.bf16.mxu0 %v2691
        %2755 = vmatpush1.bf16.msra.mxu0 %v2690
        %2756 = vmatprep.subr.bf16.mxu0 %v2693
        %2757 = vmatpush1.bf16.msra.mxu0 %v2692
        %2758 = vmatprep.subr.bf16.mxu0 %v2695
        %2759 = vmatpush1.bf16.msra.mxu0 %v2694
        %2760 = vmatprep.subr.bf16.mxu0 %v2697
        %2761 = vmatpush1.bf16.msra.mxu0 %v2696
        %2762 = vmatprep.subr.bf16.mxu0 %v2699
        %2763 = vmatpush1.bf16.msra.mxu0 %v2698
        %2764 = vmatprep.subr.bf16.mxu0 %v2701
        %2765 = vmatpush1.bf16.msra.mxu0 %v2700
        %2766 = vmatprep.subr.bf16.mxu0 %v2703
        %2767 = vmatpush1.bf16.msra.mxu0 %v2702
        %2768 = vmatprep.mubr.bf16.mxu0 %v2529
        %2769 = vmatmul.mubr.bf16.gmra.mrb[0].mxu0 %v2528
        %v2770 = vpop.f32.mrb[0].mxu0
        %v2771 = vadd.f32 %v2569, %v2770
        %v2772 = vpop.f32.mrb[0].mxu0
        %v2773 = vadd.f32 %v2573, %v2772
        %v2774 = vpop.f32.mrb[0].mxu0
        %v2775 = vadd.f32 %v2569, %v2774
        %v2776 = vpop.f32.mrb[0].mxu0
        %v2777 = vadd.f32 %v2573, %v2776
        %2778 = vmatprep.mubr.bf16.mxu0 %v2531
        %2779 = vmatmul.mubr.bf16.gmra.mrb[0].mxu0 %v2530
        %v2780 = vpop.f32.mrb[0].mxu0
        %v2781 = vadd.f32 %v2569, %v2780
        %v2782 = vpop.f32.mrb[0].mxu0
        %v2783 = vadd.f32 %v2573, %v2782
        %v2784 = vpop.f32.mrb[0].mxu0
        %v2785 = vadd.f32 %v2569, %v2784
        %v2786 = vpop.f32.mrb[0].mxu0
        %v2787 = vadd.f32 %v2573, %v2786
        %2788 = vdwg.mxu0
        %v2789 = vadd.f32 %v621, %v2771
        %v2790 = vadd.f32 %v622, %v2773
        %v2791 = vadd.f32 %v623, %v2775
        %v2792 = vadd.f32 %v624, %v2777
        %v2793 = vadd.f32 %v625, %v2781
        %v2794 = vadd.f32 %v626, %v2783
        %v2795 = vadd.f32 %v627, %v2785
        %v2796 = vadd.f32 %v628, %v2787
        %v2797 = vld [vmem:[#allocation15] sm:$0x3]
        %v2798 = vld [vmem:[#allocation17] sm:$0x3]
        %v2799 = vadd.f32 %v2789, %v2790
        %2800 = vadd.xlane.f32.xlu0 %v2799
        %v2801 = vpop.xlane.xlu0 %2800
        %v2802 = vadd.f32 %v2791, %v2792
        %2803 = vadd.xlane.f32.xlu0 %v2802
        %v2804 = vpop.xlane.xlu0 %2803
        %v2805 = vadd.f32 %v2793, %v2794
        %2806 = vadd.xlane.f32.xlu0 %v2805
        %v2807 = vpop.xlane.xlu0 %2806
        %v2808 = vadd.f32 %v2795, %v2796
        %2809 = vadd.xlane.f32.xlu0 %v2808
        %v2810 = vpop.xlane.xlu0 %2809
        %v2811 = vmul.f32 %v2801, %v643
        %v2812 = vmul.f32 %v2804, %v643
        %v2813 = vmul.f32 %v2807, %v643
        %v2814 = vmul.f32 %v2810, %v643
        %v2815 = vsub.f32 %v2789, %v2811
        %v2816 = vsub.f32 %v2790, %v2811
        %v2817 = vsub.f32 %v2791, %v2812
        %v2818 = vsub.f32 %v2792, %v2812
        %v2819 = vsub.f32 %v2793, %v2813
        %v2820 = vsub.f32 %v2794, %v2813
        %v2821 = vsub.f32 %v2795, %v2814
        %v2822 = vsub.f32 %v2796, %v2814
        %v2823 = vmul.f32 %v2815, %v2815
        %v2824 = vmul.f32 %v2816, %v2816
        %v2825 = vmul.f32 %v2817, %v2817
        %v2826 = vmul.f32 %v2818, %v2818
        %v2827 = vmul.f32 %v2819, %v2819
        %v2828 = vmul.f32 %v2820, %v2820
        %v2829 = vmul.f32 %v2821, %v2821
        %v2830 = vmul.f32 %v2822, %v2822
        %v2831 = vadd.f32 %v2823, %v2824
        %2832 = vadd.xlane.f32.xlu0 %v2831
        %v2833 = vpop.xlane.xlu0 %2832
        %v2834 = vadd.f32 %v2825, %v2826
        %2835 = vadd.xlane.f32.xlu0 %v2834
        %v2836 = vpop.xlane.xlu0 %2835
        %v2837 = vadd.f32 %v2827, %v2828
        %2838 = vadd.xlane.f32.xlu0 %v2837
        %v2839 = vpop.xlane.xlu0 %2838
        %v2840 = vadd.f32 %v2829, %v2830
        %2841 = vadd.xlane.f32.xlu0 %v2840
        %v2842 = vpop.xlane.xlu0 %2841
        %v2843 = vmul.f32 %v2833, %v643
        %v2844 = vmul.f32 %v2836, %v643
        %v2845 = vmul.f32 %v2839, %v643
        %v2846 = vmul.f32 %v2842, %v643
        %v2847 = vadd.f32 %v2843, 1e-05
        %v2848 = vadd.f32 %v2844, 1e-05
        %v2849 = vadd.f32 %v2845, 1e-05
        %v2850 = vadd.f32 %v2846, 1e-05
        %v2851 = vrsqrt.pop %v2847
        %v2852 = vrsqrt.pop %v2848
        %v2853 = vrsqrt.pop %v2849
        %v2854 = vrsqrt.pop %v2850
        %v2855 = vmul.f32 %v2815, %v2851
        %v2856 = vmul.f32 %v2816, %v2851
        %v2857 = vmul.f32 %v2817, %v2852
        %v2858 = vmul.f32 %v2818, %v2852
        %v2859 = vmul.f32 %v2819, %v2853
        %v2860 = vmul.f32 %v2820, %v2853
        %v2861 = vmul.f32 %v2821, %v2854
        %v2862 = vmul.f32 %v2822, %v2854
        %v2864 = vlaneseq
        %v2865 = vshrl.u32 %v2864, 7
        %v2866 = vsub.s32 0, %v2865
        %v2867 = vrot.slane %v2797, %v2866
        %v2868 = vlaneseq
        %v2869 = vshrl.u32 %v2868, 7
        %v2870 = vsub.s32 1, %v2869
        %v2871 = vrot.slane %v2797, %v2870
        %v2874 = vmul.f32 %v2855, %v2867
        %v2875 = vmul.f32 %v2856, %v2871
        %v2876 = vmul.f32 %v2857, %v2867
        %v2877 = vmul.f32 %v2858, %v2871
        %v2878 = vmul.f32 %v2859, %v2867
        %v2879 = vmul.f32 %v2860, %v2871
        %v2880 = vmul.f32 %v2861, %v2867
        %v2881 = vmul.f32 %v2862, %v2871
        %v2883 = vlaneseq
        %v2884 = vshrl.u32 %v2883, 7
        %v2885 = vsub.s32 0, %v2884
        %v2886 = vrot.slane %v2798, %v2885
        %v2887 = vlaneseq
        %v2888 = vshrl.u32 %v2887, 7
        %v2889 = vsub.s32 1, %v2888
        %v2890 = vrot.slane %v2798, %v2889
        %v2893 = vadd.f32 %v2874, %v2886
        %v2894 = vadd.f32 %v2875, %v2890
        %v2895 = vadd.f32 %v2876, %v2886
        %v2896 = vadd.f32 %v2877, %v2890
        %v2897 = vadd.f32 %v2878, %v2886
        %v2898 = vadd.f32 %v2879, %v2890
        %v2899 = vadd.f32 %v2880, %v2886
        %v2900 = vadd.f32 %v2881, %v2890
        %v2901 = vpack.c.bf16 %v2895, %v2893
        %v2902 = vpack.c.bf16 %v2896, %v2894
        %v2903 = vpack.c.bf16 %v2899, %v2897
        %v2904 = vpack.c.bf16 %v2900, %v2898
        %v2905 = vld [vmem:[#allocation18] sm:$0xff]
        %v2906 = vld [vmem:[#allocation18 + $0x8] sm:$0xff]
        %v2907 = vld [vmem:[#allocation18 + $0x10] sm:$0xff]
        %v2908 = vld [vmem:[#allocation18 + $0x18] sm:$0xff]
        %v2909 = vld [vmem:[#allocation18 + $0x20] sm:$0xff]
        %v2910 = vld [vmem:[#allocation18 + $0x28] sm:$0xff]
        %v2911 = vld [vmem:[#allocation18 + $0x30] sm:$0xff]
        %v2912 = vld [vmem:[#allocation18 + $0x38] sm:$0xff]
        %v2913 = vld [vmem:[#allocation18 + $0x40] sm:$0xff]
        %v2914 = vld [vmem:[#allocation18 + $0x48] sm:$0xff]
        %v2915 = vld [vmem:[#allocation18 + $0x50] sm:$0xff]
        %v2916 = vld [vmem:[#allocation18 + $0x58] sm:$0xff]
        %v2917 = vld [vmem:[#allocation18 + $0x60] sm:$0xff]
        %v2918 = vld [vmem:[#allocation18 + $0x68] sm:$0xff]
        %v2919 = vld [vmem:[#allocation18 + $0x70] sm:$0xff]
        %v2920 = vld [vmem:[#allocation18 + $0x78] sm:$0xff]
        %v2921 = vld [vmem:[#allocation18 + $0x80] sm:$0xff]
        %v2922 = vld [vmem:[#allocation18 + $0x88] sm:$0xff]
        %v2923 = vld [vmem:[#allocation18 + $0x90] sm:$0xff]
        %v2924 = vld [vmem:[#allocation18 + $0x98] sm:$0xff]
        %v2925 = vld [vmem:[#allocation18 + $0xa0] sm:$0xff]
        %v2926 = vld [vmem:[#allocation18 + $0xa8] sm:$0xff]
        %v2927 = vld [vmem:[#allocation18 + $0xb0] sm:$0xff]
        %v2928 = vld [vmem:[#allocation18 + $0xb8] sm:$0xff]
        %v2929 = vld [vmem:[#allocation18 + $0xc0] sm:$0xff]
        %v2930 = vld [vmem:[#allocation18 + $0xc8] sm:$0xff]
        %v2931 = vld [vmem:[#allocation18 + $0xd0] sm:$0xff]
        %v2932 = vld [vmem:[#allocation18 + $0xd8] sm:$0xff]
        %v2933 = vld [vmem:[#allocation18 + $0xe0] sm:$0xff]
        %v2934 = vld [vmem:[#allocation18 + $0xe8] sm:$0xff]
        %v2935 = vld [vmem:[#allocation18 + $0xf0] sm:$0xff]
        %v2936 = vld [vmem:[#allocation18 + $0xf8] sm:$0xff]
        %v2937 = vld [vmem:[#allocation18 + $0x100] sm:$0xff]
        %v2938 = vld [vmem:[#allocation18 + $0x108] sm:$0xff]
        %v2939 = vld [vmem:[#allocation18 + $0x110] sm:$0xff]
        %v2940 = vld [vmem:[#allocation18 + $0x118] sm:$0xff]
        %v2941 = vld [vmem:[#allocation18 + $0x120] sm:$0xff]
        %v2942 = vld [vmem:[#allocation18 + $0x128] sm:$0xff]
        %v2943 = vld [vmem:[#allocation18 + $0x130] sm:$0xff]
        %v2944 = vld [vmem:[#allocation18 + $0x138] sm:$0xff]
        %v2945 = vld [vmem:[#allocation18 + $0x140] sm:$0xff]
        %v2946 = vld [vmem:[#allocation18 + $0x148] sm:$0xff]
        %v2947 = vld [vmem:[#allocation18 + $0x150] sm:$0xff]
        %v2948 = vld [vmem:[#allocation18 + $0x158] sm:$0xff]
        %v2949 = vld [vmem:[#allocation18 + $0x160] sm:$0xff]
        %v2950 = vld [vmem:[#allocation18 + $0x168] sm:$0xff]
        %v2951 = vld [vmem:[#allocation18 + $0x170] sm:$0xff]
        %v2952 = vld [vmem:[#allocation18 + $0x178] sm:$0xff]
        %v2953 = vld [vmem:[#allocation18 + $0x180] sm:$0xff]
        %v2954 = vld [vmem:[#allocation18 + $0x188] sm:$0xff]
        %v2955 = vld [vmem:[#allocation18 + $0x190] sm:$0xff]
        %v2956 = vld [vmem:[#allocation18 + $0x198] sm:$0xff]
        %v2957 = vld [vmem:[#allocation18 + $0x1a0] sm:$0xff]
        %v2958 = vld [vmem:[#allocation18 + $0x1a8] sm:$0xff]
        %v2959 = vld [vmem:[#allocation18 + $0x1b0] sm:$0xff]
        %v2960 = vld [vmem:[#allocation18 + $0x1b8] sm:$0xff]
        %v2961 = vld [vmem:[#allocation18 + $0x1c0] sm:$0xff]
        %v2962 = vld [vmem:[#allocation18 + $0x1c8] sm:$0xff]
        %v2963 = vld [vmem:[#allocation18 + $0x1d0] sm:$0xff]
        %v2964 = vld [vmem:[#allocation18 + $0x1d8] sm:$0xff]
        %v2965 = vld [vmem:[#allocation18 + $0x1e0] sm:$0xff]
        %v2966 = vld [vmem:[#allocation18 + $0x1e8] sm:$0xff]
        %v2967 = vld [vmem:[#allocation18 + $0x1f0] sm:$0xff]
        %v2968 = vld [vmem:[#allocation18 + $0x1f8] sm:$0xff]
        %v2969 = vld [vmem:[#allocation18 + $0x200] sm:$0xff]
        %v2970 = vld [vmem:[#allocation18 + $0x208] sm:$0xff]
        %v2971 = vld [vmem:[#allocation18 + $0x210] sm:$0xff]
        %v2972 = vld [vmem:[#allocation18 + $0x218] sm:$0xff]
        %v2973 = vld [vmem:[#allocation18 + $0x220] sm:$0xff]
        %v2974 = vld [vmem:[#allocation18 + $0x228] sm:$0xff]
        %v2975 = vld [vmem:[#allocation18 + $0x230] sm:$0xff]
        %v2976 = vld [vmem:[#allocation18 + $0x238] sm:$0xff]
        %v2977 = vld [vmem:[#allocation18 + $0x240] sm:$0xff]
        %v2978 = vld [vmem:[#allocation18 + $0x248] sm:$0xff]
        %v2979 = vld [vmem:[#allocation18 + $0x250] sm:$0xff]
        %v2980 = vld [vmem:[#allocation18 + $0x258] sm:$0xff]
        %v2981 = vld [vmem:[#allocation18 + $0x260] sm:$0xff]
        %v2982 = vld [vmem:[#allocation18 + $0x268] sm:$0xff]
        %v2983 = vld [vmem:[#allocation18 + $0x270] sm:$0xff]
        %v2984 = vld [vmem:[#allocation18 + $0x278] sm:$0xff]
        %v2985 = vld [vmem:[#allocation18 + $0x280] sm:$0xff]
        %v2986 = vld [vmem:[#allocation18 + $0x288] sm:$0xff]
        %v2987 = vld [vmem:[#allocation18 + $0x290] sm:$0xff]
        %v2988 = vld [vmem:[#allocation18 + $0x298] sm:$0xff]
        %v2989 = vld [vmem:[#allocation18 + $0x2a0] sm:$0xff]
        %v2990 = vld [vmem:[#allocation18 + $0x2a8] sm:$0xff]
        %v2991 = vld [vmem:[#allocation18 + $0x2b0] sm:$0xff]
        %v2992 = vld [vmem:[#allocation18 + $0x2b8] sm:$0xff]
        %v2993 = vld [vmem:[#allocation18 + $0x2c0] sm:$0xff]
        %v2994 = vld [vmem:[#allocation18 + $0x2c8] sm:$0xff]
        %v2995 = vld [vmem:[#allocation18 + $0x2d0] sm:$0xff]
        %v2996 = vld [vmem:[#allocation18 + $0x2d8] sm:$0xff]
        %v2997 = vld [vmem:[#allocation18 + $0x2e0] sm:$0xff]
        %v2998 = vld [vmem:[#allocation18 + $0x2e8] sm:$0xff]
        %v2999 = vld [vmem:[#allocation18 + $0x2f0] sm:$0xff]
        %v3000 = vld [vmem:[#allocation18 + $0x2f8] sm:$0xff]
        %v3001 = vld [vmem:[#allocation18 + $0x300] sm:$0xff]
        %v3002 = vld [vmem:[#allocation18 + $0x308] sm:$0xff]
        %v3003 = vld [vmem:[#allocation18 + $0x310] sm:$0xff]
        %v3004 = vld [vmem:[#allocation18 + $0x318] sm:$0xff]
        %v3005 = vld [vmem:[#allocation18 + $0x320] sm:$0xff]
        %v3006 = vld [vmem:[#allocation18 + $0x328] sm:$0xff]
        %v3007 = vld [vmem:[#allocation18 + $0x330] sm:$0xff]
        %v3008 = vld [vmem:[#allocation18 + $0x338] sm:$0xff]
        %v3009 = vld [vmem:[#allocation18 + $0x340] sm:$0xff]
        %v3010 = vld [vmem:[#allocation18 + $0x348] sm:$0xff]
        %v3011 = vld [vmem:[#allocation18 + $0x350] sm:$0xff]
        %v3012 = vld [vmem:[#allocation18 + $0x358] sm:$0xff]
        %v3013 = vld [vmem:[#allocation18 + $0x360] sm:$0xff]
        %v3014 = vld [vmem:[#allocation18 + $0x368] sm:$0xff]
        %v3015 = vld [vmem:[#allocation18 + $0x370] sm:$0xff]
        %v3016 = vld [vmem:[#allocation18 + $0x378] sm:$0xff]
        %v3017 = vld [vmem:[#allocation18 + $0x380] sm:$0xff]
        %v3018 = vld [vmem:[#allocation18 + $0x388] sm:$0xff]
        %v3019 = vld [vmem:[#allocation18 + $0x390] sm:$0xff]
        %v3020 = vld [vmem:[#allocation18 + $0x398] sm:$0xff]
        %v3021 = vld [vmem:[#allocation18 + $0x3a0] sm:$0xff]
        %v3022 = vld [vmem:[#allocation18 + $0x3a8] sm:$0xff]
        %v3023 = vld [vmem:[#allocation18 + $0x3b0] sm:$0xff]
        %v3024 = vld [vmem:[#allocation18 + $0x3b8] sm:$0xff]
        %v3025 = vld [vmem:[#allocation18 + $0x3c0] sm:$0xff]
        %v3026 = vld [vmem:[#allocation18 + $0x3c8] sm:$0xff]
        %v3027 = vld [vmem:[#allocation18 + $0x3d0] sm:$0xff]
        %v3028 = vld [vmem:[#allocation18 + $0x3d8] sm:$0xff]
        %v3029 = vld [vmem:[#allocation18 + $0x3e0] sm:$0xff]
        %v3030 = vld [vmem:[#allocation18 + $0x3e8] sm:$0xff]
        %v3031 = vld [vmem:[#allocation18 + $0x3f0] sm:$0xff]
        %v3032 = vld [vmem:[#allocation18 + $0x3f8] sm:$0xff]
        %v3033 = vld [vmem:[#allocation20] sm:$0xff]
        %v3035 = vlaneseq
        %v3036 = vshrl.u32 %v3035, 7
        %v3037 = vsub.s32 0, %v3036
        %v3038 = vrot.slane %v3033, %v3037
        %v3039 = vlaneseq
        %v3040 = vshrl.u32 %v3039, 7
        %v3041 = vsub.s32 1, %v3040
        %v3042 = vrot.slane %v3033, %v3041
        %v3043 = vlaneseq
        %v3044 = vshrl.u32 %v3043, 7
        %v3045 = vsub.s32 2, %v3044
        %v3046 = vrot.slane %v3033, %v3045
        %v3047 = vlaneseq
        %v3048 = vshrl.u32 %v3047, 7
        %v3049 = vsub.s32 3, %v3048
        %v3050 = vrot.slane %v3033, %v3049
        %v3051 = vlaneseq
        %v3052 = vshrl.u32 %v3051, 7
        %v3053 = vsub.s32 4, %v3052
        %v3054 = vrot.slane %v3033, %v3053
        %v3055 = vlaneseq
        %v3056 = vshrl.u32 %v3055, 7
        %v3057 = vsub.s32 5, %v3056
        %v3058 = vrot.slane %v3033, %v3057
        %v3059 = vlaneseq
        %v3060 = vshrl.u32 %v3059, 7
        %v3061 = vsub.s32 6, %v3060
        %v3062 = vrot.slane %v3033, %v3061
        %v3063 = vlaneseq
        %v3064 = vshrl.u32 %v3063, 7
        %v3065 = vsub.s32 7, %v3064
        %v3066 = vrot.slane %v3033, %v3065
        %v3203 = vunpack.c.l.b16 %v2905
        %v3204 = vunpack.c.h.b16 %v2905
        %v3205 = vunpack.c.l.b16 %v2906
        %v3206 = vunpack.c.h.b16 %v2906
        %v3207 = vunpack.c.l.b16 %v2907
        %v3208 = vunpack.c.h.b16 %v2907
        %v3209 = vunpack.c.l.b16 %v2908
        %v3210 = vunpack.c.h.b16 %v2908
        %v3211 = vunpack.c.l.b16 %v2909
        %v3212 = vunpack.c.h.b16 %v2909
        %v3213 = vunpack.c.l.b16 %v2910
        %v3214 = vunpack.c.h.b16 %v2910
        %v3215 = vunpack.c.l.b16 %v2911
        %v3216 = vunpack.c.h.b16 %v2911
        %v3217 = vunpack.c.l.b16 %v2912
        %v3218 = vunpack.c.h.b16 %v2912
        %v3219 = vunpack.c.l.b16 %v2913
        %v3220 = vunpack.c.h.b16 %v2913
        %v3221 = vunpack.c.l.b16 %v2914
        %v3222 = vunpack.c.h.b16 %v2914
        %v3223 = vunpack.c.l.b16 %v2915
        %v3224 = vunpack.c.h.b16 %v2915
        %v3225 = vunpack.c.l.b16 %v2916
        %v3226 = vunpack.c.h.b16 %v2916
        %v3227 = vunpack.c.l.b16 %v2917
        %v3228 = vunpack.c.h.b16 %v2917
        %v3229 = vunpack.c.l.b16 %v2918
        %v3230 = vunpack.c.h.b16 %v2918
        %v3231 = vunpack.c.l.b16 %v2919
        %v3232 = vunpack.c.h.b16 %v2919
        %v3233 = vunpack.c.l.b16 %v2920
        %v3234 = vunpack.c.h.b16 %v2920
        %v3235 = vunpack.c.l.b16 %v2921
        %v3236 = vunpack.c.h.b16 %v2921
        %v3237 = vunpack.c.l.b16 %v2922
        %v3238 = vunpack.c.h.b16 %v2922
        %v3239 = vunpack.c.l.b16 %v2923
        %v3240 = vunpack.c.h.b16 %v2923
        %v3241 = vunpack.c.l.b16 %v2924
        %v3242 = vunpack.c.h.b16 %v2924
        %v3243 = vunpack.c.l.b16 %v2925
        %v3244 = vunpack.c.h.b16 %v2925
        %v3245 = vunpack.c.l.b16 %v2926
        %v3246 = vunpack.c.h.b16 %v2926
        %v3247 = vunpack.c.l.b16 %v2927
        %v3248 = vunpack.c.h.b16 %v2927
        %v3249 = vunpack.c.l.b16 %v2928
        %v3250 = vunpack.c.h.b16 %v2928
        %v3251 = vunpack.c.l.b16 %v2929
        %v3252 = vunpack.c.h.b16 %v2929
        %v3253 = vunpack.c.l.b16 %v2930
        %v3254 = vunpack.c.h.b16 %v2930
        %v3255 = vunpack.c.l.b16 %v2931
        %v3256 = vunpack.c.h.b16 %v2931
        %v3257 = vunpack.c.l.b16 %v2932
        %v3258 = vunpack.c.h.b16 %v2932
        %v3259 = vunpack.c.l.b16 %v2933
        %v3260 = vunpack.c.h.b16 %v2933
        %v3261 = vunpack.c.l.b16 %v2934
        %v3262 = vunpack.c.h.b16 %v2934
        %v3263 = vunpack.c.l.b16 %v2935
        %v3264 = vunpack.c.h.b16 %v2935
        %v3265 = vunpack.c.l.b16 %v2936
        %v3266 = vunpack.c.h.b16 %v2936
        %v3267 = vunpack.c.l.b16 %v2937
        %v3268 = vunpack.c.h.b16 %v2937
        %v3269 = vunpack.c.l.b16 %v2938
        %v3270 = vunpack.c.h.b16 %v2938
        %v3271 = vunpack.c.l.b16 %v2939
        %v3272 = vunpack.c.h.b16 %v2939
        %v3273 = vunpack.c.l.b16 %v2940
        %v3274 = vunpack.c.h.b16 %v2940
        %v3275 = vunpack.c.l.b16 %v2941
        %v3276 = vunpack.c.h.b16 %v2941
        %v3277 = vunpack.c.l.b16 %v2942
        %v3278 = vunpack.c.h.b16 %v2942
        %v3279 = vunpack.c.l.b16 %v2943
        %v3280 = vunpack.c.h.b16 %v2943
        %v3281 = vunpack.c.l.b16 %v2944
        %v3282 = vunpack.c.h.b16 %v2944
        %v3283 = vunpack.c.l.b16 %v2945
        %v3284 = vunpack.c.h.b16 %v2945
        %v3285 = vunpack.c.l.b16 %v2946
        %v3286 = vunpack.c.h.b16 %v2946
        %v3287 = vunpack.c.l.b16 %v2947
        %v3288 = vunpack.c.h.b16 %v2947
        %v3289 = vunpack.c.l.b16 %v2948
        %v3290 = vunpack.c.h.b16 %v2948
        %v3291 = vunpack.c.l.b16 %v2949
        %v3292 = vunpack.c.h.b16 %v2949
        %v3293 = vunpack.c.l.b16 %v2950
        %v3294 = vunpack.c.h.b16 %v2950
        %v3295 = vunpack.c.l.b16 %v2951
        %v3296 = vunpack.c.h.b16 %v2951
        %v3297 = vunpack.c.l.b16 %v2952
        %v3298 = vunpack.c.h.b16 %v2952
        %v3299 = vunpack.c.l.b16 %v2953
        %v3300 = vunpack.c.h.b16 %v2953
        %v3301 = vunpack.c.l.b16 %v2954
        %v3302 = vunpack.c.h.b16 %v2954
        %v3303 = vunpack.c.l.b16 %v2955
        %v3304 = vunpack.c.h.b16 %v2955
        %v3305 = vunpack.c.l.b16 %v2956
        %v3306 = vunpack.c.h.b16 %v2956
        %v3307 = vunpack.c.l.b16 %v2957
        %v3308 = vunpack.c.h.b16 %v2957
        %v3309 = vunpack.c.l.b16 %v2958
        %v3310 = vunpack.c.h.b16 %v2958
        %v3311 = vunpack.c.l.b16 %v2959
        %v3312 = vunpack.c.h.b16 %v2959
        %v3313 = vunpack.c.l.b16 %v2960
        %v3314 = vunpack.c.h.b16 %v2960
        %v3315 = vunpack.c.l.b16 %v2961
        %v3316 = vunpack.c.h.b16 %v2961
        %v3317 = vunpack.c.l.b16 %v2962
        %v3318 = vunpack.c.h.b16 %v2962
        %v3319 = vunpack.c.l.b16 %v2963
        %v3320 = vunpack.c.h.b16 %v2963
        %v3321 = vunpack.c.l.b16 %v2964
        %v3322 = vunpack.c.h.b16 %v2964
        %v3323 = vunpack.c.l.b16 %v2965
        %v3324 = vunpack.c.h.b16 %v2965
        %v3325 = vunpack.c.l.b16 %v2966
        %v3326 = vunpack.c.h.b16 %v2966
        %v3327 = vunpack.c.l.b16 %v2967
        %v3328 = vunpack.c.h.b16 %v2967
        %v3329 = vunpack.c.l.b16 %v2968
        %v3330 = vunpack.c.h.b16 %v2968
        %v3331 = vunpack.c.l.b16 %v2969
        %v3332 = vunpack.c.h.b16 %v2969
        %v3333 = vunpack.c.l.b16 %v2970
        %v3334 = vunpack.c.h.b16 %v2970
        %v3335 = vunpack.c.l.b16 %v2971
        %v3336 = vunpack.c.h.b16 %v2971
        %v3337 = vunpack.c.l.b16 %v2972
        %v3338 = vunpack.c.h.b16 %v2972
        %v3339 = vunpack.c.l.b16 %v2973
        %v3340 = vunpack.c.h.b16 %v2973
        %v3341 = vunpack.c.l.b16 %v2974
        %v3342 = vunpack.c.h.b16 %v2974
        %v3343 = vunpack.c.l.b16 %v2975
        %v3344 = vunpack.c.h.b16 %v2975
        %v3345 = vunpack.c.l.b16 %v2976
        %v3346 = vunpack.c.h.b16 %v2976
        %v3347 = vunpack.c.l.b16 %v2977
        %v3348 = vunpack.c.h.b16 %v2977
        %v3349 = vunpack.c.l.b16 %v2978
        %v3350 = vunpack.c.h.b16 %v2978
        %v3351 = vunpack.c.l.b16 %v2979
        %v3352 = vunpack.c.h.b16 %v2979
        %v3353 = vunpack.c.l.b16 %v2980
        %v3354 = vunpack.c.h.b16 %v2980
        %v3355 = vunpack.c.l.b16 %v2981
        %v3356 = vunpack.c.h.b16 %v2981
        %v3357 = vunpack.c.l.b16 %v2982
        %v3358 = vunpack.c.h.b16 %v2982
        %v3359 = vunpack.c.l.b16 %v2983
        %v3360 = vunpack.c.h.b16 %v2983
        %v3361 = vunpack.c.l.b16 %v2984
        %v3362 = vunpack.c.h.b16 %v2984
        %v3363 = vunpack.c.l.b16 %v2985
        %v3364 = vunpack.c.h.b16 %v2985
        %v3365 = vunpack.c.l.b16 %v2986
        %v3366 = vunpack.c.h.b16 %v2986
        %v3367 = vunpack.c.l.b16 %v2987
        %v3368 = vunpack.c.h.b16 %v2987
        %v3369 = vunpack.c.l.b16 %v2988
        %v3370 = vunpack.c.h.b16 %v2988
        %v3371 = vunpack.c.l.b16 %v2989
        %v3372 = vunpack.c.h.b16 %v2989
        %v3373 = vunpack.c.l.b16 %v2990
        %v3374 = vunpack.c.h.b16 %v2990
        %v3375 = vunpack.c.l.b16 %v2991
        %v3376 = vunpack.c.h.b16 %v2991
        %v3377 = vunpack.c.l.b16 %v2992
        %v3378 = vunpack.c.h.b16 %v2992
        %v3379 = vunpack.c.l.b16 %v2993
        %v3380 = vunpack.c.h.b16 %v2993
        %v3381 = vunpack.c.l.b16 %v2994
        %v3382 = vunpack.c.h.b16 %v2994
        %v3383 = vunpack.c.l.b16 %v2995
        %v3384 = vunpack.c.h.b16 %v2995
        %v3385 = vunpack.c.l.b16 %v2996
        %v3386 = vunpack.c.h.b16 %v2996
        %v3387 = vunpack.c.l.b16 %v2997
        %v3388 = vunpack.c.h.b16 %v2997
        %v3389 = vunpack.c.l.b16 %v2998
        %v3390 = vunpack.c.h.b16 %v2998
        %v3391 = vunpack.c.l.b16 %v2999
        %v3392 = vunpack.c.h.b16 %v2999
        %v3393 = vunpack.c.l.b16 %v3000
        %v3394 = vunpack.c.h.b16 %v3000
        %v3395 = vunpack.c.l.b16 %v3001
        %v3396 = vunpack.c.h.b16 %v3001
        %v3397 = vunpack.c.l.b16 %v3002
        %v3398 = vunpack.c.h.b16 %v3002
        %v3399 = vunpack.c.l.b16 %v3003
        %v3400 = vunpack.c.h.b16 %v3003
        %v3401 = vunpack.c.l.b16 %v3004
        %v3402 = vunpack.c.h.b16 %v3004
        %v3403 = vunpack.c.l.b16 %v3005
        %v3404 = vunpack.c.h.b16 %v3005
        %v3405 = vunpack.c.l.b16 %v3006
        %v3406 = vunpack.c.h.b16 %v3006
        %v3407 = vunpack.c.l.b16 %v3007
        %v3408 = vunpack.c.h.b16 %v3007
        %v3409 = vunpack.c.l.b16 %v3008
        %v3410 = vunpack.c.h.b16 %v3008
        %v3411 = vunpack.c.l.b16 %v3009
        %v3412 = vunpack.c.h.b16 %v3009
        %v3413 = vunpack.c.l.b16 %v3010
        %v3414 = vunpack.c.h.b16 %v3010
        %v3415 = vunpack.c.l.b16 %v3011
        %v3416 = vunpack.c.h.b16 %v3011
        %v3417 = vunpack.c.l.b16 %v3012
        %v3418 = vunpack.c.h.b16 %v3012
        %v3419 = vunpack.c.l.b16 %v3013
        %v3420 = vunpack.c.h.b16 %v3013
        %v3421 = vunpack.c.l.b16 %v3014
        %v3422 = vunpack.c.h.b16 %v3014
        %v3423 = vunpack.c.l.b16 %v3015
        %v3424 = vunpack.c.h.b16 %v3015
        %v3425 = vunpack.c.l.b16 %v3016
        %v3426 = vunpack.c.h.b16 %v3016
        %v3427 = vunpack.c.l.b16 %v3017
        %v3428 = vunpack.c.h.b16 %v3017
        %v3429 = vunpack.c.l.b16 %v3018
        %v3430 = vunpack.c.h.b16 %v3018
        %v3431 = vunpack.c.l.b16 %v3019
        %v3432 = vunpack.c.h.b16 %v3019
        %v3433 = vunpack.c.l.b16 %v3020
        %v3434 = vunpack.c.h.b16 %v3020
        %v3435 = vunpack.c.l.b16 %v3021
        %v3436 = vunpack.c.h.b16 %v3021
        %v3437 = vunpack.c.l.b16 %v3022
        %v3438 = vunpack.c.h.b16 %v3022
        %v3439 = vunpack.c.l.b16 %v3023
        %v3440 = vunpack.c.h.b16 %v3023
        %v3441 = vunpack.c.l.b16 %v3024
        %v3442 = vunpack.c.h.b16 %v3024
        %v3443 = vunpack.c.l.b16 %v3025
        %v3444 = vunpack.c.h.b16 %v3025
        %v3445 = vunpack.c.l.b16 %v3026
        %v3446 = vunpack.c.h.b16 %v3026
        %v3447 = vunpack.c.l.b16 %v3027
        %v3448 = vunpack.c.h.b16 %v3027
        %v3449 = vunpack.c.l.b16 %v3028
        %v3450 = vunpack.c.h.b16 %v3028
        %v3451 = vunpack.c.l.b16 %v3029
        %v3452 = vunpack.c.h.b16 %v3029
        %v3453 = vunpack.c.l.b16 %v3030
        %v3454 = vunpack.c.h.b16 %v3030
        %v3455 = vunpack.c.l.b16 %v3031
        %v3456 = vunpack.c.h.b16 %v3031
        %v3457 = vunpack.c.l.b16 %v3032
        %v3458 = vunpack.c.h.b16 %v3032
        %v3459 = vpack.c.b16 %v3211, %v3203
        %v3460 = vpack.c.b16 %v3212, %v3204
        %v3461 = vpack.c.b16 %v3213, %v3205
        %v3462 = vpack.c.b16 %v3214, %v3206
        %v3463 = vpack.c.b16 %v3215, %v3207
        %v3464 = vpack.c.b16 %v3216, %v3208
        %v3465 = vpack.c.b16 %v3217, %v3209
        %v3466 = vpack.c.b16 %v3218, %v3210
        %v3467 = vpack.c.b16 %v3227, %v3219
        %v3468 = vpack.c.b16 %v3228, %v3220
        %v3469 = vpack.c.b16 %v3229, %v3221
        %v3470 = vpack.c.b16 %v3230, %v3222
        %v3471 = vpack.c.b16 %v3231, %v3223
        %v3472 = vpack.c.b16 %v3232, %v3224
        %v3473 = vpack.c.b16 %v3233, %v3225
        %v3474 = vpack.c.b16 %v3234, %v3226
        %v3475 = vpack.c.b16 %v3243, %v3235
        %v3476 = vpack.c.b16 %v3244, %v3236
        %v3477 = vpack.c.b16 %v3245, %v3237
        %v3478 = vpack.c.b16 %v3246, %v3238
        %v3479 = vpack.c.b16 %v3247, %v3239
        %v3480 = vpack.c.b16 %v3248, %v3240
        %v3481 = vpack.c.b16 %v3249, %v3241
        %v3482 = vpack.c.b16 %v3250, %v3242
        %v3483 = vpack.c.b16 %v3259, %v3251
        %v3484 = vpack.c.b16 %v3260, %v3252
        %v3485 = vpack.c.b16 %v3261, %v3253
        %v3486 = vpack.c.b16 %v3262, %v3254
        %v3487 = vpack.c.b16 %v3263, %v3255
        %v3488 = vpack.c.b16 %v3264, %v3256
        %v3489 = vpack.c.b16 %v3265, %v3257
        %v3490 = vpack.c.b16 %v3266, %v3258
        %v3491 = vpack.c.b16 %v3275, %v3267
        %v3492 = vpack.c.b16 %v3276, %v3268
        %v3493 = vpack.c.b16 %v3277, %v3269
        %v3494 = vpack.c.b16 %v3278, %v3270
        %v3495 = vpack.c.b16 %v3279, %v3271
        %v3496 = vpack.c.b16 %v3280, %v3272
        %v3497 = vpack.c.b16 %v3281, %v3273
        %v3498 = vpack.c.b16 %v3282, %v3274
        %v3499 = vpack.c.b16 %v3291, %v3283
        %v3500 = vpack.c.b16 %v3292, %v3284
        %v3501 = vpack.c.b16 %v3293, %v3285
        %v3502 = vpack.c.b16 %v3294, %v3286
        %v3503 = vpack.c.b16 %v3295, %v3287
        %v3504 = vpack.c.b16 %v3296, %v3288
        %v3505 = vpack.c.b16 %v3297, %v3289
        %v3506 = vpack.c.b16 %v3298, %v3290
        %v3507 = vpack.c.b16 %v3307, %v3299
        %v3508 = vpack.c.b16 %v3308, %v3300
        %v3509 = vpack.c.b16 %v3309, %v3301
        %v3510 = vpack.c.b16 %v3310, %v3302
        %v3511 = vpack.c.b16 %v3311, %v3303
        %v3512 = vpack.c.b16 %v3312, %v3304
        %v3513 = vpack.c.b16 %v3313, %v3305
        %v3514 = vpack.c.b16 %v3314, %v3306
        %v3515 = vpack.c.b16 %v3323, %v3315
        %v3516 = vpack.c.b16 %v3324, %v3316
        %v3517 = vpack.c.b16 %v3325, %v3317
        %v3518 = vpack.c.b16 %v3326, %v3318
        %v3519 = vpack.c.b16 %v3327, %v3319
        %v3520 = vpack.c.b16 %v3328, %v3320
        %v3521 = vpack.c.b16 %v3329, %v3321
        %v3522 = vpack.c.b16 %v3330, %v3322
        %v3523 = vpack.c.b16 %v3339, %v3331
        %v3524 = vpack.c.b16 %v3340, %v3332
        %v3525 = vpack.c.b16 %v3341, %v3333
        %v3526 = vpack.c.b16 %v3342, %v3334
        %v3527 = vpack.c.b16 %v3343, %v3335
        %v3528 = vpack.c.b16 %v3344, %v3336
        %v3529 = vpack.c.b16 %v3345, %v3337
        %v3530 = vpack.c.b16 %v3346, %v3338
        %v3531 = vpack.c.b16 %v3355, %v3347
        %v3532 = vpack.c.b16 %v3356, %v3348
        %v3533 = vpack.c.b16 %v3357, %v3349
        %v3534 = vpack.c.b16 %v3358, %v3350
        %v3535 = vpack.c.b16 %v3359, %v3351
        %v3536 = vpack.c.b16 %v3360, %v3352
        %v3537 = vpack.c.b16 %v3361, %v3353
        %v3538 = vpack.c.b16 %v3362, %v3354
        %v3539 = vpack.c.b16 %v3371, %v3363
        %v3540 = vpack.c.b16 %v3372, %v3364
        %v3541 = vpack.c.b16 %v3373, %v3365
        %v3542 = vpack.c.b16 %v3374, %v3366
        %v3543 = vpack.c.b16 %v3375, %v3367
        %v3544 = vpack.c.b16 %v3376, %v3368
        %v3545 = vpack.c.b16 %v3377, %v3369
        %v3546 = vpack.c.b16 %v3378, %v3370
        %v3547 = vpack.c.b16 %v3387, %v3379
        %v3548 = vpack.c.b16 %v3388, %v3380
        %v3549 = vpack.c.b16 %v3389, %v3381
        %v3550 = vpack.c.b16 %v3390, %v3382
        %v3551 = vpack.c.b16 %v3391, %v3383
        %v3552 = vpack.c.b16 %v3392, %v3384
        %v3553 = vpack.c.b16 %v3393, %v3385
        %v3554 = vpack.c.b16 %v3394, %v3386
        %v3555 = vpack.c.b16 %v3403, %v3395
        %v3556 = vpack.c.b16 %v3404, %v3396
        %v3557 = vpack.c.b16 %v3405, %v3397
        %v3558 = vpack.c.b16 %v3406, %v3398
        %v3559 = vpack.c.b16 %v3407, %v3399
        %v3560 = vpack.c.b16 %v3408, %v3400
        %v3561 = vpack.c.b16 %v3409, %v3401
        %v3562 = vpack.c.b16 %v3410, %v3402
        %v3563 = vpack.c.b16 %v3419, %v3411
        %v3564 = vpack.c.b16 %v3420, %v3412
        %v3565 = vpack.c.b16 %v3421, %v3413
        %v3566 = vpack.c.b16 %v3422, %v3414
        %v3567 = vpack.c.b16 %v3423, %v3415
        %v3568 = vpack.c.b16 %v3424, %v3416
        %v3569 = vpack.c.b16 %v3425, %v3417
        %v3570 = vpack.c.b16 %v3426, %v3418
        %v3571 = vpack.c.b16 %v3435, %v3427
        %v3572 = vpack.c.b16 %v3436, %v3428
        %v3573 = vpack.c.b16 %v3437, %v3429
        %v3574 = vpack.c.b16 %v3438, %v3430
        %v3575 = vpack.c.b16 %v3439, %v3431
        %v3576 = vpack.c.b16 %v3440, %v3432
        %v3577 = vpack.c.b16 %v3441, %v3433
        %v3578 = vpack.c.b16 %v3442, %v3434
        %v3579 = vpack.c.b16 %v3451, %v3443
        %v3580 = vpack.c.b16 %v3452, %v3444
        %v3581 = vpack.c.b16 %v3453, %v3445
        %v3582 = vpack.c.b16 %v3454, %v3446
        %v3583 = vpack.c.b16 %v3455, %v3447
        %v3584 = vpack.c.b16 %v3456, %v3448
        %v3585 = vpack.c.b16 %v3457, %v3449
        %v3586 = vpack.c.b16 %v3458, %v3450
        %3715 = vmatprep.subr.bf16.mxu0 %v3460
        %3716 = vmatpush1.bf16.msra.mxu0 %v3459
        %3717 = vmatprep.subr.bf16.mxu0 %v3468
        %3718 = vmatpush1.bf16.msra.mxu0 %v3467
        %3719 = vmatprep.subr.bf16.mxu0 %v3476
        %3720 = vmatpush1.bf16.msra.mxu0 %v3475
        %3721 = vmatprep.subr.bf16.mxu0 %v3484
        %3722 = vmatpush1.bf16.msra.mxu0 %v3483
        %3723 = vmatprep.subr.bf16.mxu0 %v3492
        %3724 = vmatpush1.bf16.msra.mxu0 %v3491
        %3725 = vmatprep.subr.bf16.mxu0 %v3500
        %3726 = vmatpush1.bf16.msra.mxu0 %v3499
        %3727 = vmatprep.subr.bf16.mxu0 %v3508
        %3728 = vmatpush1.bf16.msra.mxu0 %v3507
        %3729 = vmatprep.subr.bf16.mxu0 %v3516
        %3730 = vmatpush1.bf16.msra.mxu0 %v3515
        %3731 = vmatprep.subr.bf16.mxu0 %v3524
        %3732 = vmatpush1.bf16.msra.mxu0 %v3523
        %3733 = vmatprep.subr.bf16.mxu0 %v3532
        %3734 = vmatpush1.bf16.msra.mxu0 %v3531
        %3735 = vmatprep.subr.bf16.mxu0 %v3540
        %3736 = vmatpush1.bf16.msra.mxu0 %v3539
        %3737 = vmatprep.subr.bf16.mxu0 %v3548
        %3738 = vmatpush1.bf16.msra.mxu0 %v3547
        %3739 = vmatprep.subr.bf16.mxu0 %v3556
        %3740 = vmatpush1.bf16.msra.mxu0 %v3555
        %3741 = vmatprep.subr.bf16.mxu0 %v3564
        %3742 = vmatpush1.bf16.msra.mxu0 %v3563
        %3743 = vmatprep.subr.bf16.mxu0 %v3572
        %3744 = vmatpush1.bf16.msra.mxu0 %v3571
        %3745 = vmatprep.subr.bf16.mxu0 %v3580
        %3746 = vmatpush1.bf16.msra.mxu0 %v3579
        %3747 = vmatprep.mubr.bf16.mxu0 %v2902
        %3748 = vmatmul.mubr.bf16.gmra.mrb[0].mxu0 %v2901
        %v3749 = vpop.f32.mrb[0].mxu0
        %v3750 = vadd.f32 %v3038, %v3749
        %v3751 = vpop.f32.mrb[0].mxu0
        %v3752 = vadd.f32 %v3042, %v3751
        %v3753 = vpop.f32.mrb[0].mxu0
        %v3754 = vadd.f32 %v3038, %v3753
        %v3755 = vpop.f32.mrb[0].mxu0
        %v3756 = vadd.f32 %v3042, %v3755
        %3757 = vmatprep.mubr.bf16.mxu0 %v2904
        %3758 = vmatmul.mubr.bf16.gmra.mrb[0].mxu0 %v2903
        %v3759 = vpop.f32.mrb[0].mxu0
        %v3760 = vadd.f32 %v3038, %v3759
        %v3761 = vpop.f32.mrb[0].mxu0
        %v3762 = vadd.f32 %v3042, %v3761
        %v3763 = vpop.f32.mrb[0].mxu0
        %v3764 = vadd.f32 %v3038, %v3763
        %v3765 = vpop.f32.mrb[0].mxu0
        %v3766 = vadd.f32 %v3042, %v3765
        %3767 = vdwg.mxu0
        %3768 = vmatprep.subr.bf16.mxu0 %v3462
        %3769 = vmatpush1.bf16.msra.mxu0 %v3461
        %3770 = vmatprep.subr.bf16.mxu0 %v3470
        %3771 = vmatpush1.bf16.msra.mxu0 %v3469
        %3772 = vmatprep.subr.bf16.mxu0 %v3478
        %3773 = vmatpush1.bf16.msra.mxu0 %v3477
        %3774 = vmatprep.subr.bf16.mxu0 %v3486
        %3775 = vmatpush1.bf16.msra.mxu0 %v3485
        %3776 = vmatprep.subr.bf16.mxu0 %v3494
        %3777 = vmatpush1.bf16.msra.mxu0 %v3493
        %3778 = vmatprep.subr.bf16.mxu0 %v3502
        %3779 = vmatpush1.bf16.msra.mxu0 %v3501
        %3780 = vmatprep.subr.bf16.mxu0 %v3510
        %3781 = vmatpush1.bf16.msra.mxu0 %v3509
        %3782 = vmatprep.subr.bf16.mxu0 %v3518
        %3783 = vmatpush1.bf16.msra.mxu0 %v3517
        %3784 = vmatprep.subr.bf16.mxu0 %v3526
        %3785 = vmatpush1.bf16.msra.mxu0 %v3525
        %3786 = vmatprep.subr.bf16.mxu0 %v3534
        %3787 = vmatpush1.bf16.msra.mxu0 %v3533
        %3788 = vmatprep.subr.bf16.mxu0 %v3542
        %3789 = vmatpush1.bf16.msra.mxu0 %v3541
        %3790 = vmatprep.subr.bf16.mxu0 %v3550
        %3791 = vmatpush1.bf16.msra.mxu0 %v3549
        %3792 = vmatprep.subr.bf16.mxu0 %v3558
        %3793 = vmatpush1.bf16.msra.mxu0 %v3557
        %3794 = vmatprep.subr.bf16.mxu0 %v3566
        %3795 = vmatpush1.bf16.msra.mxu0 %v3565
        %3796 = vmatprep.subr.bf16.mxu0 %v3574
        %3797 = vmatpush1.bf16.msra.mxu0 %v3573
        %3798 = vmatprep.subr.bf16.mxu0 %v3582
        %3799 = vmatpush1.bf16.msra.mxu0 %v3581
        %3800 = vmatprep.mubr.bf16.mxu0 %v2902
        %3801 = vmatmul.mubr.bf16.gmra.mrb[0].mxu0 %v2901
        %v3802 = vpop.f32.mrb[0].mxu0
        %v3803 = vadd.f32 %v3046, %v3802
        %v3804 = vpop.f32.mrb[0].mxu0
        %v3805 = vadd.f32 %v3050, %v3804
        %v3806 = vpop.f32.mrb[0].mxu0
        %v3807 = vadd.f32 %v3046, %v3806
        %v3808 = vpop.f32.mrb[0].mxu0
        %v3809 = vadd.f32 %v3050, %v3808
        %3810 = vmatprep.mubr.bf16.mxu0 %v2904
        %3811 = vmatmul.mubr.bf16.gmra.mrb[0].mxu0 %v2903
        %v3812 = vpop.f32.mrb[0].mxu0
        %v3813 = vadd.f32 %v3046, %v3812
        %v3814 = vpop.f32.mrb[0].mxu0
        %v3815 = vadd.f32 %v3050, %v3814
        %v3816 = vpop.f32.mrb[0].mxu0
        %v3817 = vadd.f32 %v3046, %v3816
        %v3818 = vpop.f32.mrb[0].mxu0
        %v3819 = vadd.f32 %v3050, %v3818
        %3820 = vdwg.mxu0
        %3821 = vmatprep.subr.bf16.mxu0 %v3464
        %3822 = vmatpush1.bf16.msra.mxu0 %v3463
        %3823 = vmatprep.subr.bf16.mxu0 %v3472
        %3824 = vmatpush1.bf16.msra.mxu0 %v3471
        %3825 = vmatprep.subr.bf16.mxu0 %v3480
        %3826 = vmatpush1.bf16.msra.mxu0 %v3479
        %3827 = vmatprep.subr.bf16.mxu0 %v3488
        %3828 = vmatpush1.bf16.msra.mxu0 %v3487
        %3829 = vmatprep.subr.bf16.mxu0 %v3496
        %3830 = vmatpush1.bf16.msra.mxu0 %v3495
        %3831 = vmatprep.subr.bf16.mxu0 %v3504
        %3832 = vmatpush1.bf16.msra.mxu0 %v3503
        %3833 = vmatprep.subr.bf16.mxu0 %v3512
        %3834 = vmatpush1.bf16.msra.mxu0 %v3511
        %3835 = vmatprep.subr.bf16.mxu0 %v3520
        %3836 = vmatpush1.bf16.msra.mxu0 %v3519
        %3837 = vmatprep.subr.bf16.mxu0 %v3528
        %3838 = vmatpush1.bf16.msra.mxu0 %v3527
        %3839 = vmatprep.subr.bf16.mxu0 %v3536
        %3840 = vmatpush1.bf16.msra.mxu0 %v3535
        %3841 = vmatprep.subr.bf16.mxu0 %v3544
        %3842 = vmatpush1.bf16.msra.mxu0 %v3543
        %3843 = vmatprep.subr.bf16.mxu0 %v3552
        %3844 = vmatpush1.bf16.msra.mxu0 %v3551
        %3845 = vmatprep.subr.bf16.mxu0 %v3560
        %3846 = vmatpush1.bf16.msra.mxu0 %v3559
        %3847 = vmatprep.subr.bf16.mxu0 %v3568
        %3848 = vmatpush1.bf16.msra.mxu0 %v3567
        %3849 = vmatprep.subr.bf16.mxu0 %v3576
        %3850 = vmatpush1.bf16.msra.mxu0 %v3575
        %3851 = vmatprep.subr.bf16.mxu0 %v3584
        %3852 = vmatpush1.bf16.msra.mxu0 %v3583
        %3853 = vmatprep.mubr.bf16.mxu0 %v2902
        %3854 = vmatmul.mubr.bf16.gmra.mrb[0].mxu0 %v2901
        %v3855 = vpop.f32.mrb[0].mxu0
        %v3856 = vadd.f32 %v3054, %v3855
        %v3857 = vpop.f32.mrb[0].mxu0
        %v3858 = vadd.f32 %v3058, %v3857
        %v3859 = vpop.f32.mrb[0].mxu0
        %v3860 = vadd.f32 %v3054, %v3859
        %v3861 = vpop.f32.mrb[0].mxu0
        %v3862 = vadd.f32 %v3058, %v3861
        %3863 = vmatprep.mubr.bf16.mxu0 %v2904
        %3864 = vmatmul.mubr.bf16.gmra.mrb[0].mxu0 %v2903
        %v3865 = vpop.f32.mrb[0].mxu0
        %v3866 = vadd.f32 %v3054, %v3865
        %v3867 = vpop.f32.mrb[0].mxu0
        %v3868 = vadd.f32 %v3058, %v3867
        %v3869 = vpop.f32.mrb[0].mxu0
        %v3870 = vadd.f32 %v3054, %v3869
        %v3871 = vpop.f32.mrb[0].mxu0
        %v3872 = vadd.f32 %v3058, %v3871
        %3873 = vdwg.mxu0
        %3874 = vmatprep.subr.bf16.mxu0 %v3466
        %3875 = vmatpush1.bf16.msra.mxu0 %v3465
        %3876 = vmatprep.subr.bf16.mxu0 %v3474
        %3877 = vmatpush1.bf16.msra.mxu0 %v3473
        %3878 = vmatprep.subr.bf16.mxu0 %v3482
        %3879 = vmatpush1.bf16.msra.mxu0 %v3481
        %3880 = vmatprep.subr.bf16.mxu0 %v3490
        %3881 = vmatpush1.bf16.msra.mxu0 %v3489
        %3882 = vmatprep.subr.bf16.mxu0 %v3498
        %3883 = vmatpush1.bf16.msra.mxu0 %v3497
        %3884 = vmatprep.subr.bf16.mxu0 %v3506
        %3885 = vmatpush1.bf16.msra.mxu0 %v3505
        %3886 = vmatprep.subr.bf16.mxu0 %v3514
        %3887 = vmatpush1.bf16.msra.mxu0 %v3513
        %3888 = vmatprep.subr.bf16.mxu0 %v3522
        %3889 = vmatpush1.bf16.msra.mxu0 %v3521
        %3890 = vmatprep.subr.bf16.mxu0 %v3530
        %3891 = vmatpush1.bf16.msra.mxu0 %v3529
        %3892 = vmatprep.subr.bf16.mxu0 %v3538
        %3893 = vmatpush1.bf16.msra.mxu0 %v3537
        %3894 = vmatprep.subr.bf16.mxu0 %v3546
        %3895 = vmatpush1.bf16.msra.mxu0 %v3545
        %3896 = vmatprep.subr.bf16.mxu0 %v3554
        %3897 = vmatpush1.bf16.msra.mxu0 %v3553
        %3898 = vmatprep.subr.bf16.mxu0 %v3562
        %3899 = vmatpush1.bf16.msra.mxu0 %v3561
        %3900 = vmatprep.subr.bf16.mxu0 %v3570
        %3901 = vmatpush1.bf16.msra.mxu0 %v3569
        %3902 = vmatprep.subr.bf16.mxu0 %v3578
        %3903 = vmatpush1.bf16.msra.mxu0 %v3577
        %3904 = vmatprep.subr.bf16.mxu0 %v3586
        %3905 = vmatpush1.bf16.msra.mxu0 %v3585
        %3906 = vmatprep.mubr.bf16.mxu0 %v2902
        %3907 = vmatmul.mubr.bf16.gmra.mrb[0].mxu0 %v2901
        %v3908 = vpop.f32.mrb[0].mxu0
        %v3909 = vadd.f32 %v3062, %v3908
        %v3910 = vpop.f32.mrb[0].mxu0
        %v3911 = vadd.f32 %v3066, %v3910
        %v3912 = vpop.f32.mrb[0].mxu0
        %v3913 = vadd.f32 %v3062, %v3912
        %v3914 = vpop.f32.mrb[0].mxu0
        %v3915 = vadd.f32 %v3066, %v3914
        %3916 = vmatprep.mubr.bf16.mxu0 %v2904
        %3917 = vmatmul.mubr.bf16.gmra.mrb[0].mxu0 %v2903
        %v3918 = vpop.f32.mrb[0].mxu0
        %v3919 = vadd.f32 %v3062, %v3918
        %v3920 = vpop.f32.mrb[0].mxu0
        %v3921 = vadd.f32 %v3066, %v3920
        %v3922 = vpop.f32.mrb[0].mxu0
        %v3923 = vadd.f32 %v3062, %v3922
        %v3924 = vpop.f32.mrb[0].mxu0
        %v3925 = vadd.f32 %v3066, %v3924
        %3926 = vdwg.mxu0
        %v3927 = vmul.f32 %v3750, 1.702
        %v3928 = vmul.f32 %v3752, 1.702
        %v3929 = vmul.f32 %v3803, 1.702
        %v3930 = vmul.f32 %v3805, 1.702
        %v3931 = vmul.f32 %v3856, 1.702
        %v3932 = vmul.f32 %v3858, 1.702
        %v3933 = vmul.f32 %v3909, 1.702
        %v3934 = vmul.f32 %v3911, 1.702
        %v3935 = vmul.f32 %v3754, 1.702
        %v3936 = vmul.f32 %v3756, 1.702
        %v3937 = vmul.f32 %v3807, 1.702
        %v3938 = vmul.f32 %v3809, 1.702
        %v3939 = vmul.f32 %v3860, 1.702
        %v3940 = vmul.f32 %v3862, 1.702
        %v3941 = vmul.f32 %v3913, 1.702
        %v3942 = vmul.f32 %v3915, 1.702
        %v3943 = vmul.f32 %v3760, 1.702
        %v3944 = vmul.f32 %v3762, 1.702
        %v3945 = vmul.f32 %v3813, 1.702
        %v3946 = vmul.f32 %v3815, 1.702
        %v3947 = vmul.f32 %v3866, 1.702
        %v3948 = vmul.f32 %v3868, 1.702
        %v3949 = vmul.f32 %v3919, 1.702
        %v3950 = vmul.f32 %v3921, 1.702
        %v3951 = vmul.f32 %v3764, 1.702
        %v3952 = vmul.f32 %v3766, 1.702
        %v3953 = vmul.f32 %v3817, 1.702
        %v3954 = vmul.f32 %v3819, 1.702
        %v3955 = vmul.f32 %v3870, 1.702
        %v3956 = vmul.f32 %v3872, 1.702
        %v3957 = vmul.f32 %v3923, 1.702
        %v3958 = vmul.f32 %v3925, 1.702
        %v3959 = vxor.u32 %v3927, 2147483648
        %v3960 = vxor.u32 %v3928, 2147483648
        %v3961 = vxor.u32 %v3929, 2147483648
        %v3962 = vxor.u32 %v3930, 2147483648
        %v3963 = vxor.u32 %v3931, 2147483648
        %v3964 = vxor.u32 %v3932, 2147483648
        %v3965 = vxor.u32 %v3933, 2147483648
        %v3966 = vxor.u32 %v3934, 2147483648
        %v3967 = vxor.u32 %v3935, 2147483648
        %v3968 = vxor.u32 %v3936, 2147483648
        %v3969 = vxor.u32 %v3937, 2147483648
        %v3970 = vxor.u32 %v3938, 2147483648
        %v3971 = vxor.u32 %v3939, 2147483648
        %v3972 = vxor.u32 %v3940, 2147483648
        %v3973 = vxor.u32 %v3941, 2147483648
        %v3974 = vxor.u32 %v3942, 2147483648
        %v3975 = vxor.u32 %v3943, 2147483648
        %v3976 = vxor.u32 %v3944, 2147483648
        %v3977 = vxor.u32 %v3945, 2147483648
        %v3978 = vxor.u32 %v3946, 2147483648
        %v3979 = vxor.u32 %v3947, 2147483648
        %v3980 = vxor.u32 %v3948, 2147483648
        %v3981 = vxor.u32 %v3949, 2147483648
        %v3982 = vxor.u32 %v3950, 2147483648
        %v3983 = vxor.u32 %v3951, 2147483648
        %v3984 = vxor.u32 %v3952, 2147483648
        %v3985 = vxor.u32 %v3953, 2147483648
        %v3986 = vxor.u32 %v3954, 2147483648
        %v3987 = vxor.u32 %v3955, 2147483648
        %v3988 = vxor.u32 %v3956, 2147483648
        %v3989 = vxor.u32 %v3957, 2147483648
        %v3990 = vxor.u32 %v3958, 2147483648
        %v3991 = vmul.f32 %v3959, 1.442695
        %v3992 = vpow.pop %v3991
        %v3993 = vmul.f32 %v3960, 1.442695
        %v3994 = vpow.pop %v3993
        %v3995 = vmul.f32 %v3961, 1.442695
        %v3996 = vpow.pop %v3995
        %v3997 = vmul.f32 %v3962, 1.442695
        %v3998 = vpow.pop %v3997
        %v3999 = vmul.f32 %v3963, 1.442695
        %v4000 = vpow.pop %v3999
        %v4001 = vmul.f32 %v3964, 1.442695
        %v4002 = vpow.pop %v4001
        %v4003 = vmul.f32 %v3965, 1.442695
        %v4004 = vpow.pop %v4003
        %v4005 = vmul.f32 %v3966, 1.442695
        %v4006 = vpow.pop %v4005
        %v4007 = vmul.f32 %v3967, 1.442695
        %v4008 = vpow.pop %v4007
        %v4009 = vmul.f32 %v3968, 1.442695
        %v4010 = vpow.pop %v4009
        %v4011 = vmul.f32 %v3969, 1.442695
        %v4012 = vpow.pop %v4011
        %v4013 = vmul.f32 %v3970, 1.442695
        %v4014 = vpow.pop %v4013
        %v4015 = vmul.f32 %v3971, 1.442695
        %v4016 = vpow.pop %v4015
        %v4017 = vmul.f32 %v3972, 1.442695
        %v4018 = vpow.pop %v4017
        %v4019 = vmul.f32 %v3973, 1.442695
        %v4020 = vpow.pop %v4019
        %v4021 = vmul.f32 %v3974, 1.442695
        %v4022 = vpow.pop %v4021
        %v4023 = vmul.f32 %v3975, 1.442695
        %v4024 = vpow.pop %v4023
        %v4025 = vmul.f32 %v3976, 1.442695
        %v4026 = vpow.pop %v4025
        %v4027 = vmul.f32 %v3977, 1.442695
        %v4028 = vpow.pop %v4027
        %v4029 = vmul.f32 %v3978, 1.442695
        %v4030 = vpow.pop %v4029
        %v4031 = vmul.f32 %v3979, 1.442695
        %v4032 = vpow.pop %v4031
        %v4033 = vmul.f32 %v3980, 1.442695
        %v4034 = vpow.pop %v4033
        %v4035 = vmul.f32 %v3981, 1.442695
        %v4036 = vpow.pop %v4035
        %v4037 = vmul.f32 %v3982, 1.442695
        %v4038 = vpow.pop %v4037
        %v4039 = vmul.f32 %v3983, 1.442695
        %v4040 = vpow.pop %v4039
        %v4041 = vmul.f32 %v3984, 1.442695
        %v4042 = vpow.pop %v4041
        %v4043 = vmul.f32 %v3985, 1.442695
        %v4044 = vpow.pop %v4043
        %v4045 = vmul.f32 %v3986, 1.442695
        %v4046 = vpow.pop %v4045
        %v4047 = vmul.f32 %v3987, 1.442695
        %v4048 = vpow.pop %v4047
        %v4049 = vmul.f32 %v3988, 1.442695
        %v4050 = vpow.pop %v4049
        %v4051 = vmul.f32 %v3989, 1.442695
        %v4052 = vpow.pop %v4051
        %v4053 = vmul.f32 %v3990, 1.442695
        %v4054 = vpow.pop %v4053
        %v4055 = vadd.f32 %v3992, 1.0
        %v4056 = vadd.f32 %v3994, 1.0
        %v4057 = vadd.f32 %v3996, 1.0
        %v4058 = vadd.f32 %v3998, 1.0
        %v4059 = vadd.f32 %v4000, 1.0
        %v4060 = vadd.f32 %v4002, 1.0
        %v4061 = vadd.f32 %v4004, 1.0
        %v4062 = vadd.f32 %v4006, 1.0
        %v4063 = vadd.f32 %v4008, 1.0
        %v4064 = vadd.f32 %v4010, 1.0
        %v4065 = vadd.f32 %v4012, 1.0
        %v4066 = vadd.f32 %v4014, 1.0
        %v4067 = vadd.f32 %v4016, 1.0
        %v4068 = vadd.f32 %v4018, 1.0
        %v4069 = vadd.f32 %v4020, 1.0
        %v4070 = vadd.f32 %v4022, 1.0
        %v4071 = vadd.f32 %v4024, 1.0
        %v4072 = vadd.f32 %v4026, 1.0
        %v4073 = vadd.f32 %v4028, 1.0
        %v4074 = vadd.f32 %v4030, 1.0
        %v4075 = vadd.f32 %v4032, 1.0
        %v4076 = vadd.f32 %v4034, 1.0
        %v4077 = vadd.f32 %v4036, 1.0
        %v4078 = vadd.f32 %v4038, 1.0
        %v4079 = vadd.f32 %v4040, 1.0
        %v4080 = vadd.f32 %v4042, 1.0
        %v4081 = vadd.f32 %v4044, 1.0
        %v4082 = vadd.f32 %v4046, 1.0
        %v4083 = vadd.f32 %v4048, 1.0
        %v4084 = vadd.f32 %v4050, 1.0
        %v4085 = vadd.f32 %v4052, 1.0
        %v4086 = vadd.f32 %v4054, 1.0
        %v4087 = vrcp.pop %v4055
        %v4088 = vmul.f32 1.0, %v4087
        %v4089 = vrcp.pop %v4056
        %v4090 = vmul.f32 1.0, %v4089
        %v4091 = vrcp.pop %v4057
        %v4092 = vmul.f32 1.0, %v4091
        %v4093 = vrcp.pop %v4058
        %v4094 = vmul.f32 1.0, %v4093
        %v4095 = vrcp.pop %v4059
        %v4096 = vmul.f32 1.0, %v4095
        %v4097 = vrcp.pop %v4060
        %v4098 = vmul.f32 1.0, %v4097
        %v4099 = vrcp.pop %v4061
        %v4100 = vmul.f32 1.0, %v4099
        %v4101 = vrcp.pop %v4062
        %v4102 = vmul.f32 1.0, %v4101
        %v4103 = vrcp.pop %v4063
        %v4104 = vmul.f32 1.0, %v4103
        %v4105 = vrcp.pop %v4064
        %v4106 = vmul.f32 1.0, %v4105
        %v4107 = vrcp.pop %v4065
        %v4108 = vmul.f32 1.0, %v4107
        %v4109 = vrcp.pop %v4066
        %v4110 = vmul.f32 1.0, %v4109
        %v4111 = vrcp.pop %v4067
        %v4112 = vmul.f32 1.0, %v4111
        %v4113 = vrcp.pop %v4068
        %v4114 = vmul.f32 1.0, %v4113
        %v4115 = vrcp.pop %v4069
        %v4116 = vmul.f32 1.0, %v4115
        %v4117 = vrcp.pop %v4070
        %v4118 = vmul.f32 1.0, %v4117
        %v4119 = vrcp.pop %v4071
        %v4120 = vmul.f32 1.0, %v4119
        %v4121 = vrcp.pop %v4072
        %v4122 = vmul.f32 1.0, %v4121
        %v4123 = vrcp.pop %v4073
        %v4124 = vmul.f32 1.0, %v4123
        %v4125 = vrcp.pop %v4074
        %v4126 = vmul.f32 1.0, %v4125
        %v4127 = vrcp.pop %v4075
        %v4128 = vmul.f32 1.0, %v4127
        %v4129 = vrcp.pop %v4076
        %v4130 = vmul.f32 1.0, %v4129
        %v4131 = vrcp.pop %v4077
        %v4132 = vmul.f32 1.0, %v4131
        %v4133 = vrcp.pop %v4078
        %v4134 = vmul.f32 1.0, %v4133
        %v4135 = vrcp.pop %v4079
        %v4136 = vmul.f32 1.0, %v4135
        %v4137 = vrcp.pop %v4080
        %v4138 = vmul.f32 1.0, %v4137
        %v4139 = vrcp.pop %v4081
        %v4140 = vmul.f32 1.0, %v4139
        %v4141 = vrcp.pop %v4082
        %v4142 = vmul.f32 1.0, %v4141
        %v4143 = vrcp.pop %v4083
        %v4144 = vmul.f32 1.0, %v4143
        %v4145 = vrcp.pop %v4084
        %v4146 = vmul.f32 1.0, %v4145
        %v4147 = vrcp.pop %v4085
        %v4148 = vmul.f32 1.0, %v4147
        %v4149 = vrcp.pop %v4086
        %v4150 = vmul.f32 1.0, %v4149
        %v4151 = vmul.f32 %v3750, %v4088
        %v4152 = vmul.f32 %v3752, %v4090
        %v4153 = vmul.f32 %v3803, %v4092
        %v4154 = vmul.f32 %v3805, %v4094
        %v4155 = vmul.f32 %v3856, %v4096
        %v4156 = vmul.f32 %v3858, %v4098
        %v4157 = vmul.f32 %v3909, %v4100
        %v4158 = vmul.f32 %v3911, %v4102
        %v4159 = vmul.f32 %v3754, %v4104
        %v4160 = vmul.f32 %v3756, %v4106
        %v4161 = vmul.f32 %v3807, %v4108
        %v4162 = vmul.f32 %v3809, %v4110
        %v4163 = vmul.f32 %v3860, %v4112
        %v4164 = vmul.f32 %v3862, %v4114
        %v4165 = vmul.f32 %v3913, %v4116
        %v4166 = vmul.f32 %v3915, %v4118
        %v4167 = vmul.f32 %v3760, %v4120
        %v4168 = vmul.f32 %v3762, %v4122
        %v4169 = vmul.f32 %v3813, %v4124
        %v4170 = vmul.f32 %v3815, %v4126
        %v4171 = vmul.f32 %v3866, %v4128
        %v4172 = vmul.f32 %v3868, %v4130
        %v4173 = vmul.f32 %v3919, %v4132
        %v4174 = vmul.f32 %v3921, %v4134
        %v4175 = vmul.f32 %v3764, %v4136
        %v4176 = vmul.f32 %v3766, %v4138
        %v4177 = vmul.f32 %v3817, %v4140
        %v4178 = vmul.f32 %v3819, %v4142
        %v4179 = vmul.f32 %v3870, %v4144
        %v4180 = vmul.f32 %v3872, %v4146
        %v4181 = vmul.f32 %v3923, %v4148
        %v4182 = vmul.f32 %v3925, %v4150
        %v4183 = vpack.c.bf16 %v4159, %v4151
        %v4184 = vpack.c.bf16 %v4160, %v4152
        %v4185 = vpack.c.bf16 %v4161, %v4153
        %v4186 = vpack.c.bf16 %v4162, %v4154
        %v4187 = vpack.c.bf16 %v4163, %v4155
        %v4188 = vpack.c.bf16 %v4164, %v4156
        %v4189 = vpack.c.bf16 %v4165, %v4157
        %v4190 = vpack.c.bf16 %v4166, %v4158
        %v4191 = vpack.c.bf16 %v4175, %v4167
        %v4192 = vpack.c.bf16 %v4176, %v4168
        %v4193 = vpack.c.bf16 %v4177, %v4169
        %v4194 = vpack.c.bf16 %v4178, %v4170
        %v4195 = vpack.c.bf16 %v4179, %v4171
        %v4196 = vpack.c.bf16 %v4180, %v4172
        %v4197 = vpack.c.bf16 %v4181, %v4173
        %v4198 = vpack.c.bf16 %v4182, %v4174
        %v4199 = vld [vmem:[#allocation21] sm:$0xff]
        %v4200 = vld [vmem:[#allocation21 + $0x8] sm:$0xff]
        %v4201 = vld [vmem:[#allocation21 + $0x10] sm:$0xff]
        %v4202 = vld [vmem:[#allocation21 + $0x18] sm:$0xff]
        %v4203 = vld [vmem:[#allocation21 + $0x20] sm:$0xff]
        %v4204 = vld [vmem:[#allocation21 + $0x28] sm:$0xff]
        %v4205 = vld [vmem:[#allocation21 + $0x30] sm:$0xff]
        %v4206 = vld [vmem:[#allocation21 + $0x38] sm:$0xff]
        %v4207 = vld [vmem:[#allocation21 + $0x40] sm:$0xff]
        %v4208 = vld [vmem:[#allocation21 + $0x48] sm:$0xff]
        %v4209 = vld [vmem:[#allocation21 + $0x50] sm:$0xff]
        %v4210 = vld [vmem:[#allocation21 + $0x58] sm:$0xff]
        %v4211 = vld [vmem:[#allocation21 + $0x60] sm:$0xff]
        %v4212 = vld [vmem:[#allocation21 + $0x68] sm:$0xff]
        %v4213 = vld [vmem:[#allocation21 + $0x70] sm:$0xff]
        %v4214 = vld [vmem:[#allocation21 + $0x78] sm:$0xff]
        %v4215 = vld [vmem:[#allocation21 + $0x80] sm:$0xff]
        %v4216 = vld [vmem:[#allocation21 + $0x88] sm:$0xff]
        %v4217 = vld [vmem:[#allocation21 + $0x90] sm:$0xff]
        %v4218 = vld [vmem:[#allocation21 + $0x98] sm:$0xff]
        %v4219 = vld [vmem:[#allocation21 + $0xa0] sm:$0xff]
        %v4220 = vld [vmem:[#allocation21 + $0xa8] sm:$0xff]
        %v4221 = vld [vmem:[#allocation21 + $0xb0] sm:$0xff]
        %v4222 = vld [vmem:[#allocation21 + $0xb8] sm:$0xff]
        %v4223 = vld [vmem:[#allocation21 + $0xc0] sm:$0xff]
        %v4224 = vld [vmem:[#allocation21 + $0xc8] sm:$0xff]
        %v4225 = vld [vmem:[#allocation21 + $0xd0] sm:$0xff]
        %v4226 = vld [vmem:[#allocation21 + $0xd8] sm:$0xff]
        %v4227 = vld [vmem:[#allocation21 + $0xe0] sm:$0xff]
        %v4228 = vld [vmem:[#allocation21 + $0xe8] sm:$0xff]
        %v4229 = vld [vmem:[#allocation21 + $0xf0] sm:$0xff]
        %v4230 = vld [vmem:[#allocation21 + $0xf8] sm:$0xff]
        %v4231 = vld [vmem:[#allocation21 + $0x100] sm:$0xff]
        %v4232 = vld [vmem:[#allocation21 + $0x108] sm:$0xff]
        %v4233 = vld [vmem:[#allocation21 + $0x110] sm:$0xff]
        %v4234 = vld [vmem:[#allocation21 + $0x118] sm:$0xff]
        %v4235 = vld [vmem:[#allocation21 + $0x120] sm:$0xff]
        %v4236 = vld [vmem:[#allocation21 + $0x128] sm:$0xff]
        %v4237 = vld [vmem:[#allocation21 + $0x130] sm:$0xff]
        %v4238 = vld [vmem:[#allocation21 + $0x138] sm:$0xff]
        %v4239 = vld [vmem:[#allocation21 + $0x140] sm:$0xff]
        %v4240 = vld [vmem:[#allocation21 + $0x148] sm:$0xff]
        %v4241 = vld [vmem:[#allocation21 + $0x150] sm:$0xff]
        %v4242 = vld [vmem:[#allocation21 + $0x158] sm:$0xff]
        %v4243 = vld [vmem:[#allocation21 + $0x160] sm:$0xff]
        %v4244 = vld [vmem:[#allocation21 + $0x168] sm:$0xff]
        %v4245 = vld [vmem:[#allocation21 + $0x170] sm:$0xff]
        %v4246 = vld [vmem:[#allocation21 + $0x178] sm:$0xff]
        %v4247 = vld [vmem:[#allocation21 + $0x180] sm:$0xff]
        %v4248 = vld [vmem:[#allocation21 + $0x188] sm:$0xff]
        %v4249 = vld [vmem:[#allocation21 + $0x190] sm:$0xff]
        %v4250 = vld [vmem:[#allocation21 + $0x198] sm:$0xff]
        %v4251 = vld [vmem:[#allocation21 + $0x1a0] sm:$0xff]
        %v4252 = vld [vmem:[#allocation21 + $0x1a8] sm:$0xff]
        %v4253 = vld [vmem:[#allocation21 + $0x1b0] sm:$0xff]
        %v4254 = vld [vmem:[#allocation21 + $0x1b8] sm:$0xff]
        %v4255 = vld [vmem:[#allocation21 + $0x1c0] sm:$0xff]
        %v4256 = vld [vmem:[#allocation21 + $0x1c8] sm:$0xff]
        %v4257 = vld [vmem:[#allocation21 + $0x1d0] sm:$0xff]
        %v4258 = vld [vmem:[#allocation21 + $0x1d8] sm:$0xff]
        %v4259 = vld [vmem:[#allocation21 + $0x1e0] sm:$0xff]
        %v4260 = vld [vmem:[#allocation21 + $0x1e8] sm:$0xff]
        %v4261 = vld [vmem:[#allocation21 + $0x1f0] sm:$0xff]
        %v4262 = vld [vmem:[#allocation21 + $0x1f8] sm:$0xff]
        %v4263 = vld [vmem:[#allocation21 + $0x200] sm:$0xff]
        %v4264 = vld [vmem:[#allocation21 + $0x208] sm:$0xff]
        %v4265 = vld [vmem:[#allocation21 + $0x210] sm:$0xff]
        %v4266 = vld [vmem:[#allocation21 + $0x218] sm:$0xff]
        %v4267 = vld [vmem:[#allocation21 + $0x220] sm:$0xff]
        %v4268 = vld [vmem:[#allocation21 + $0x228] sm:$0xff]
        %v4269 = vld [vmem:[#allocation21 + $0x230] sm:$0xff]
        %v4270 = vld [vmem:[#allocation21 + $0x238] sm:$0xff]
        %v4271 = vld [vmem:[#allocation21 + $0x240] sm:$0xff]
        %v4272 = vld [vmem:[#allocation21 + $0x248] sm:$0xff]
        %v4273 = vld [vmem:[#allocation21 + $0x250] sm:$0xff]
        %v4274 = vld [vmem:[#allocation21 + $0x258] sm:$0xff]
        %v4275 = vld [vmem:[#allocation21 + $0x260] sm:$0xff]
        %v4276 = vld [vmem:[#allocation21 + $0x268] sm:$0xff]
        %v4277 = vld [vmem:[#allocation21 + $0x270] sm:$0xff]
        %v4278 = vld [vmem:[#allocation21 + $0x278] sm:$0xff]
        %v4279 = vld [vmem:[#allocation21 + $0x280] sm:$0xff]
        %v4280 = vld [vmem:[#allocation21 + $0x288] sm:$0xff]
        %v4281 = vld [vmem:[#allocation21 + $0x290] sm:$0xff]
        %v4282 = vld [vmem:[#allocation21 + $0x298] sm:$0xff]
        %v4283 = vld [vmem:[#allocation21 + $0x2a0] sm:$0xff]
        %v4284 = vld [vmem:[#allocation21 + $0x2a8] sm:$0xff]
        %v4285 = vld [vmem:[#allocation21 + $0x2b0] sm:$0xff]
        %v4286 = vld [vmem:[#allocation21 + $0x2b8] sm:$0xff]
        %v4287 = vld [vmem:[#allocation21 + $0x2c0] sm:$0xff]
        %v4288 = vld [vmem:[#allocation21 + $0x2c8] sm:$0xff]
        %v4289 = vld [vmem:[#allocation21 + $0x2d0] sm:$0xff]
        %v4290 = vld [vmem:[#allocation21 + $0x2d8] sm:$0xff]
        %v4291 = vld [vmem:[#allocation21 + $0x2e0] sm:$0xff]
        %v4292 = vld [vmem:[#allocation21 + $0x2e8] sm:$0xff]
        %v4293 = vld [vmem:[#allocation21 + $0x2f0] sm:$0xff]
        %v4294 = vld [vmem:[#allocation21 + $0x2f8] sm:$0xff]
        %v4295 = vld [vmem:[#allocation21 + $0x300] sm:$0xff]
        %v4296 = vld [vmem:[#allocation21 + $0x308] sm:$0xff]
        %v4297 = vld [vmem:[#allocation21 + $0x310] sm:$0xff]
        %v4298 = vld [vmem:[#allocation21 + $0x318] sm:$0xff]
        %v4299 = vld [vmem:[#allocation21 + $0x320] sm:$0xff]
        %v4300 = vld [vmem:[#allocation21 + $0x328] sm:$0xff]
        %v4301 = vld [vmem:[#allocation21 + $0x330] sm:$0xff]
        %v4302 = vld [vmem:[#allocation21 + $0x338] sm:$0xff]
        %v4303 = vld [vmem:[#allocation21 + $0x340] sm:$0xff]
        %v4304 = vld [vmem:[#allocation21 + $0x348] sm:$0xff]
        %v4305 = vld [vmem:[#allocation21 + $0x350] sm:$0xff]
        %v4306 = vld [vmem:[#allocation21 + $0x358] sm:$0xff]
        %v4307 = vld [vmem:[#allocation21 + $0x360] sm:$0xff]
        %v4308 = vld [vmem:[#allocation21 + $0x368] sm:$0xff]
        %v4309 = vld [vmem:[#allocation21 + $0x370] sm:$0xff]
        %v4310 = vld [vmem:[#allocation21 + $0x378] sm:$0xff]
        %v4311 = vld [vmem:[#allocation21 + $0x380] sm:$0xff]
        %v4312 = vld [vmem:[#allocation21 + $0x388] sm:$0xff]
        %v4313 = vld [vmem:[#allocation21 + $0x390] sm:$0xff]
        %v4314 = vld [vmem:[#allocation21 + $0x398] sm:$0xff]
        %v4315 = vld [vmem:[#allocation21 + $0x3a0] sm:$0xff]
        %v4316 = vld [vmem:[#allocation21 + $0x3a8] sm:$0xff]
        %v4317 = vld [vmem:[#allocation21 + $0x3b0] sm:$0xff]
        %v4318 = vld [vmem:[#allocation21 + $0x3b8] sm:$0xff]
        %v4319 = vld [vmem:[#allocation21 + $0x3c0] sm:$0xff]
        %v4320 = vld [vmem:[#allocation21 + $0x3c8] sm:$0xff]
        %v4321 = vld [vmem:[#allocation21 + $0x3d0] sm:$0xff]
        %v4322 = vld [vmem:[#allocation21 + $0x3d8] sm:$0xff]
        %v4323 = vld [vmem:[#allocation21 + $0x3e0] sm:$0xff]
        %v4324 = vld [vmem:[#allocation21 + $0x3e8] sm:$0xff]
        %v4325 = vld [vmem:[#allocation21 + $0x3f0] sm:$0xff]
        %v4326 = vld [vmem:[#allocation21 + $0x3f8] sm:$0xff]
        %v4327 = vld [vmem:[#allocation23] sm:$0x3]
        %v4329 = vlaneseq
        %v4330 = vshrl.u32 %v4329, 7
        %v4331 = vsub.s32 0, %v4330
        %v4332 = vrot.slane %v4327, %v4331
        %v4333 = vlaneseq
        %v4334 = vshrl.u32 %v4333, 7
        %v4335 = vsub.s32 1, %v4334
        %v4336 = vrot.slane %v4327, %v4335
        %v4467 = vunpack.c.l.b16 %v4199
        %v4468 = vunpack.c.h.b16 %v4199
        %v4469 = vunpack.c.l.b16 %v4200
        %v4470 = vunpack.c.h.b16 %v4200
        %v4471 = vunpack.c.l.b16 %v4201
        %v4472 = vunpack.c.h.b16 %v4201
        %v4473 = vunpack.c.l.b16 %v4202
        %v4474 = vunpack.c.h.b16 %v4202
        %v4475 = vunpack.c.l.b16 %v4203
        %v4476 = vunpack.c.h.b16 %v4203
        %v4477 = vunpack.c.l.b16 %v4204
        %v4478 = vunpack.c.h.b16 %v4204
        %v4479 = vunpack.c.l.b16 %v4205
        %v4480 = vunpack.c.h.b16 %v4205
        %v4481 = vunpack.c.l.b16 %v4206
        %v4482 = vunpack.c.h.b16 %v4206
        %v4483 = vunpack.c.l.b16 %v4207
        %v4484 = vunpack.c.h.b16 %v4207
        %v4485 = vunpack.c.l.b16 %v4208
        %v4486 = vunpack.c.h.b16 %v4208
        %v4487 = vunpack.c.l.b16 %v4209
        %v4488 = vunpack.c.h.b16 %v4209
        %v4489 = vunpack.c.l.b16 %v4210
        %v4490 = vunpack.c.h.b16 %v4210
        %v4491 = vunpack.c.l.b16 %v4211
        %v4492 = vunpack.c.h.b16 %v4211
        %v4493 = vunpack.c.l.b16 %v4212
        %v4494 = vunpack.c.h.b16 %v4212
        %v4495 = vunpack.c.l.b16 %v4213
        %v4496 = vunpack.c.h.b16 %v4213
        %v4497 = vunpack.c.l.b16 %v4214
        %v4498 = vunpack.c.h.b16 %v4214
        %v4499 = vunpack.c.l.b16 %v4215
        %v4500 = vunpack.c.h.b16 %v4215
        %v4501 = vunpack.c.l.b16 %v4216
        %v4502 = vunpack.c.h.b16 %v4216
        %v4503 = vunpack.c.l.b16 %v4217
        %v4504 = vunpack.c.h.b16 %v4217
        %v4505 = vunpack.c.l.b16 %v4218
        %v4506 = vunpack.c.h.b16 %v4218
        %v4507 = vunpack.c.l.b16 %v4219
        %v4508 = vunpack.c.h.b16 %v4219
        %v4509 = vunpack.c.l.b16 %v4220
        %v4510 = vunpack.c.h.b16 %v4220
        %v4511 = vunpack.c.l.b16 %v4221
        %v4512 = vunpack.c.h.b16 %v4221
        %v4513 = vunpack.c.l.b16 %v4222
        %v4514 = vunpack.c.h.b16 %v4222
        %v4515 = vunpack.c.l.b16 %v4223
        %v4516 = vunpack.c.h.b16 %v4223
        %v4517 = vunpack.c.l.b16 %v4224
        %v4518 = vunpack.c.h.b16 %v4224
        %v4519 = vunpack.c.l.b16 %v4225
        %v4520 = vunpack.c.h.b16 %v4225
        %v4521 = vunpack.c.l.b16 %v4226
        %v4522 = vunpack.c.h.b16 %v4226
        %v4523 = vunpack.c.l.b16 %v4227
        %v4524 = vunpack.c.h.b16 %v4227
        %v4525 = vunpack.c.l.b16 %v4228
        %v4526 = vunpack.c.h.b16 %v4228
        %v4527 = vunpack.c.l.b16 %v4229
        %v4528 = vunpack.c.h.b16 %v4229
        %v4529 = vunpack.c.l.b16 %v4230
        %v4530 = vunpack.c.h.b16 %v4230
        %v4531 = vunpack.c.l.b16 %v4231
        %v4532 = vunpack.c.h.b16 %v4231
        %v4533 = vunpack.c.l.b16 %v4232
        %v4534 = vunpack.c.h.b16 %v4232
        %v4535 = vunpack.c.l.b16 %v4233
        %v4536 = vunpack.c.h.b16 %v4233
        %v4537 = vunpack.c.l.b16 %v4234
        %v4538 = vunpack.c.h.b16 %v4234
        %v4539 = vunpack.c.l.b16 %v4235
        %v4540 = vunpack.c.h.b16 %v4235
        %v4541 = vunpack.c.l.b16 %v4236
        %v4542 = vunpack.c.h.b16 %v4236
        %v4543 = vunpack.c.l.b16 %v4237
        %v4544 = vunpack.c.h.b16 %v4237
        %v4545 = vunpack.c.l.b16 %v4238
        %v4546 = vunpack.c.h.b16 %v4238
        %v4547 = vunpack.c.l.b16 %v4239
        %v4548 = vunpack.c.h.b16 %v4239
        %v4549 = vunpack.c.l.b16 %v4240
        %v4550 = vunpack.c.h.b16 %v4240
        %v4551 = vunpack.c.l.b16 %v4241
        %v4552 = vunpack.c.h.b16 %v4241
        %v4553 = vunpack.c.l.b16 %v4242
        %v4554 = vunpack.c.h.b16 %v4242
        %v4555 = vunpack.c.l.b16 %v4243
        %v4556 = vunpack.c.h.b16 %v4243
        %v4557 = vunpack.c.l.b16 %v4244
        %v4558 = vunpack.c.h.b16 %v4244
        %v4559 = vunpack.c.l.b16 %v4245
        %v4560 = vunpack.c.h.b16 %v4245
        %v4561 = vunpack.c.l.b16 %v4246
        %v4562 = vunpack.c.h.b16 %v4246
        %v4563 = vunpack.c.l.b16 %v4247
        %v4564 = vunpack.c.h.b16 %v4247
        %v4565 = vunpack.c.l.b16 %v4248
        %v4566 = vunpack.c.h.b16 %v4248
        %v4567 = vunpack.c.l.b16 %v4249
        %v4568 = vunpack.c.h.b16 %v4249
        %v4569 = vunpack.c.l.b16 %v4250
        %v4570 = vunpack.c.h.b16 %v4250
        %v4571 = vunpack.c.l.b16 %v4251
        %v4572 = vunpack.c.h.b16 %v4251
        %v4573 = vunpack.c.l.b16 %v4252
        %v4574 = vunpack.c.h.b16 %v4252
        %v4575 = vunpack.c.l.b16 %v4253
        %v4576 = vunpack.c.h.b16 %v4253
        %v4577 = vunpack.c.l.b16 %v4254
        %v4578 = vunpack.c.h.b16 %v4254
        %v4579 = vunpack.c.l.b16 %v4255
        %v4580 = vunpack.c.h.b16 %v4255
        %v4581 = vunpack.c.l.b16 %v4256
        %v4582 = vunpack.c.h.b16 %v4256
        %v4583 = vunpack.c.l.b16 %v4257
        %v4584 = vunpack.c.h.b16 %v4257
        %v4585 = vunpack.c.l.b16 %v4258
        %v4586 = vunpack.c.h.b16 %v4258
        %v4587 = vunpack.c.l.b16 %v4259
        %v4588 = vunpack.c.h.b16 %v4259
        %v4589 = vunpack.c.l.b16 %v4260
        %v4590 = vunpack.c.h.b16 %v4260
        %v4591 = vunpack.c.l.b16 %v4261
        %v4592 = vunpack.c.h.b16 %v4261
        %v4593 = vunpack.c.l.b16 %v4262
        %v4594 = vunpack.c.h.b16 %v4262
        %v4595 = vunpack.c.l.b16 %v4263
        %v4596 = vunpack.c.h.b16 %v4263
        %v4597 = vunpack.c.l.b16 %v4264
        %v4598 = vunpack.c.h.b16 %v4264
        %v4599 = vunpack.c.l.b16 %v4265
        %v4600 = vunpack.c.h.b16 %v4265
        %v4601 = vunpack.c.l.b16 %v4266
        %v4602 = vunpack.c.h.b16 %v4266
        %v4603 = vunpack.c.l.b16 %v4267
        %v4604 = vunpack.c.h.b16 %v4267
        %v4605 = vunpack.c.l.b16 %v4268
        %v4606 = vunpack.c.h.b16 %v4268
        %v4607 = vunpack.c.l.b16 %v4269
        %v4608 = vunpack.c.h.b16 %v4269
        %v4609 = vunpack.c.l.b16 %v4270
        %v4610 = vunpack.c.h.b16 %v4270
        %v4611 = vunpack.c.l.b16 %v4271
        %v4612 = vunpack.c.h.b16 %v4271
        %v4613 = vunpack.c.l.b16 %v4272
        %v4614 = vunpack.c.h.b16 %v4272
        %v4615 = vunpack.c.l.b16 %v4273
        %v4616 = vunpack.c.h.b16 %v4273
        %v4617 = vunpack.c.l.b16 %v4274
        %v4618 = vunpack.c.h.b16 %v4274
        %v4619 = vunpack.c.l.b16 %v4275
        %v4620 = vunpack.c.h.b16 %v4275
        %v4621 = vunpack.c.l.b16 %v4276
        %v4622 = vunpack.c.h.b16 %v4276
        %v4623 = vunpack.c.l.b16 %v4277
        %v4624 = vunpack.c.h.b16 %v4277
        %v4625 = vunpack.c.l.b16 %v4278
        %v4626 = vunpack.c.h.b16 %v4278
        %v4627 = vunpack.c.l.b16 %v4279
        %v4628 = vunpack.c.h.b16 %v4279
        %v4629 = vunpack.c.l.b16 %v4280
        %v4630 = vunpack.c.h.b16 %v4280
        %v4631 = vunpack.c.l.b16 %v4281
        %v4632 = vunpack.c.h.b16 %v4281
        %v4633 = vunpack.c.l.b16 %v4282
        %v4634 = vunpack.c.h.b16 %v4282
        %v4635 = vunpack.c.l.b16 %v4283
        %v4636 = vunpack.c.h.b16 %v4283
        %v4637 = vunpack.c.l.b16 %v4284
        %v4638 = vunpack.c.h.b16 %v4284
        %v4639 = vunpack.c.l.b16 %v4285
        %v4640 = vunpack.c.h.b16 %v4285
        %v4641 = vunpack.c.l.b16 %v4286
        %v4642 = vunpack.c.h.b16 %v4286
        %v4643 = vunpack.c.l.b16 %v4287
        %v4644 = vunpack.c.h.b16 %v4287
        %v4645 = vunpack.c.l.b16 %v4288
        %v4646 = vunpack.c.h.b16 %v4288
        %v4647 = vunpack.c.l.b16 %v4289
        %v4648 = vunpack.c.h.b16 %v4289
        %v4649 = vunpack.c.l.b16 %v4290
        %v4650 = vunpack.c.h.b16 %v4290
        %v4651 = vunpack.c.l.b16 %v4291
        %v4652 = vunpack.c.h.b16 %v4291
        %v4653 = vunpack.c.l.b16 %v4292
        %v4654 = vunpack.c.h.b16 %v4292
        %v4655 = vunpack.c.l.b16 %v4293
        %v4656 = vunpack.c.h.b16 %v4293
        %v4657 = vunpack.c.l.b16 %v4294
        %v4658 = vunpack.c.h.b16 %v4294
        %v4659 = vunpack.c.l.b16 %v4295
        %v4660 = vunpack.c.h.b16 %v4295
        %v4661 = vunpack.c.l.b16 %v4296
        %v4662 = vunpack.c.h.b16 %v4296
        %v4663 = vunpack.c.l.b16 %v4297
        %v4664 = vunpack.c.h.b16 %v4297
        %v4665 = vunpack.c.l.b16 %v4298
        %v4666 = vunpack.c.h.b16 %v4298
        %v4667 = vunpack.c.l.b16 %v4299
        %v4668 = vunpack.c.h.b16 %v4299
        %v4669 = vunpack.c.l.b16 %v4300
        %v4670 = vunpack.c.h.b16 %v4300
        %v4671 = vunpack.c.l.b16 %v4301
        %v4672 = vunpack.c.h.b16 %v4301
        %v4673 = vunpack.c.l.b16 %v4302
        %v4674 = vunpack.c.h.b16 %v4302
        %v4675 = vunpack.c.l.b16 %v4303
        %v4676 = vunpack.c.h.b16 %v4303
        %v4677 = vunpack.c.l.b16 %v4304
        %v4678 = vunpack.c.h.b16 %v4304
        %v4679 = vunpack.c.l.b16 %v4305
        %v4680 = vunpack.c.h.b16 %v4305
        %v4681 = vunpack.c.l.b16 %v4306
        %v4682 = vunpack.c.h.b16 %v4306
        %v4683 = vunpack.c.l.b16 %v4307
        %v4684 = vunpack.c.h.b16 %v4307
        %v4685 = vunpack.c.l.b16 %v4308
        %v4686 = vunpack.c.h.b16 %v4308
        %v4687 = vunpack.c.l.b16 %v4309
        %v4688 = vunpack.c.h.b16 %v4309
        %v4689 = vunpack.c.l.b16 %v4310
        %v4690 = vunpack.c.h.b16 %v4310
        %v4691 = vunpack.c.l.b16 %v4311
        %v4692 = vunpack.c.h.b16 %v4311
        %v4693 = vunpack.c.l.b16 %v4312
        %v4694 = vunpack.c.h.b16 %v4312
        %v4695 = vunpack.c.l.b16 %v4313
        %v4696 = vunpack.c.h.b16 %v4313
        %v4697 = vunpack.c.l.b16 %v4314
        %v4698 = vunpack.c.h.b16 %v4314
        %v4699 = vunpack.c.l.b16 %v4315
        %v4700 = vunpack.c.h.b16 %v4315
        %v4701 = vunpack.c.l.b16 %v4316
        %v4702 = vunpack.c.h.b16 %v4316
        %v4703 = vunpack.c.l.b16 %v4317
        %v4704 = vunpack.c.h.b16 %v4317
        %v4705 = vunpack.c.l.b16 %v4318
        %v4706 = vunpack.c.h.b16 %v4318
        %v4707 = vunpack.c.l.b16 %v4319
        %v4708 = vunpack.c.h.b16 %v4319
        %v4709 = vunpack.c.l.b16 %v4320
        %v4710 = vunpack.c.h.b16 %v4320
        %v4711 = vunpack.c.l.b16 %v4321
        %v4712 = vunpack.c.h.b16 %v4321
        %v4713 = vunpack.c.l.b16 %v4322
        %v4714 = vunpack.c.h.b16 %v4322
        %v4715 = vunpack.c.l.b16 %v4323
        %v4716 = vunpack.c.h.b16 %v4323
        %v4717 = vunpack.c.l.b16 %v4324
        %v4718 = vunpack.c.h.b16 %v4324
        %v4719 = vunpack.c.l.b16 %v4325
        %v4720 = vunpack.c.h.b16 %v4325
        %v4721 = vunpack.c.l.b16 %v4326
        %v4722 = vunpack.c.h.b16 %v4326
        %v4723 = vpack.c.b16 %v4469, %v4467
        %v4724 = vpack.c.b16 %v4470, %v4468
        %v4725 = vpack.c.b16 %v4473, %v4471
        %v4726 = vpack.c.b16 %v4474, %v4472
        %v4727 = vpack.c.b16 %v4477, %v4475
        %v4728 = vpack.c.b16 %v4478, %v4476
        %v4729 = vpack.c.b16 %v4481, %v4479
        %v4730 = vpack.c.b16 %v4482, %v4480
        %v4731 = vpack.c.b16 %v4485, %v4483
        %v4732 = vpack.c.b16 %v4486, %v4484
        %v4733 = vpack.c.b16 %v4489, %v4487
        %v4734 = vpack.c.b16 %v4490, %v4488
        %v4735 = vpack.c.b16 %v4493, %v4491
        %v4736 = vpack.c.b16 %v4494, %v4492
        %v4737 = vpack.c.b16 %v4497, %v4495
        %v4738 = vpack.c.b16 %v4498, %v4496
        %v4739 = vpack.c.b16 %v4501, %v4499
        %v4740 = vpack.c.b16 %v4502, %v4500
        %v4741 = vpack.c.b16 %v4505, %v4503
        %v4742 = vpack.c.b16 %v4506, %v4504
        %v4743 = vpack.c.b16 %v4509, %v4507
        %v4744 = vpack.c.b16 %v4510, %v4508
        %v4745 = vpack.c.b16 %v4513, %v4511
        %v4746 = vpack.c.b16 %v4514, %v4512
        %v4747 = vpack.c.b16 %v4517, %v4515
        %v4748 = vpack.c.b16 %v4518, %v4516
        %v4749 = vpack.c.b16 %v4521, %v4519
        %v4750 = vpack.c.b16 %v4522, %v4520
        %v4751 = vpack.c.b16 %v4525, %v4523
        %v4752 = vpack.c.b16 %v4526, %v4524
        %v4753 = vpack.c.b16 %v4529, %v4527
        %v4754 = vpack.c.b16 %v4530, %v4528
        %v4755 = vpack.c.b16 %v4533, %v4531
        %v4756 = vpack.c.b16 %v4534, %v4532
        %v4757 = vpack.c.b16 %v4537, %v4535
        %v4758 = vpack.c.b16 %v4538, %v4536
        %v4759 = vpack.c.b16 %v4541, %v4539
        %v4760 = vpack.c.b16 %v4542, %v4540
        %v4761 = vpack.c.b16 %v4545, %v4543
        %v4762 = vpack.c.b16 %v4546, %v4544
        %v4763 = vpack.c.b16 %v4549, %v4547
        %v4764 = vpack.c.b16 %v4550, %v4548
        %v4765 = vpack.c.b16 %v4553, %v4551
        %v4766 = vpack.c.b16 %v4554, %v4552
        %v4767 = vpack.c.b16 %v4557, %v4555
        %v4768 = vpack.c.b16 %v4558, %v4556
        %v4769 = vpack.c.b16 %v4561, %v4559
        %v4770 = vpack.c.b16 %v4562, %v4560
        %v4771 = vpack.c.b16 %v4565, %v4563
        %v4772 = vpack.c.b16 %v4566, %v4564
        %v4773 = vpack.c.b16 %v4569, %v4567
        %v4774 = vpack.c.b16 %v4570, %v4568
        %v4775 = vpack.c.b16 %v4573, %v4571
        %v4776 = vpack.c.b16 %v4574, %v4572
        %v4777 = vpack.c.b16 %v4577, %v4575
        %v4778 = vpack.c.b16 %v4578, %v4576
        %v4779 = vpack.c.b16 %v4581, %v4579
        %v4780 = vpack.c.b16 %v4582, %v4580
        %v4781 = vpack.c.b16 %v4585, %v4583
        %v4782 = vpack.c.b16 %v4586, %v4584
        %v4783 = vpack.c.b16 %v4589, %v4587
        %v4784 = vpack.c.b16 %v4590, %v4588
        %v4785 = vpack.c.b16 %v4593, %v4591
        %v4786 = vpack.c.b16 %v4594, %v4592
        %v4787 = vpack.c.b16 %v4597, %v4595
        %v4788 = vpack.c.b16 %v4598, %v4596
        %v4789 = vpack.c.b16 %v4601, %v4599
        %v4790 = vpack.c.b16 %v4602, %v4600
        %v4791 = vpack.c.b16 %v4605, %v4603
        %v4792 = vpack.c.b16 %v4606, %v4604
        %v4793 = vpack.c.b16 %v4609, %v4607
        %v4794 = vpack.c.b16 %v4610, %v4608
        %v4795 = vpack.c.b16 %v4613, %v4611
        %v4796 = vpack.c.b16 %v4614, %v4612
        %v4797 = vpack.c.b16 %v4617, %v4615
        %v4798 = vpack.c.b16 %v4618, %v4616
        %v4799 = vpack.c.b16 %v4621, %v4619
        %v4800 = vpack.c.b16 %v4622, %v4620
        %v4801 = vpack.c.b16 %v4625, %v4623
        %v4802 = vpack.c.b16 %v4626, %v4624
        %v4803 = vpack.c.b16 %v4629, %v4627
        %v4804 = vpack.c.b16 %v4630, %v4628
        %v4805 = vpack.c.b16 %v4633, %v4631
        %v4806 = vpack.c.b16 %v4634, %v4632
        %v4807 = vpack.c.b16 %v4637, %v4635
        %v4808 = vpack.c.b16 %v4638, %v4636
        %v4809 = vpack.c.b16 %v4641, %v4639
        %v4810 = vpack.c.b16 %v4642, %v4640
        %v4811 = vpack.c.b16 %v4645, %v4643
        %v4812 = vpack.c.b16 %v4646, %v4644
        %v4813 = vpack.c.b16 %v4649, %v4647
        %v4814 = vpack.c.b16 %v4650, %v4648
        %v4815 = vpack.c.b16 %v4653, %v4651
        %v4816 = vpack.c.b16 %v4654, %v4652
        %v4817 = vpack.c.b16 %v4657, %v4655
        %v4818 = vpack.c.b16 %v4658, %v4656
        %v4819 = vpack.c.b16 %v4661, %v4659
        %v4820 = vpack.c.b16 %v4662, %v4660
        %v4821 = vpack.c.b16 %v4665, %v4663
        %v4822 = vpack.c.b16 %v4666, %v4664
        %v4823 = vpack.c.b16 %v4669, %v4667
        %v4824 = vpack.c.b16 %v4670, %v4668
        %v4825 = vpack.c.b16 %v4673, %v4671
        %v4826 = vpack.c.b16 %v4674, %v4672
        %v4827 = vpack.c.b16 %v4677, %v4675
        %v4828 = vpack.c.b16 %v4678, %v4676
        %v4829 = vpack.c.b16 %v4681, %v4679
        %v4830 = vpack.c.b16 %v4682, %v4680
        %v4831 = vpack.c.b16 %v4685, %v4683
        %v4832 = vpack.c.b16 %v4686, %v4684
        %v4833 = vpack.c.b16 %v4689, %v4687
        %v4834 = vpack.c.b16 %v4690, %v4688
        %v4835 = vpack.c.b16 %v4693, %v4691
        %v4836 = vpack.c.b16 %v4694, %v4692
        %v4837 = vpack.c.b16 %v4697, %v4695
        %v4838 = vpack.c.b16 %v4698, %v4696
        %v4839 = vpack.c.b16 %v4701, %v4699
        %v4840 = vpack.c.b16 %v4702, %v4700
        %v4841 = vpack.c.b16 %v4705, %v4703
        %v4842 = vpack.c.b16 %v4706, %v4704
        %v4843 = vpack.c.b16 %v4709, %v4707
        %v4844 = vpack.c.b16 %v4710, %v4708
        %v4845 = vpack.c.b16 %v4713, %v4711
        %v4846 = vpack.c.b16 %v4714, %v4712
        %v4847 = vpack.c.b16 %v4717, %v4715
        %v4848 = vpack.c.b16 %v4718, %v4716
        %v4849 = vpack.c.b16 %v4721, %v4719
        %v4850 = vpack.c.b16 %v4722, %v4720
        %4979 = vmatprep.subr.bf16.mxu0 %v4724
        %4980 = vmatpush1.bf16.msra.mxu0 %v4723
        %4981 = vmatprep.subr.bf16.mxu0 %v4726
        %4982 = vmatpush1.bf16.msra.mxu0 %v4725
        %4983 = vmatprep.subr.bf16.mxu0 %v4728
        %4984 = vmatpush1.bf16.msra.mxu0 %v4727
        %4985 = vmatprep.subr.bf16.mxu0 %v4730
        %4986 = vmatpush1.bf16.msra.mxu0 %v4729
        %4987 = vmatprep.subr.bf16.mxu0 %v4732
        %4988 = vmatpush1.bf16.msra.mxu0 %v4731
        %4989 = vmatprep.subr.bf16.mxu0 %v4734
        %4990 = vmatpush1.bf16.msra.mxu0 %v4733
        %4991 = vmatprep.subr.bf16.mxu0 %v4736
        %4992 = vmatpush1.bf16.msra.mxu0 %v4735
        %4993 = vmatprep.subr.bf16.mxu0 %v4738
        %4994 = vmatpush1.bf16.msra.mxu0 %v4737
        %4995 = vmatprep.subr.bf16.mxu0 %v4740
        %4996 = vmatpush1.bf16.msra.mxu0 %v4739
        %4997 = vmatprep.subr.bf16.mxu0 %v4742
        %4998 = vmatpush1.bf16.msra.mxu0 %v4741
        %4999 = vmatprep.subr.bf16.mxu0 %v4744
        %5000 = vmatpush1.bf16.msra.mxu0 %v4743
        %5001 = vmatprep.subr.bf16.mxu0 %v4746
        %5002 = vmatpush1.bf16.msra.mxu0 %v4745
        %5003 = vmatprep.subr.bf16.mxu0 %v4748
        %5004 = vmatpush1.bf16.msra.mxu0 %v4747
        %5005 = vmatprep.subr.bf16.mxu0 %v4750
        %5006 = vmatpush1.bf16.msra.mxu0 %v4749
        %5007 = vmatprep.subr.bf16.mxu0 %v4752
        %5008 = vmatpush1.bf16.msra.mxu0 %v4751
        %5009 = vmatprep.subr.bf16.mxu0 %v4754
        %5010 = vmatpush1.bf16.msra.mxu0 %v4753
        %5011 = vmatprep.mubr.bf16.mxu0 %v4184
        %5012 = vmatmul.mubr.bf16.gmra.mrb[0].mxu0 %v4183
        %v5013 = vpop.f32.mrb[0].mxu0
        %v5014 = vadd.f32 %v4332, %v5013
        %v5015 = vpop.f32.mrb[0].mxu0
        %v5016 = vadd.f32 %v4336, %v5015
        %v5017 = vpop.f32.mrb[0].mxu0
        %v5018 = vadd.f32 %v4332, %v5017
        %v5019 = vpop.f32.mrb[0].mxu0
        %v5020 = vadd.f32 %v4336, %v5019
        %5021 = vmatprep.mubr.bf16.mxu0 %v4192
        %5022 = vmatmul.mubr.bf16.gmra.mrb[0].mxu0 %v4191
        %v5023 = vpop.f32.mrb[0].mxu0
        %v5024 = vadd.f32 %v4332, %v5023
        %v5025 = vpop.f32.mrb[0].mxu0
        %v5026 = vadd.f32 %v4336, %v5025
        %v5027 = vpop.f32.mrb[0].mxu0
        %v5028 = vadd.f32 %v4332, %v5027
        %v5029 = vpop.f32.mrb[0].mxu0
        %v5030 = vadd.f32 %v4336, %v5029
        %5031 = vdwg.mxu0
        %5032 = vmatprep.subr.bf16.mxu0 %v4756
        %5033 = vmatpush1.bf16.msra.mxu0 %v4755
        %5034 = vmatprep.subr.bf16.mxu0 %v4758
        %5035 = vmatpush1.bf16.msra.mxu0 %v4757
        %5036 = vmatprep.subr.bf16.mxu0 %v4760
        %5037 = vmatpush1.bf16.msra.mxu0 %v4759
        %5038 = vmatprep.subr.bf16.mxu0 %v4762
        %5039 = vmatpush1.bf16.msra.mxu0 %v4761
        %5040 = vmatprep.subr.bf16.mxu0 %v4764
        %5041 = vmatpush1.bf16.msra.mxu0 %v4763
        %5042 = vmatprep.subr.bf16.mxu0 %v4766
        %5043 = vmatpush1.bf16.msra.mxu0 %v4765
        %5044 = vmatprep.subr.bf16.mxu0 %v4768
        %5045 = vmatpush1.bf16.msra.mxu0 %v4767
        %5046 = vmatprep.subr.bf16.mxu0 %v4770
        %5047 = vmatpush1.bf16.msra.mxu0 %v4769
        %5048 = vmatprep.subr.bf16.mxu0 %v4772
        %5049 = vmatpush1.bf16.msra.mxu0 %v4771
        %5050 = vmatprep.subr.bf16.mxu0 %v4774
        %5051 = vmatpush1.bf16.msra.mxu0 %v4773
        %5052 = vmatprep.subr.bf16.mxu0 %v4776
        %5053 = vmatpush1.bf16.msra.mxu0 %v4775
        %5054 = vmatprep.subr.bf16.mxu0 %v4778
        %5055 = vmatpush1.bf16.msra.mxu0 %v4777
        %5056 = vmatprep.subr.bf16.mxu0 %v4780
        %5057 = vmatpush1.bf16.msra.mxu0 %v4779
        %5058 = vmatprep.subr.bf16.mxu0 %v4782
        %5059 = vmatpush1.bf16.msra.mxu0 %v4781
        %5060 = vmatprep.subr.bf16.mxu0 %v4784
        %5061 = vmatpush1.bf16.msra.mxu0 %v4783
        %5062 = vmatprep.subr.bf16.mxu0 %v4786
        %5063 = vmatpush1.bf16.msra.mxu0 %v4785
        %5064 = vmatprep.mubr.bf16.mxu0 %v4186
        %5065 = vmatmul.mubr.bf16.gmra.mrb[0].mxu0 %v4185
        %v5066 = vpop.f32.mrb[0].mxu0
        %v5067 = vadd.f32 %v5014, %v5066
        %v5068 = vpop.f32.mrb[0].mxu0
        %v5069 = vadd.f32 %v5016, %v5068
        %v5070 = vpop.f32.mrb[0].mxu0
        %v5071 = vadd.f32 %v5018, %v5070
        %v5072 = vpop.f32.mrb[0].mxu0
        %v5073 = vadd.f32 %v5020, %v5072
        %5074 = vmatprep.mubr.bf16.mxu0 %v4194
        %5075 = vmatmul.mubr.bf16.gmra.mrb[0].mxu0 %v4193
        %v5076 = vpop.f32.mrb[0].mxu0
        %v5077 = vadd.f32 %v5024, %v5076
        %v5078 = vpop.f32.mrb[0].mxu0
        %v5079 = vadd.f32 %v5026, %v5078
        %v5080 = vpop.f32.mrb[0].mxu0
        %v5081 = vadd.f32 %v5028, %v5080
        %v5082 = vpop.f32.mrb[0].mxu0
        %v5083 = vadd.f32 %v5030, %v5082
        %5084 = vdwg.mxu0
        %5085 = vmatprep.subr.bf16.mxu0 %v4788
        %5086 = vmatpush1.bf16.msra.mxu0 %v4787
        %5087 = vmatprep.subr.bf16.mxu0 %v4790
        %5088 = vmatpush1.bf16.msra.mxu0 %v4789
        %5089 = vmatprep.subr.bf16.mxu0 %v4792
        %5090 = vmatpush1.bf16.msra.mxu0 %v4791
        %5091 = vmatprep.subr.bf16.mxu0 %v4794
        %5092 = vmatpush1.bf16.msra.mxu0 %v4793
        %5093 = vmatprep.subr.bf16.mxu0 %v4796
        %5094 = vmatpush1.bf16.msra.mxu0 %v4795
        %5095 = vmatprep.subr.bf16.mxu0 %v4798
        %5096 = vmatpush1.bf16.msra.mxu0 %v4797
        %5097 = vmatprep.subr.bf16.mxu0 %v4800
        %5098 = vmatpush1.bf16.msra.mxu0 %v4799
        %5099 = vmatprep.subr.bf16.mxu0 %v4802
        %5100 = vmatpush1.bf16.msra.mxu0 %v4801
        %5101 = vmatprep.subr.bf16.mxu0 %v4804
        %5102 = vmatpush1.bf16.msra.mxu0 %v4803
        %5103 = vmatprep.subr.bf16.mxu0 %v4806
        %5104 = vmatpush1.bf16.msra.mxu0 %v4805
        %5105 = vmatprep.subr.bf16.mxu0 %v4808
        %5106 = vmatpush1.bf16.msra.mxu0 %v4807
        %5107 = vmatprep.subr.bf16.mxu0 %v4810
        %5108 = vmatpush1.bf16.msra.mxu0 %v4809
        %5109 = vmatprep.subr.bf16.mxu0 %v4812
        %5110 = vmatpush1.bf16.msra.mxu0 %v4811
        %5111 = vmatprep.subr.bf16.mxu0 %v4814
        %5112 = vmatpush1.bf16.msra.mxu0 %v4813
        %5113 = vmatprep.subr.bf16.mxu0 %v4816
        %5114 = vmatpush1.bf16.msra.mxu0 %v4815
        %5115 = vmatprep.subr.bf16.mxu0 %v4818
        %5116 = vmatpush1.bf16.msra.mxu0 %v4817
        %5117 = vmatprep.mubr.bf16.mxu0 %v4188
        %5118 = vmatmul.mubr.bf16.gmra.mrb[0].mxu0 %v4187
        %v5119 = vpop.f32.mrb[0].mxu0
        %v5120 = vadd.f32 %v5067, %v5119
        %v5121 = vpop.f32.mrb[0].mxu0
        %v5122 = vadd.f32 %v5069, %v5121
        %v5123 = vpop.f32.mrb[0].mxu0
        %v5124 = vadd.f32 %v5071, %v5123
        %v5125 = vpop.f32.mrb[0].mxu0
        %v5126 = vadd.f32 %v5073, %v5125
        %5127 = vmatprep.mubr.bf16.mxu0 %v4196
        %5128 = vmatmul.mubr.bf16.gmra.mrb[0].mxu0 %v4195
        %v5129 = vpop.f32.mrb[0].mxu0
        %v5130 = vadd.f32 %v5077, %v5129
        %v5131 = vpop.f32.mrb[0].mxu0
        %v5132 = vadd.f32 %v5079, %v5131
        %v5133 = vpop.f32.mrb[0].mxu0
        %v5134 = vadd.f32 %v5081, %v5133
        %v5135 = vpop.f32.mrb[0].mxu0
        %v5136 = vadd.f32 %v5083, %v5135
        %5137 = vdwg.mxu0
        %5138 = vmatprep.subr.bf16.mxu0 %v4820
        %5139 = vmatpush1.bf16.msra.mxu0 %v4819
        %5140 = vmatprep.subr.bf16.mxu0 %v4822
        %5141 = vmatpush1.bf16.msra.mxu0 %v4821
        %5142 = vmatprep.subr.bf16.mxu0 %v4824
        %5143 = vmatpush1.bf16.msra.mxu0 %v4823
        %5144 = vmatprep.subr.bf16.mxu0 %v4826
        %5145 = vmatpush1.bf16.msra.mxu0 %v4825
        %5146 = vmatprep.subr.bf16.mxu0 %v4828
        %5147 = vmatpush1.bf16.msra.mxu0 %v4827
        %5148 = vmatprep.subr.bf16.mxu0 %v4830
        %5149 = vmatpush1.bf16.msra.mxu0 %v4829
        %5150 = vmatprep.subr.bf16.mxu0 %v4832
        %5151 = vmatpush1.bf16.msra.mxu0 %v4831
        %5152 = vmatprep.subr.bf16.mxu0 %v4834
        %5153 = vmatpush1.bf16.msra.mxu0 %v4833
        %5154 = vmatprep.subr.bf16.mxu0 %v4836
        %5155 = vmatpush1.bf16.msra.mxu0 %v4835
        %5156 = vmatprep.subr.bf16.mxu0 %v4838
        %5157 = vmatpush1.bf16.msra.mxu0 %v4837
        %5158 = vmatprep.subr.bf16.mxu0 %v4840
        %5159 = vmatpush1.bf16.msra.mxu0 %v4839
        %5160 = vmatprep.subr.bf16.mxu0 %v4842
        %5161 = vmatpush1.bf16.msra.mxu0 %v4841
        %5162 = vmatprep.subr.bf16.mxu0 %v4844
        %5163 = vmatpush1.bf16.msra.mxu0 %v4843
        %5164 = vmatprep.subr.bf16.mxu0 %v4846
        %5165 = vmatpush1.bf16.msra.mxu0 %v4845
        %5166 = vmatprep.subr.bf16.mxu0 %v4848
        %5167 = vmatpush1.bf16.msra.mxu0 %v4847
        %5168 = vmatprep.subr.bf16.mxu0 %v4850
        %5169 = vmatpush1.bf16.msra.mxu0 %v4849
        %5170 = vmatprep.mubr.bf16.mxu0 %v4190
        %5171 = vmatmul.mubr.bf16.gmra.mrb[0].mxu0 %v4189
        %v5172 = vpop.f32.mrb[0].mxu0
        %v5173 = vadd.f32 %v5120, %v5172
        %v5174 = vpop.f32.mrb[0].mxu0
        %v5175 = vadd.f32 %v5122, %v5174
        %v5176 = vpop.f32.mrb[0].mxu0
        %v5177 = vadd.f32 %v5124, %v5176
        %v5178 = vpop.f32.mrb[0].mxu0
        %v5179 = vadd.f32 %v5126, %v5178
        %5180 = vmatprep.mubr.bf16.mxu0 %v4198
        %5181 = vmatmul.mubr.bf16.gmra.mrb[0].mxu0 %v4197
        %v5182 = vpop.f32.mrb[0].mxu0
        %v5183 = vadd.f32 %v5130, %v5182
        %v5184 = vpop.f32.mrb[0].mxu0
        %v5185 = vadd.f32 %v5132, %v5184
        %v5186 = vpop.f32.mrb[0].mxu0
        %v5187 = vadd.f32 %v5134, %v5186
        %v5188 = vpop.f32.mrb[0].mxu0
        %v5189 = vadd.f32 %v5136, %v5188
        %5190 = vdwg.mxu0
        %v5191 = vadd.f32 %v2789, %v5173
        %v5192 = vadd.f32 %v2790, %v5175
        %v5193 = vadd.f32 %v2791, %v5177
        %v5194 = vadd.f32 %v2792, %v5179
        %v5195 = vadd.f32 %v2793, %v5183
        %v5196 = vadd.f32 %v2794, %v5185
        %v5197 = vadd.f32 %v2795, %v5187
        %v5198 = vadd.f32 %v2796, %v5189
        %5199 = vst [vmem:[%s617] sm:$0xff] %v5191
        %5200 = vst [vmem:[%s617 + $0x8] sm:$0xff] %v5192
        %5201 = vst [vmem:[%s617 + $0x10] sm:$0xff] %v5193
        %5202 = vst [vmem:[%s617 + $0x18] sm:$0xff] %v5194
        %5203 = vst [vmem:[%s617 + $0x20] sm:$0xff] %v5195
        %5204 = vst [vmem:[%s617 + $0x28] sm:$0xff] %v5196
        %5205 = vst [vmem:[%s617 + $0x30] sm:$0xff] %v5197
        %5206 = vst [vmem:[%s617 + $0x38] sm:$0xff] %v5198
        %s5207 = sand.u32 %s322, 1
        %s5208 = scalar_lea.sflag [#allocation5], %s5207
        %s5209 = sand.u32 %s322, 1
        %s5210 = smul.addr %s5209, 64
        %s5211 = scalar_lea.vmem [#allocation24], %s5210
        // Predicated region
        $region125: #{tpu_custom_call.1} parent=71 // pred_check
          %p5212 = pneg %p332
        $region126: #{tpu_custom_call.1} parent=71 // pred_check_branch
          %5214 = sbr.rel (%p5212) target = $region128
        $region127: #{tpu_custom_call.1} parent=71 // pred_region
          %s5215 = smul.u32 2, %s36
          %s5217 = ssub.s32 1024, 1024
          %5218 = vsyncadd %s5208, %s5217
          %s5219 = smul.addr %s5215, 4
          %s5220 = smul.addr %s5219, 128
          %s5221 = scalar_lea.hbm %s13, %s5220
          %s5222 = sshll.u32 %s5211, 4
          %s5223 = int_to_ptr.vmem [resolvable:$true] %s5222
          %5228 = dma.vmem_to_hbm [thread:$0]  %s5223, 1024, %s5221, %s5208, 256, 256, 16
        $region128: #{tpu_custom_call.1} parent=71 // pred_fallthru
          _
      $region72: #{tpu_custom_call.1} parent=5 // pred_fallthru
        _
      %p5229 = scmp.le.s32.totalorder 2, %s31
      // Predicated region
      $region129: #{tpu_custom_call.1} parent=5 // pred_check
        %p5230 = pneg %p5229
      $region130: #{tpu_custom_call.1} parent=5 // pred_check_branch
        %5232 = sbr.rel (%p5230) target = $region132
      $region131: #{tpu_custom_call.1} parent=5 // pred_region
        %s5233 = ssub.s32 %s31, 2
        // Predicated region
        $region133: #{tpu_custom_call.1} parent=131 // pred_check
          %p5234 = pneg %p338
        $region134: #{tpu_custom_call.1} parent=131 // pred_check_branch
          %5236 = sbr.rel (%p5234) target = $region136
        $region135: #{tpu_custom_call.1} parent=131 // pred_region
          %s5237 = sand.u32 %s323, 1
          %s5238 = scalar_lea.sflag [#allocation5], %s5237
          %s5239 = sand.u32 %s323, 1
          %s5240 = smul.addr %s5239, 64
          %s5241 = scalar_lea.vmem [#allocation24], %s5240
          %5242 = dma.done %s5238, 1024
        $region136: #{tpu_custom_call.1} parent=131 // pred_fallthru
          _
      $region132: #{tpu_custom_call.1} parent=5 // pred_fallthru
        _
    $region6: #{tpu_custom_call.1} parent=1 // loop_footer
      %s35 = sadd.s32 1, %s31
    $region7: #{tpu_custom_call.1} parent=1 // loop_footer_branch
      %30 = sbr.rel target = $region3
    $region8: #{tpu_custom_call.1} parent=1 // loop_exit
      _
    %5243 = vsyncpa [#allocation4], 1
    %s5244 = scalar_lea.sflag [#allocation4], 1
    %5245 = vsyncpa %s5244, 1
    %5246 = vsyncpa [#allocation7], 1
    %5247 = vsyncpa [#allocation10], 1
    %5248 = vsyncpa [#allocation13], 1
    %5249 = vsyncpa [#allocation16], 1
    %5250 = vsyncpa [#allocation19], 1
    %5251 = vsyncpa [#allocation22], 1
    %5252 = vsyncpa [#allocation5], 1
    %s5253 = scalar_lea.sflag [#allocation5], 1
    %5254 = vsyncpa %s5253, 1

</llo_original>
